<compile_context>
chip_gen: v6e
topology: v6e:2x2x1
jax: 0.10.0
libtpu: 0.0.40
codegen_flags: <defaults>
</compile_context>

<pallas_src>
import functools

import jax
import jax.numpy as jnp
from jax.experimental import pallas as pl
from jax.experimental.pallas import tpu as pltpu

LN_EPS = 1e-5        # torch.nn.LayerNorm default
NEG_INF = -1e30

# model hyper-parameters (TransformerClassifier.Params, small demo sizes)
EMBED_DIM = 32
KEY_DIM = 32
HIDDEN_DIM = 128
N_HEADS = 4
N_LAYERS = 3
HEAD_DIM = KEY_DIM // N_HEADS


def _layer_norm(x, gamma, beta):
    """LayerNorm over the last dim (biased variance, like torch)."""
    mu = jnp.mean(x, axis=-1, keepdims=True)
    xc = x - mu
    var = jnp.mean(xc * xc, axis=-1, keepdims=True)
    return xc * jax.lax.rsqrt(var + LN_EPS) * gamma + beta


def fused_transformer_kernel(n_layers, n_heads, head_dim,
                             x_ref, maskk_ref, maskq_ref,
                             wqkv_ref, wo_ref, bo_ref,
                             g1_ref, be1_ref,
                             w1_ref, b1_ref, w2_ref, b2_ref,
                             g2_ref, be2_ref,
                             wp_ref, bp_ref,
                             out_ref):
    """Full forward for ONE batch element: 3 transformer blocks + masked-max + proj."""
    L, D = x_ref.shape[1], x_ref.shape[2]
    H, K = n_heads, head_dim
    Dk = H * K

    h = x_ref[0]                                   # (L, D) f32, stays resident
    # key-padding bias: (1, 1, L), broadcasts over (H, L_q, L_k) on the key axis
    neg_bias = (1.0 - maskk_ref[...]) * NEG_INF

    for l in range(n_layers):                      # static unrolled layer loop
        # ---- multi-head attention ----
        # fused QKV projection (1/sqrt(K) already folded into the Q columns)
        qkv = jnp.dot(h, wqkv_ref[l], preferred_element_type=jnp.float32)   # (L, 3*Dk)
        # split heads -> (H, L, K) via cheap lane slices + leading-axis stack
        qh = jnp.stack([qkv[:, 0 * Dk + i * K: 0 * Dk + (i + 1) * K] for i in range(H)], axis=0)
        kh = jnp.stack([qkv[:, 1 * Dk + i * K: 1 * Dk + (i + 1) * K] for i in range(H)], axis=0)
        vh = jnp.stack([qkv[:, 2 * Dk + i * K: 2 * Dk + (i + 1) * K] for i in range(H)], axis=0)

        # batched-over-heads attention (single score / context contraction)
        s = jnp.einsum('hld,hmd->hlm', qh, kh,
                       preferred_element_type=jnp.float32)                  # (H, L, L)
        s = s + neg_bias                                                    # mask pad keys
        s = s - jnp.max(s, axis=-1, keepdims=True)
        p = jnp.exp(s)
        p = p * pl.reciprocal(jnp.sum(p, axis=-1, keepdims=True), approx=True)
        ctx = jnp.einsum('hlm,hmd->hld', p, vh,
                         preferred_element_type=jnp.float32)                # (H, L, K)
        att = jnp.concatenate([ctx[i] for i in range(H)], axis=-1)          # (L, Dk)

        # output projection + residual + LayerNorm
        att = jnp.dot(att, wo_ref[l], preferred_element_type=jnp.float32) + bo_ref[l]
        h = _layer_norm(h + att, g1_ref[l], be1_ref[l])

        # ---- position-wise FFN + residual + LayerNorm ----
        ff = jnp.dot(h, w1_ref[l], preferred_element_type=jnp.float32) + b1_ref[l]
        ff = jnp.maximum(ff, 0.0)
        ff = jnp.dot(ff, w2_ref[l], preferred_element_type=jnp.float32) + b2_ref[l]
        h = _layer_norm(h + ff, g2_ref[l], be2_ref[l])

    # ---- masked max readout over the sequence + final Linear(D, 2) ----
    mask_q = maskq_ref[0]                                                   # (L, 1)
    pooled = jnp.max(jnp.where(mask_q > 0, h, NEG_INF), axis=0, keepdims=True)  # (1, D)
    out_ref[0] = (jnp.dot(pooled, wp_ref[...], preferred_element_type=jnp.float32)
                  + bp_ref[...])


def _full_spec(a):
    """Whole-array block with a constant index map (DMA'd once across the grid)."""
    nd = a.ndim
    return pl.BlockSpec(a.shape, lambda i, nd=nd: (0,) * nd)


def transformer_classifier_forward(X, packed):
    N, L = X.shape
    D = EMBED_DIM

    # utils.get_mask(X): 1.0 where token != 0 (padding_idx=0)
    mask = (X != 0).astype(jnp.float32)
    mask_k = mask[:, None, :]                      # (N, 1, L)  key mask
    mask_q = mask[:, :, None]                      # (N, L, 1)  readout mask
    # nn.Embedding gather is glue, done in JAX
    h0 = jnp.take(packed['embedding'], X, axis=0).astype(jnp.float32)   # (N, L, D)

    kernel = functools.partial(fused_transformer_kernel, N_LAYERS, N_HEADS, HEAD_DIM)

    weights = (packed['wqkv'], packed['wo'], packed['bo'],
               packed['g1'], packed['be1'],
               packed['w1'], packed['b1'], packed['w2'], packed['b2'],
               packed['g2'], packed['be2'],
               packed['proj_w'], packed['proj_b'])

    in_specs = [
        pl.BlockSpec((1, L, D), lambda i: (i, 0, 0)),   # h0
        pl.BlockSpec((1, 1, L), lambda i: (i, 0, 0)),   # key mask
        pl.BlockSpec((1, L, 1), lambda i: (i, 0, 0)),   # readout mask
    ] + [_full_spec(w) for w in weights]

    out = pl.pallas_call(
        kernel,
        out_shape=jax.ShapeDtypeStruct((N, 1, 2), jnp.float32),
        grid=(N,),
        in_specs=in_specs,
        out_specs=pl.BlockSpec((1, 1, 2), lambda i: (i, 0, 0)),
        compiler_params=pltpu.CompilerParams(
            dimension_semantics=("parallel",)),
    )(h0, mask_k, mask_q, *weights)
    return out.reshape(N, 2)


def init_params(key, num_tokens):
    """Per-layer parameters in PyTorch-equivalent (transposed) layout."""
    scale = 0.05
    keys = iter(jax.random.split(key, 64))

    def nrm(shape):
        return scale * jax.random.normal(next(keys), shape, jnp.float32)

    emb = nrm((num_tokens, EMBED_DIM))
    emb = emb.at[0].set(0.0)               # padding_idx=0

    blocks = []
    for _ in range(N_LAYERS):
        blocks.append(dict(
            wq=nrm((EMBED_DIM, KEY_DIM)),
            wk=nrm((EMBED_DIM, KEY_DIM)),
            wv=nrm((EMBED_DIM, KEY_DIM)),
            wo=nrm((KEY_DIM, EMBED_DIM)),
            bo=nrm((1, EMBED_DIM)),
            g1=jnp.ones((1, EMBED_DIM), jnp.float32),
            be1=jnp.zeros((1, EMBED_DIM), jnp.float32),
            w1=nrm((EMBED_DIM, HIDDEN_DIM)),
            b1=nrm((1, HIDDEN_DIM)),
            w2=nrm((HIDDEN_DIM, EMBED_DIM)),
            b2=nrm((1, EMBED_DIM)),
            g2=jnp.ones((1, EMBED_DIM), jnp.float32),
            be2=jnp.zeros((1, EMBED_DIM), jnp.float32),
        ))

    proj_w = nrm((EMBED_DIM, 2))
    proj_b = nrm((1, 2))
    return dict(embedding=emb, blocks=blocks, proj_w=proj_w, proj_b=proj_b)


def pack_params(params):
    """Host-side one-time transform: stack per-layer weights into (n_layers, ...)
    arrays, fuse Wq|Wk|Wv into a single (D, 3*Dk) weight, and fold the
    1/sqrt(head_dim) attention scale into the Q columns."""
    inv_sqrt_k = 1.0 / (HEAD_DIM ** 0.5)
    blocks = params['blocks']
    stk = lambda name: jnp.stack([b[name] for b in blocks])
    wqkv = jnp.concatenate(
        [jnp.stack([b['wq'] * inv_sqrt_k for b in blocks]),
         stk('wk'), stk('wv')], axis=-1)                       # (n_layers, D, 3*Dk)
    return dict(
        embedding=params['embedding'],
        wqkv=wqkv, wo=stk('wo'), bo=stk('bo'),
        g1=stk('g1'), be1=stk('be1'),
        w1=stk('w1'), b1=stk('b1'), w2=stk('w2'), b2=stk('b2'),
        g2=stk('g2'), be2=stk('be2'),
        proj_w=params['proj_w'], proj_b=params['proj_b'],
    )


if __name__ == "__main__":
    N, L = 2, 8
    NUM_TOKENS = 16

    key = jax.random.PRNGKey(0)
    k_tok, k_param = jax.random.split(key)

    X = jax.random.randint(k_tok, (N, L), 1, NUM_TOKENS, dtype=jnp.int32)
    # add trailing padding (token 0) to exercise the mask
    X = X.at[0, 6:].set(0)
    X = X.at[1, 5:].set(0)

    packed = pack_params(init_params(k_param, NUM_TOKENS))

    logits = transformer_classifier_forward(X, packed)
    jax.block_until_ready(logits)
    assert logits.shape == (N, 2) and logits.dtype == jnp.float32
    assert bool(jnp.all(jnp.isfinite(logits)))
    print("KERNEL_OK")
</pallas_src>

<mosaic_0001>
module attributes {stable_mosaic.version = 11 : i64} {
  func.func @fused_transformer_kernel(%arg0: i32, %arg1: memref<1x8x32xf32, #tpu.memory_space<vmem>>, %arg2: memref<1x1x8xf32, #tpu.memory_space<vmem>>, %arg3: memref<1x8x1xf32, #tpu.memory_space<vmem>>, %arg4: memref<3x32x96xf32, #tpu.memory_space<vmem>>, %arg5: memref<3x32x32xf32, #tpu.memory_space<vmem>>, %arg6: memref<3x1x32xf32, #tpu.memory_space<vmem>>, %arg7: memref<3x1x32xf32, #tpu.memory_space<vmem>>, %arg8: memref<3x1x32xf32, #tpu.memory_space<vmem>>, %arg9: memref<3x32x128xf32, #tpu.memory_space<vmem>>, %arg10: memref<3x1x128xf32, #tpu.memory_space<vmem>>, %arg11: memref<3x128x32xf32, #tpu.memory_space<vmem>>, %arg12: memref<3x1x32xf32, #tpu.memory_space<vmem>>, %arg13: memref<3x1x32xf32, #tpu.memory_space<vmem>>, %arg14: memref<3x1x32xf32, #tpu.memory_space<vmem>>, %arg15: memref<32x2xf32, #tpu.memory_space<vmem>>, %arg16: memref<1x2xf32, #tpu.memory_space<vmem>>, %arg17: memref<1x1x2xf32, #tpu.memory_space<vmem>>) attributes {dimension_semantics = [#tpu.dimension_semantics<parallel>], iteration_bounds = array<i64: 2>, scalar_prefetch = 0 : i64, scratch_operands = 0 : i64, tpu.core_type = #tpu.core_type<tc>, window_params = [{transform_indices = @transform_0, window_bounds = array<i64: 1, 8, 32>}, {transform_indices = @transform_1, window_bounds = array<i64: 1, 1, 8>}, {transform_indices = @transform_2, window_bounds = array<i64: 1, 8, 1>}, {pipeline_mode = #tpu.pipeline_mode<synchronous>, transform_indices = @transform_3, window_bounds = array<i64: 3, 32, 96>}, {pipeline_mode = #tpu.pipeline_mode<synchronous>, transform_indices = @transform_4, window_bounds = array<i64: 3, 32, 32>}, {pipeline_mode = #tpu.pipeline_mode<synchronous>, transform_indices = @transform_5, window_bounds = array<i64: 3, 1, 32>}, {pipeline_mode = #tpu.pipeline_mode<synchronous>, transform_indices = @transform_6, window_bounds = array<i64: 3, 1, 32>}, {pipeline_mode = #tpu.pipeline_mode<synchronous>, transform_indices = @transform_7, window_bounds = array<i64: 3, 1, 32>}, {pipeline_mode = #tpu.pipeline_mode<synchronous>, transform_indices = @transform_8, window_bounds = array<i64: 3, 32, 128>}, {pipeline_mode = #tpu.pipeline_mode<synchronous>, transform_indices = @transform_9, window_bounds = array<i64: 3, 1, 128>}, {pipeline_mode = #tpu.pipeline_mode<synchronous>, transform_indices = @transform_10, window_bounds = array<i64: 3, 128, 32>}, {pipeline_mode = #tpu.pipeline_mode<synchronous>, transform_indices = @transform_11, window_bounds = array<i64: 3, 1, 32>}, {pipeline_mode = #tpu.pipeline_mode<synchronous>, transform_indices = @transform_12, window_bounds = array<i64: 3, 1, 32>}, {pipeline_mode = #tpu.pipeline_mode<synchronous>, transform_indices = @transform_13, window_bounds = array<i64: 3, 1, 32>}, {pipeline_mode = #tpu.pipeline_mode<synchronous>, transform_indices = @transform_14, window_bounds = array<i64: 32, 2>}, {pipeline_mode = #tpu.pipeline_mode<synchronous>, transform_indices = @transform_15, window_bounds = array<i64: 1, 2>}, {transform_indices = @transform_16, window_bounds = array<i64: 1, 1, 2>}]} {
    %c0 = arith.constant 0 : index
    %c0_0 = arith.constant 0 : index
    %c0_1 = arith.constant 0 : index
    %0 = vector.load %arg1[%c0, %c0_0, %c0_1] : memref<1x8x32xf32, #tpu.memory_space<vmem>>, vector<1x8x32xf32>
    %1 = vector.shape_cast %0 : vector<1x8x32xf32> to vector<8x32xf32>
    %c0_2 = arith.constant 0 : index
    %c0_3 = arith.constant 0 : index
    %c0_4 = arith.constant 0 : index
    %2 = vector.load %arg2[%c0_2, %c0_3, %c0_4] : memref<1x1x8xf32, #tpu.memory_space<vmem>>, vector<1x1x8xf32>
    %cst = arith.constant 1.000000e+00 : f32
    %3 = vector.broadcast %cst : f32 to vector<1x1x8xf32>
    %4 = arith.subf %3, %2 : vector<1x1x8xf32>
    %cst_5 = arith.constant -1.000000e+30 : f32
    %5 = vector.broadcast %cst_5 : f32 to vector<1x1x8xf32>
    %6 = arith.mulf %4, %5 : vector<1x1x8xf32>
    %c0_6 = arith.constant 0 : index
    %c0_7 = arith.constant 0 : index
    %c0_8 = arith.constant 0 : index
    %7 = vector.load %arg4[%c0_6, %c0_7, %c0_8] : memref<3x32x96xf32, #tpu.memory_space<vmem>>, vector<1x32x96xf32>
    %8 = vector.shape_cast %7 : vector<1x32x96xf32> to vector<32x96xf32>
    %cst_9 = arith.constant dense<0.000000e+00> : vector<8x96xf32>
    %9 = tpu.matmul %1, %8, %cst_9 {dimension_numbers = #tpu.dot_dimension_numbers<[1], [0], [0], [1], [0, 0, 1, 1], [], []>} : vector<8x32xf32>, vector<32x96xf32>, vector<8x96xf32> -> vector<8x96xf32>
    %10 = vector.extract_strided_slice %9 {offsets = [0, 0], sizes = [8, 8], strides = [1, 1]} : vector<8x96xf32> to vector<8x8xf32>
    %11 = vector.extract_strided_slice %9 {offsets = [0, 8], sizes = [8, 8], strides = [1, 1]} : vector<8x96xf32> to vector<8x8xf32>
    %12 = vector.extract_strided_slice %9 {offsets = [0, 16], sizes = [8, 8], strides = [1, 1]} : vector<8x96xf32> to vector<8x8xf32>
    %13 = vector.extract_strided_slice %9 {offsets = [0, 24], sizes = [8, 8], strides = [1, 1]} : vector<8x96xf32> to vector<8x8xf32>
    %14 = vector.shape_cast %10 : vector<8x8xf32> to vector<1x8x8xf32>
    %15 = vector.shape_cast %11 : vector<8x8xf32> to vector<1x8x8xf32>
    %16 = vector.shape_cast %12 : vector<8x8xf32> to vector<1x8x8xf32>
    %17 = vector.shape_cast %13 : vector<8x8xf32> to vector<1x8x8xf32>
    %18 = tpu.concatenate %14, %15, %16, %17 in 0 : vector<1x8x8xf32>, vector<1x8x8xf32>, vector<1x8x8xf32>, vector<1x8x8xf32> -> vector<4x8x8xf32>
    %19 = vector.extract_strided_slice %9 {offsets = [0, 32], sizes = [8, 8], strides = [1, 1]} : vector<8x96xf32> to vector<8x8xf32>
    %20 = vector.extract_strided_slice %9 {offsets = [0, 40], sizes = [8, 8], strides = [1, 1]} : vector<8x96xf32> to vector<8x8xf32>
    %21 = vector.extract_strided_slice %9 {offsets = [0, 48], sizes = [8, 8], strides = [1, 1]} : vector<8x96xf32> to vector<8x8xf32>
    %22 = vector.extract_strided_slice %9 {offsets = [0, 56], sizes = [8, 8], strides = [1, 1]} : vector<8x96xf32> to vector<8x8xf32>
    %23 = vector.shape_cast %19 : vector<8x8xf32> to vector<1x8x8xf32>
    %24 = vector.shape_cast %20 : vector<8x8xf32> to vector<1x8x8xf32>
    %25 = vector.shape_cast %21 : vector<8x8xf32> to vector<1x8x8xf32>
    %26 = vector.shape_cast %22 : vector<8x8xf32> to vector<1x8x8xf32>
    %27 = tpu.concatenate %23, %24, %25, %26 in 0 : vector<1x8x8xf32>, vector<1x8x8xf32>, vector<1x8x8xf32>, vector<1x8x8xf32> -> vector<4x8x8xf32>
    %28 = vector.extract_strided_slice %9 {offsets = [0, 64], sizes = [8, 8], strides = [1, 1]} : vector<8x96xf32> to vector<8x8xf32>
    %29 = vector.extract_strided_slice %9 {offsets = [0, 72], sizes = [8, 8], strides = [1, 1]} : vector<8x96xf32> to vector<8x8xf32>
    %30 = vector.extract_strided_slice %9 {offsets = [0, 80], sizes = [8, 8], strides = [1, 1]} : vector<8x96xf32> to vector<8x8xf32>
    %31 = vector.extract_strided_slice %9 {offsets = [0, 88], sizes = [8, 8], strides = [1, 1]} : vector<8x96xf32> to vector<8x8xf32>
    %32 = vector.shape_cast %28 : vector<8x8xf32> to vector<1x8x8xf32>
    %33 = vector.shape_cast %29 : vector<8x8xf32> to vector<1x8x8xf32>
    %34 = vector.shape_cast %30 : vector<8x8xf32> to vector<1x8x8xf32>
    %35 = vector.shape_cast %31 : vector<8x8xf32> to vector<1x8x8xf32>
    %36 = tpu.concatenate %32, %33, %34, %35 in 0 : vector<1x8x8xf32>, vector<1x8x8xf32>, vector<1x8x8xf32>, vector<1x8x8xf32> -> vector<4x8x8xf32>
    "tpu.trace_start"() <{level = 10 : i32, message = "hld,hmd->hlm"}> : () -> ()
    %cst_10 = arith.constant dense<0.000000e+00> : vector<4x8x8xf32>
    %37 = tpu.matmul %18, %27, %cst_10 {dimension_numbers = #tpu.dot_dimension_numbers<[2], [2], [1], [1], [0, 0, 0, 1, 1, 1], [0], [0]>} : vector<4x8x8xf32>, vector<4x8x8xf32>, vector<4x8x8xf32> -> vector<4x8x8xf32>
    "tpu.trace_stop"() : () -> ()
    %38 = vector.broadcast %6 : vector<1x1x8xf32> to vector<4x8x8xf32>
    %39 = arith.addf %37, %38 : vector<4x8x8xf32>
    %cst_11 = arith.constant dense<0xFF800000> : vector<4x8xf32>
    %40 = vector.multi_reduction <maximumf>, %39, %cst_11 [2] : vector<4x8x8xf32> to vector<4x8xf32>
    %41 = vector.shape_cast %40 : vector<4x8xf32> to vector<4x8x1xf32>
    %42 = vector.broadcast %41 : vector<4x8x1xf32> to vector<4x8x8xf32>
    %43 = arith.subf %39, %42 : vector<4x8x8xf32>
    %44 = math.exp %43 : vector<4x8x8xf32>
    %cst_12 = arith.constant dense<0.000000e+00> : vector<4x8xf32>
    %45 = vector.multi_reduction <add>, %44, %cst_12 [2] : vector<4x8x8xf32> to vector<4x8xf32>
    %46 = vector.shape_cast %45 : vector<4x8xf32> to vector<4x8x1xf32>
    %47 = tpu.reciprocal %46 {approx = true} : vector<4x8x1xf32> -> vector<4x8x1xf32>
    %48 = vector.broadcast %47 : vector<4x8x1xf32> to vector<4x8x8xf32>
    %49 = arith.mulf %44, %48 : vector<4x8x8xf32>
    "tpu.trace_start"() <{level = 10 : i32, message = "hlm,hmd->hld"}> : () -> ()
    %cst_13 = arith.constant dense<0.000000e+00> : vector<4x8x8xf32>
    %50 = tpu.matmul %49, %36, %cst_13 {dimension_numbers = #tpu.dot_dimension_numbers<[2], [1], [1], [2], [0, 0, 0, 1, 1, 2], [0], [0]>} : vector<4x8x8xf32>, vector<4x8x8xf32>, vector<4x8x8xf32> -> vector<4x8x8xf32>
    "tpu.trace_stop"() : () -> ()
    %51 = vector.extract_strided_slice %50 {offsets = [0, 0, 0], sizes = [1, 8, 8], strides = [1, 1, 1]} : vector<4x8x8xf32> to vector<1x8x8xf32>
    %52 = vector.shape_cast %51 : vector<1x8x8xf32> to vector<8x8xf32>
    %53 = vector.extract_strided_slice %50 {offsets = [1, 0, 0], sizes = [1, 8, 8], strides = [1, 1, 1]} : vector<4x8x8xf32> to vector<1x8x8xf32>
    %54 = vector.shape_cast %53 : vector<1x8x8xf32> to vector<8x8xf32>
    %55 = vector.extract_strided_slice %50 {offsets = [2, 0, 0], sizes = [1, 8, 8], strides = [1, 1, 1]} : vector<4x8x8xf32> to vector<1x8x8xf32>
    %56 = vector.shape_cast %55 : vector<1x8x8xf32> to vector<8x8xf32>
    %57 = vector.extract_strided_slice %50 {offsets = [3, 0, 0], sizes = [1, 8, 8], strides = [1, 1, 1]} : vector<4x8x8xf32> to vector<1x8x8xf32>
    %58 = vector.shape_cast %57 : vector<1x8x8xf32> to vector<8x8xf32>
    %59 = tpu.concatenate %52, %54, %56, %58 in 1 : vector<8x8xf32>, vector<8x8xf32>, vector<8x8xf32>, vector<8x8xf32> -> vector<8x32xf32>
    %c0_14 = arith.constant 0 : index
    %c0_15 = arith.constant 0 : index
    %c0_16 = arith.constant 0 : index
    %60 = vector.load %arg5[%c0_14, %c0_15, %c0_16] : memref<3x32x32xf32, #tpu.memory_space<vmem>>, vector<1x32x32xf32>
    %61 = vector.shape_cast %60 : vector<1x32x32xf32> to vector<32x32xf32>
    %cst_17 = arith.constant dense<0.000000e+00> : vector<8x32xf32>
    %62 = tpu.matmul %59, %61, %cst_17 {dimension_numbers = #tpu.dot_dimension_numbers<[1], [0], [0], [1], [0, 0, 1, 1], [], []>} : vector<8x32xf32>, vector<32x32xf32>, vector<8x32xf32> -> vector<8x32xf32>
    %c0_18 = arith.constant 0 : index
    %c0_19 = arith.constant 0 : index
    %c0_20 = arith.constant 0 : index
    %63 = vector.load %arg6[%c0_18, %c0_19, %c0_20] : memref<3x1x32xf32, #tpu.memory_space<vmem>>, vector<1x1x32xf32>
    %64 = vector.shape_cast %63 : vector<1x1x32xf32> to vector<1x32xf32>
    %65 = vector.broadcast %64 : vector<1x32xf32> to vector<8x32xf32>
    %66 = arith.addf %62, %65 : vector<8x32xf32>
    %67 = arith.addf %1, %66 : vector<8x32xf32>
    %c0_21 = arith.constant 0 : index
    %c0_22 = arith.constant 0 : index
    %c0_23 = arith.constant 0 : index
    %68 = vector.load %arg7[%c0_21, %c0_22, %c0_23] : memref<3x1x32xf32, #tpu.memory_space<vmem>>, vector<1x1x32xf32>
    %69 = vector.shape_cast %68 : vector<1x1x32xf32> to vector<1x32xf32>
    %c0_24 = arith.constant 0 : index
    %c0_25 = arith.constant 0 : index
    %c0_26 = arith.constant 0 : index
    %70 = vector.load %arg8[%c0_24, %c0_25, %c0_26] : memref<3x1x32xf32, #tpu.memory_space<vmem>>, vector<1x1x32xf32>
    %71 = vector.shape_cast %70 : vector<1x1x32xf32> to vector<1x32xf32>
    %cst_27 = arith.constant dense<0.000000e+00> : vector<8xf32>
    %72 = vector.multi_reduction <add>, %67, %cst_27 [1] : vector<8x32xf32> to vector<8xf32>
    %73 = vector.shape_cast %72 : vector<8xf32> to vector<8x1xf32>
    %cst_28 = arith.constant 3.200000e+01 : f32
    %74 = vector.broadcast %cst_28 : f32 to vector<8x1xf32>
    %75 = arith.divf %73, %74 : vector<8x1xf32>
    %76 = vector.broadcast %75 : vector<8x1xf32> to vector<8x32xf32>
    %77 = arith.subf %67, %76 : vector<8x32xf32>
    %78 = arith.mulf %77, %77 : vector<8x32xf32>
    %cst_29 = arith.constant dense<0.000000e+00> : vector<8xf32>
    %79 = vector.multi_reduction <add>, %78, %cst_29 [1] : vector<8x32xf32> to vector<8xf32>
    %80 = vector.shape_cast %79 : vector<8xf32> to vector<8x1xf32>
    %cst_30 = arith.constant 3.200000e+01 : f32
    %81 = vector.broadcast %cst_30 : f32 to vector<8x1xf32>
    %82 = arith.divf %80, %81 : vector<8x1xf32>
    %cst_31 = arith.constant 9.99999974E-6 : f32
    %83 = vector.broadcast %cst_31 : f32 to vector<8x1xf32>
    %84 = arith.addf %82, %83 : vector<8x1xf32>
    %85 = math.rsqrt %84 : vector<8x1xf32>
    %86 = vector.broadcast %85 : vector<8x1xf32> to vector<8x32xf32>
    %87 = arith.mulf %77, %86 : vector<8x32xf32>
    %88 = vector.broadcast %69 : vector<1x32xf32> to vector<8x32xf32>
    %89 = arith.mulf %87, %88 : vector<8x32xf32>
    %90 = vector.broadcast %71 : vector<1x32xf32> to vector<8x32xf32>
    %91 = arith.addf %89, %90 : vector<8x32xf32>
    %c0_32 = arith.constant 0 : index
    %c0_33 = arith.constant 0 : index
    %c0_34 = arith.constant 0 : index
    %92 = vector.load %arg9[%c0_32, %c0_33, %c0_34] : memref<3x32x128xf32, #tpu.memory_space<vmem>>, vector<1x32x128xf32>
    %93 = vector.shape_cast %92 : vector<1x32x128xf32> to vector<32x128xf32>
    %cst_35 = arith.constant dense<0.000000e+00> : vector<8x128xf32>
    %94 = tpu.matmul %91, %93, %cst_35 {dimension_numbers = #tpu.dot_dimension_numbers<[1], [0], [0], [1], [0, 0, 1, 1], [], []>} : vector<8x32xf32>, vector<32x128xf32>, vector<8x128xf32> -> vector<8x128xf32>
    %c0_36 = arith.constant 0 : index
    %c0_37 = arith.constant 0 : index
    %c0_38 = arith.constant 0 : index
    %95 = vector.load %arg10[%c0_36, %c0_37, %c0_38] : memref<3x1x128xf32, #tpu.memory_space<vmem>>, vector<1x1x128xf32>
    %96 = vector.shape_cast %95 : vector<1x1x128xf32> to vector<1x128xf32>
    %97 = vector.broadcast %96 : vector<1x128xf32> to vector<8x128xf32>
    %98 = arith.addf %94, %97 : vector<8x128xf32>
    %cst_39 = arith.constant 0.000000e+00 : f32
    %99 = vector.broadcast %cst_39 : f32 to vector<8x128xf32>
    %100 = arith.maximumf %98, %99 : vector<8x128xf32>
    %c0_40 = arith.constant 0 : index
    %c0_41 = arith.constant 0 : index
    %c0_42 = arith.constant 0 : index
    %101 = vector.load %arg11[%c0_40, %c0_41, %c0_42] : memref<3x128x32xf32, #tpu.memory_space<vmem>>, vector<1x128x32xf32>
    %102 = vector.shape_cast %101 : vector<1x128x32xf32> to vector<128x32xf32>
    %cst_43 = arith.constant dense<0.000000e+00> : vector<8x32xf32>
    %103 = tpu.matmul %100, %102, %cst_43 {dimension_numbers = #tpu.dot_dimension_numbers<[1], [0], [0], [1], [0, 0, 1, 1], [], []>} : vector<8x128xf32>, vector<128x32xf32>, vector<8x32xf32> -> vector<8x32xf32>
    %c0_44 = arith.constant 0 : index
    %c0_45 = arith.constant 0 : index
    %c0_46 = arith.constant 0 : index
    %104 = vector.load %arg12[%c0_44, %c0_45, %c0_46] : memref<3x1x32xf32, #tpu.memory_space<vmem>>, vector<1x1x32xf32>
    %105 = vector.shape_cast %104 : vector<1x1x32xf32> to vector<1x32xf32>
    %106 = vector.broadcast %105 : vector<1x32xf32> to vector<8x32xf32>
    %107 = arith.addf %103, %106 : vector<8x32xf32>
    %108 = arith.addf %91, %107 : vector<8x32xf32>
    %c0_47 = arith.constant 0 : index
    %c0_48 = arith.constant 0 : index
    %c0_49 = arith.constant 0 : index
    %109 = vector.load %arg13[%c0_47, %c0_48, %c0_49] : memref<3x1x32xf32, #tpu.memory_space<vmem>>, vector<1x1x32xf32>
    %110 = vector.shape_cast %109 : vector<1x1x32xf32> to vector<1x32xf32>
    %c0_50 = arith.constant 0 : index
    %c0_51 = arith.constant 0 : index
    %c0_52 = arith.constant 0 : index
    %111 = vector.load %arg14[%c0_50, %c0_51, %c0_52] : memref<3x1x32xf32, #tpu.memory_space<vmem>>, vector<1x1x32xf32>
    %112 = vector.shape_cast %111 : vector<1x1x32xf32> to vector<1x32xf32>
    %cst_53 = arith.constant dense<0.000000e+00> : vector<8xf32>
    %113 = vector.multi_reduction <add>, %108, %cst_53 [1] : vector<8x32xf32> to vector<8xf32>
    %114 = vector.shape_cast %113 : vector<8xf32> to vector<8x1xf32>
    %cst_54 = arith.constant 3.200000e+01 : f32
    %115 = vector.broadcast %cst_54 : f32 to vector<8x1xf32>
    %116 = arith.divf %114, %115 : vector<8x1xf32>
    %117 = vector.broadcast %116 : vector<8x1xf32> to vector<8x32xf32>
    %118 = arith.subf %108, %117 : vector<8x32xf32>
    %119 = arith.mulf %118, %118 : vector<8x32xf32>
    %cst_55 = arith.constant dense<0.000000e+00> : vector<8xf32>
    %120 = vector.multi_reduction <add>, %119, %cst_55 [1] : vector<8x32xf32> to vector<8xf32>
    %121 = vector.shape_cast %120 : vector<8xf32> to vector<8x1xf32>
    %cst_56 = arith.constant 3.200000e+01 : f32
    %122 = vector.broadcast %cst_56 : f32 to vector<8x1xf32>
    %123 = arith.divf %121, %122 : vector<8x1xf32>
    %cst_57 = arith.constant 9.99999974E-6 : f32
    %124 = vector.broadcast %cst_57 : f32 to vector<8x1xf32>
    %125 = arith.addf %123, %124 : vector<8x1xf32>
    %126 = math.rsqrt %125 : vector<8x1xf32>
    %127 = vector.broadcast %126 : vector<8x1xf32> to vector<8x32xf32>
    %128 = arith.mulf %118, %127 : vector<8x32xf32>
    %129 = vector.broadcast %110 : vector<1x32xf32> to vector<8x32xf32>
    %130 = arith.mulf %128, %129 : vector<8x32xf32>
    %131 = vector.broadcast %112 : vector<1x32xf32> to vector<8x32xf32>
    %132 = arith.addf %130, %131 : vector<8x32xf32>
    %c1 = arith.constant 1 : index
    %c0_58 = arith.constant 0 : index
    %c0_59 = arith.constant 0 : index
    %133 = vector.load %arg4[%c1, %c0_58, %c0_59] : memref<3x32x96xf32, #tpu.memory_space<vmem>>, vector<1x32x96xf32>
    %134 = vector.shape_cast %133 : vector<1x32x96xf32> to vector<32x96xf32>
    %cst_60 = arith.constant dense<0.000000e+00> : vector<8x96xf32>
    %135 = tpu.matmul %132, %134, %cst_60 {dimension_numbers = #tpu.dot_dimension_numbers<[1], [0], [0], [1], [0, 0, 1, 1], [], []>} : vector<8x32xf32>, vector<32x96xf32>, vector<8x96xf32> -> vector<8x96xf32>
    %136 = vector.extract_strided_slice %135 {offsets = [0, 0], sizes = [8, 8], strides = [1, 1]} : vector<8x96xf32> to vector<8x8xf32>
    %137 = vector.extract_strided_slice %135 {offsets = [0, 8], sizes = [8, 8], strides = [1, 1]} : vector<8x96xf32> to vector<8x8xf32>
    %138 = vector.extract_strided_slice %135 {offsets = [0, 16], sizes = [8, 8], strides = [1, 1]} : vector<8x96xf32> to vector<8x8xf32>
    %139 = vector.extract_strided_slice %135 {offsets = [0, 24], sizes = [8, 8], strides = [1, 1]} : vector<8x96xf32> to vector<8x8xf32>
    %140 = vector.shape_cast %136 : vector<8x8xf32> to vector<1x8x8xf32>
    %141 = vector.shape_cast %137 : vector<8x8xf32> to vector<1x8x8xf32>
    %142 = vector.shape_cast %138 : vector<8x8xf32> to vector<1x8x8xf32>
    %143 = vector.shape_cast %139 : vector<8x8xf32> to vector<1x8x8xf32>
    %144 = tpu.concatenate %140, %141, %142, %143 in 0 : vector<1x8x8xf32>, vector<1x8x8xf32>, vector<1x8x8xf32>, vector<1x8x8xf32> -> vector<4x8x8xf32>
    %145 = vector.extract_strided_slice %135 {offsets = [0, 32], sizes = [8, 8], strides = [1, 1]} : vector<8x96xf32> to vector<8x8xf32>
    %146 = vector.extract_strided_slice %135 {offsets = [0, 40], sizes = [8, 8], strides = [1, 1]} : vector<8x96xf32> to vector<8x8xf32>
    %147 = vector.extract_strided_slice %135 {offsets = [0, 48], sizes = [8, 8], strides = [1, 1]} : vector<8x96xf32> to vector<8x8xf32>
    %148 = vector.extract_strided_slice %135 {offsets = [0, 56], sizes = [8, 8], strides = [1, 1]} : vector<8x96xf32> to vector<8x8xf32>
    %149 = vector.shape_cast %145 : vector<8x8xf32> to vector<1x8x8xf32>
    %150 = vector.shape_cast %146 : vector<8x8xf32> to vector<1x8x8xf32>
    %151 = vector.shape_cast %147 : vector<8x8xf32> to vector<1x8x8xf32>
    %152 = vector.shape_cast %148 : vector<8x8xf32> to vector<1x8x8xf32>
    %153 = tpu.concatenate %149, %150, %151, %152 in 0 : vector<1x8x8xf32>, vector<1x8x8xf32>, vector<1x8x8xf32>, vector<1x8x8xf32> -> vector<4x8x8xf32>
    %154 = vector.extract_strided_slice %135 {offsets = [0, 64], sizes = [8, 8], strides = [1, 1]} : vector<8x96xf32> to vector<8x8xf32>
    %155 = vector.extract_strided_slice %135 {offsets = [0, 72], sizes = [8, 8], strides = [1, 1]} : vector<8x96xf32> to vector<8x8xf32>
    %156 = vector.extract_strided_slice %135 {offsets = [0, 80], sizes = [8, 8], strides = [1, 1]} : vector<8x96xf32> to vector<8x8xf32>
    %157 = vector.extract_strided_slice %135 {offsets = [0, 88], sizes = [8, 8], strides = [1, 1]} : vector<8x96xf32> to vector<8x8xf32>
    %158 = vector.shape_cast %154 : vector<8x8xf32> to vector<1x8x8xf32>
    %159 = vector.shape_cast %155 : vector<8x8xf32> to vector<1x8x8xf32>
    %160 = vector.shape_cast %156 : vector<8x8xf32> to vector<1x8x8xf32>
    %161 = vector.shape_cast %157 : vector<8x8xf32> to vector<1x8x8xf32>
    %162 = tpu.concatenate %158, %159, %160, %161 in 0 : vector<1x8x8xf32>, vector<1x8x8xf32>, vector<1x8x8xf32>, vector<1x8x8xf32> -> vector<4x8x8xf32>
    "tpu.trace_start"() <{level = 10 : i32, message = "hld,hmd->hlm"}> : () -> ()
    %cst_61 = arith.constant dense<0.000000e+00> : vector<4x8x8xf32>
    %163 = tpu.matmul %144, %153, %cst_61 {dimension_numbers = #tpu.dot_dimension_numbers<[2], [2], [1], [1], [0, 0, 0, 1, 1, 1], [0], [0]>} : vector<4x8x8xf32>, vector<4x8x8xf32>, vector<4x8x8xf32> -> vector<4x8x8xf32>
    "tpu.trace_stop"() : () -> ()
    %164 = vector.broadcast %6 : vector<1x1x8xf32> to vector<4x8x8xf32>
    %165 = arith.addf %163, %164 : vector<4x8x8xf32>
    %cst_62 = arith.constant dense<0xFF800000> : vector<4x8xf32>
    %166 = vector.multi_reduction <maximumf>, %165, %cst_62 [2] : vector<4x8x8xf32> to vector<4x8xf32>
    %167 = vector.shape_cast %166 : vector<4x8xf32> to vector<4x8x1xf32>
    %168 = vector.broadcast %167 : vector<4x8x1xf32> to vector<4x8x8xf32>
    %169 = arith.subf %165, %168 : vector<4x8x8xf32>
    %170 = math.exp %169 : vector<4x8x8xf32>
    %cst_63 = arith.constant dense<0.000000e+00> : vector<4x8xf32>
    %171 = vector.multi_reduction <add>, %170, %cst_63 [2] : vector<4x8x8xf32> to vector<4x8xf32>
    %172 = vector.shape_cast %171 : vector<4x8xf32> to vector<4x8x1xf32>
    %173 = tpu.reciprocal %172 {approx = true} : vector<4x8x1xf32> -> vector<4x8x1xf32>
    %174 = vector.broadcast %173 : vector<4x8x1xf32> to vector<4x8x8xf32>
    %175 = arith.mulf %170, %174 : vector<4x8x8xf32>
    "tpu.trace_start"() <{level = 10 : i32, message = "hlm,hmd->hld"}> : () -> ()
    %cst_64 = arith.constant dense<0.000000e+00> : vector<4x8x8xf32>
    %176 = tpu.matmul %175, %162, %cst_64 {dimension_numbers = #tpu.dot_dimension_numbers<[2], [1], [1], [2], [0, 0, 0, 1, 1, 2], [0], [0]>} : vector<4x8x8xf32>, vector<4x8x8xf32>, vector<4x8x8xf32> -> vector<4x8x8xf32>
    "tpu.trace_stop"() : () -> ()
    %177 = vector.extract_strided_slice %176 {offsets = [0, 0, 0], sizes = [1, 8, 8], strides = [1, 1, 1]} : vector<4x8x8xf32> to vector<1x8x8xf32>
    %178 = vector.shape_cast %177 : vector<1x8x8xf32> to vector<8x8xf32>
    %179 = vector.extract_strided_slice %176 {offsets = [1, 0, 0], sizes = [1, 8, 8], strides = [1, 1, 1]} : vector<4x8x8xf32> to vector<1x8x8xf32>
    %180 = vector.shape_cast %179 : vector<1x8x8xf32> to vector<8x8xf32>
    %181 = vector.extract_strided_slice %176 {offsets = [2, 0, 0], sizes = [1, 8, 8], strides = [1, 1, 1]} : vector<4x8x8xf32> to vector<1x8x8xf32>
    %182 = vector.shape_cast %181 : vector<1x8x8xf32> to vector<8x8xf32>
    %183 = vector.extract_strided_slice %176 {offsets = [3, 0, 0], sizes = [1, 8, 8], strides = [1, 1, 1]} : vector<4x8x8xf32> to vector<1x8x8xf32>
    %184 = vector.shape_cast %183 : vector<1x8x8xf32> to vector<8x8xf32>
    %185 = tpu.concatenate %178, %180, %182, %184 in 1 : vector<8x8xf32>, vector<8x8xf32>, vector<8x8xf32>, vector<8x8xf32> -> vector<8x32xf32>
    %c1_65 = arith.constant 1 : index
    %c0_66 = arith.constant 0 : index
    %c0_67 = arith.constant 0 : index
    %186 = vector.load %arg5[%c1_65, %c0_66, %c0_67] : memref<3x32x32xf32, #tpu.memory_space<vmem>>, vector<1x32x32xf32>
    %187 = vector.shape_cast %186 : vector<1x32x32xf32> to vector<32x32xf32>
    %cst_68 = arith.constant dense<0.000000e+00> : vector<8x32xf32>
    %188 = tpu.matmul %185, %187, %cst_68 {dimension_numbers = #tpu.dot_dimension_numbers<[1], [0], [0], [1], [0, 0, 1, 1], [], []>} : vector<8x32xf32>, vector<32x32xf32>, vector<8x32xf32> -> vector<8x32xf32>
    %c1_69 = arith.constant 1 : index
    %c0_70 = arith.constant 0 : index
    %c0_71 = arith.constant 0 : index
    %189 = vector.load %arg6[%c1_69, %c0_70, %c0_71] : memref<3x1x32xf32, #tpu.memory_space<vmem>>, vector<1x1x32xf32>
    %190 = vector.shape_cast %189 : vector<1x1x32xf32> to vector<1x32xf32>
    %191 = vector.broadcast %190 : vector<1x32xf32> to vector<8x32xf32>
    %192 = arith.addf %188, %191 : vector<8x32xf32>
    %193 = arith.addf %132, %192 : vector<8x32xf32>
    %c1_72 = arith.constant 1 : index
    %c0_73 = arith.constant 0 : index
    %c0_74 = arith.constant 0 : index
    %194 = vector.load %arg7[%c1_72, %c0_73, %c0_74] : memref<3x1x32xf32, #tpu.memory_space<vmem>>, vector<1x1x32xf32>
    %195 = vector.shape_cast %194 : vector<1x1x32xf32> to vector<1x32xf32>
    %c1_75 = arith.constant 1 : index
    %c0_76 = arith.constant 0 : index
    %c0_77 = arith.constant 0 : index
    %196 = vector.load %arg8[%c1_75, %c0_76, %c0_77] : memref<3x1x32xf32, #tpu.memory_space<vmem>>, vector<1x1x32xf32>
    %197 = vector.shape_cast %196 : vector<1x1x32xf32> to vector<1x32xf32>
    %cst_78 = arith.constant dense<0.000000e+00> : vector<8xf32>
    %198 = vector.multi_reduction <add>, %193, %cst_78 [1] : vector<8x32xf32> to vector<8xf32>
    %199 = vector.shape_cast %198 : vector<8xf32> to vector<8x1xf32>
    %cst_79 = arith.constant 3.200000e+01 : f32
    %200 = vector.broadcast %cst_79 : f32 to vector<8x1xf32>
    %201 = arith.divf %199, %200 : vector<8x1xf32>
    %202 = vector.broadcast %201 : vector<8x1xf32> to vector<8x32xf32>
    %203 = arith.subf %193, %202 : vector<8x32xf32>
    %204 = arith.mulf %203, %203 : vector<8x32xf32>
    %cst_80 = arith.constant dense<0.000000e+00> : vector<8xf32>
    %205 = vector.multi_reduction <add>, %204, %cst_80 [1] : vector<8x32xf32> to vector<8xf32>
    %206 = vector.shape_cast %205 : vector<8xf32> to vector<8x1xf32>
    %cst_81 = arith.constant 3.200000e+01 : f32
    %207 = vector.broadcast %cst_81 : f32 to vector<8x1xf32>
    %208 = arith.divf %206, %207 : vector<8x1xf32>
    %cst_82 = arith.constant 9.99999974E-6 : f32
    %209 = vector.broadcast %cst_82 : f32 to vector<8x1xf32>
    %210 = arith.addf %208, %209 : vector<8x1xf32>
    %211 = math.rsqrt %210 : vector<8x1xf32>
    %212 = vector.broadcast %211 : vector<8x1xf32> to vector<8x32xf32>
    %213 = arith.mulf %203, %212 : vector<8x32xf32>
    %214 = vector.broadcast %195 : vector<1x32xf32> to vector<8x32xf32>
    %215 = arith.mulf %213, %214 : vector<8x32xf32>
    %216 = vector.broadcast %197 : vector<1x32xf32> to vector<8x32xf32>
    %217 = arith.addf %215, %216 : vector<8x32xf32>
    %c1_83 = arith.constant 1 : index
    %c0_84 = arith.constant 0 : index
    %c0_85 = arith.constant 0 : index
    %218 = vector.load %arg9[%c1_83, %c0_84, %c0_85] : memref<3x32x128xf32, #tpu.memory_space<vmem>>, vector<1x32x128xf32>
    %219 = vector.shape_cast %218 : vector<1x32x128xf32> to vector<32x128xf32>
    %cst_86 = arith.constant dense<0.000000e+00> : vector<8x128xf32>
    %220 = tpu.matmul %217, %219, %cst_86 {dimension_numbers = #tpu.dot_dimension_numbers<[1], [0], [0], [1], [0, 0, 1, 1], [], []>} : vector<8x32xf32>, vector<32x128xf32>, vector<8x128xf32> -> vector<8x128xf32>
    %c1_87 = arith.constant 1 : index
    %c0_88 = arith.constant 0 : index
    %c0_89 = arith.constant 0 : index
    %221 = vector.load %arg10[%c1_87, %c0_88, %c0_89] : memref<3x1x128xf32, #tpu.memory_space<vmem>>, vector<1x1x128xf32>
    %222 = vector.shape_cast %221 : vector<1x1x128xf32> to vector<1x128xf32>
    %223 = vector.broadcast %222 : vector<1x128xf32> to vector<8x128xf32>
    %224 = arith.addf %220, %223 : vector<8x128xf32>
    %cst_90 = arith.constant 0.000000e+00 : f32
    %225 = vector.broadcast %cst_90 : f32 to vector<8x128xf32>
    %226 = arith.maximumf %224, %225 : vector<8x128xf32>
    %c1_91 = arith.constant 1 : index
    %c0_92 = arith.constant 0 : index
    %c0_93 = arith.constant 0 : index
    %227 = vector.load %arg11[%c1_91, %c0_92, %c0_93] : memref<3x128x32xf32, #tpu.memory_space<vmem>>, vector<1x128x32xf32>
    %228 = vector.shape_cast %227 : vector<1x128x32xf32> to vector<128x32xf32>
    %cst_94 = arith.constant dense<0.000000e+00> : vector<8x32xf32>
    %229 = tpu.matmul %226, %228, %cst_94 {dimension_numbers = #tpu.dot_dimension_numbers<[1], [0], [0], [1], [0, 0, 1, 1], [], []>} : vector<8x128xf32>, vector<128x32xf32>, vector<8x32xf32> -> vector<8x32xf32>
    %c1_95 = arith.constant 1 : index
    %c0_96 = arith.constant 0 : index
    %c0_97 = arith.constant 0 : index
    %230 = vector.load %arg12[%c1_95, %c0_96, %c0_97] : memref<3x1x32xf32, #tpu.memory_space<vmem>>, vector<1x1x32xf32>
    %231 = vector.shape_cast %230 : vector<1x1x32xf32> to vector<1x32xf32>
    %232 = vector.broadcast %231 : vector<1x32xf32> to vector<8x32xf32>
    %233 = arith.addf %229, %232 : vector<8x32xf32>
    %234 = arith.addf %217, %233 : vector<8x32xf32>
    %c1_98 = arith.constant 1 : index
    %c0_99 = arith.constant 0 : index
    %c0_100 = arith.constant 0 : index
    %235 = vector.load %arg13[%c1_98, %c0_99, %c0_100] : memref<3x1x32xf32, #tpu.memory_space<vmem>>, vector<1x1x32xf32>
    %236 = vector.shape_cast %235 : vector<1x1x32xf32> to vector<1x32xf32>
    %c1_101 = arith.constant 1 : index
    %c0_102 = arith.constant 0 : index
    %c0_103 = arith.constant 0 : index
    %237 = vector.load %arg14[%c1_101, %c0_102, %c0_103] : memref<3x1x32xf32, #tpu.memory_space<vmem>>, vector<1x1x32xf32>
    %238 = vector.shape_cast %237 : vector<1x1x32xf32> to vector<1x32xf32>
    %cst_104 = arith.constant dense<0.000000e+00> : vector<8xf32>
    %239 = vector.multi_reduction <add>, %234, %cst_104 [1] : vector<8x32xf32> to vector<8xf32>
    %240 = vector.shape_cast %239 : vector<8xf32> to vector<8x1xf32>
    %cst_105 = arith.constant 3.200000e+01 : f32
    %241 = vector.broadcast %cst_105 : f32 to vector<8x1xf32>
    %242 = arith.divf %240, %241 : vector<8x1xf32>
    %243 = vector.broadcast %242 : vector<8x1xf32> to vector<8x32xf32>
    %244 = arith.subf %234, %243 : vector<8x32xf32>
    %245 = arith.mulf %244, %244 : vector<8x32xf32>
    %cst_106 = arith.constant dense<0.000000e+00> : vector<8xf32>
    %246 = vector.multi_reduction <add>, %245, %cst_106 [1] : vector<8x32xf32> to vector<8xf32>
    %247 = vector.shape_cast %246 : vector<8xf32> to vector<8x1xf32>
    %cst_107 = arith.constant 3.200000e+01 : f32
    %248 = vector.broadcast %cst_107 : f32 to vector<8x1xf32>
    %249 = arith.divf %247, %248 : vector<8x1xf32>
    %cst_108 = arith.constant 9.99999974E-6 : f32
    %250 = vector.broadcast %cst_108 : f32 to vector<8x1xf32>
    %251 = arith.addf %249, %250 : vector<8x1xf32>
    %252 = math.rsqrt %251 : vector<8x1xf32>
    %253 = vector.broadcast %252 : vector<8x1xf32> to vector<8x32xf32>
    %254 = arith.mulf %244, %253 : vector<8x32xf32>
    %255 = vector.broadcast %236 : vector<1x32xf32> to vector<8x32xf32>
    %256 = arith.mulf %254, %255 : vector<8x32xf32>
    %257 = vector.broadcast %238 : vector<1x32xf32> to vector<8x32xf32>
    %258 = arith.addf %256, %257 : vector<8x32xf32>
    %c2 = arith.constant 2 : index
    %c0_109 = arith.constant 0 : index
    %c0_110 = arith.constant 0 : index
    %259 = vector.load %arg4[%c2, %c0_109, %c0_110] : memref<3x32x96xf32, #tpu.memory_space<vmem>>, vector<1x32x96xf32>
    %260 = vector.shape_cast %259 : vector<1x32x96xf32> to vector<32x96xf32>
    %cst_111 = arith.constant dense<0.000000e+00> : vector<8x96xf32>
    %261 = tpu.matmul %258, %260, %cst_111 {dimension_numbers = #tpu.dot_dimension_numbers<[1], [0], [0], [1], [0, 0, 1, 1], [], []>} : vector<8x32xf32>, vector<32x96xf32>, vector<8x96xf32> -> vector<8x96xf32>
    %262 = vector.extract_strided_slice %261 {offsets = [0, 0], sizes = [8, 8], strides = [1, 1]} : vector<8x96xf32> to vector<8x8xf32>
    %263 = vector.extract_strided_slice %261 {offsets = [0, 8], sizes = [8, 8], strides = [1, 1]} : vector<8x96xf32> to vector<8x8xf32>
    %264 = vector.extract_strided_slice %261 {offsets = [0, 16], sizes = [8, 8], strides = [1, 1]} : vector<8x96xf32> to vector<8x8xf32>
    %265 = vector.extract_strided_slice %261 {offsets = [0, 24], sizes = [8, 8], strides = [1, 1]} : vector<8x96xf32> to vector<8x8xf32>
    %266 = vector.shape_cast %262 : vector<8x8xf32> to vector<1x8x8xf32>
    %267 = vector.shape_cast %263 : vector<8x8xf32> to vector<1x8x8xf32>
    %268 = vector.shape_cast %264 : vector<8x8xf32> to vector<1x8x8xf32>
    %269 = vector.shape_cast %265 : vector<8x8xf32> to vector<1x8x8xf32>
    %270 = tpu.concatenate %266, %267, %268, %269 in 0 : vector<1x8x8xf32>, vector<1x8x8xf32>, vector<1x8x8xf32>, vector<1x8x8xf32> -> vector<4x8x8xf32>
    %271 = vector.extract_strided_slice %261 {offsets = [0, 32], sizes = [8, 8], strides = [1, 1]} : vector<8x96xf32> to vector<8x8xf32>
    %272 = vector.extract_strided_slice %261 {offsets = [0, 40], sizes = [8, 8], strides = [1, 1]} : vector<8x96xf32> to vector<8x8xf32>
    %273 = vector.extract_strided_slice %261 {offsets = [0, 48], sizes = [8, 8], strides = [1, 1]} : vector<8x96xf32> to vector<8x8xf32>
    %274 = vector.extract_strided_slice %261 {offsets = [0, 56], sizes = [8, 8], strides = [1, 1]} : vector<8x96xf32> to vector<8x8xf32>
    %275 = vector.shape_cast %271 : vector<8x8xf32> to vector<1x8x8xf32>
    %276 = vector.shape_cast %272 : vector<8x8xf32> to vector<1x8x8xf32>
    %277 = vector.shape_cast %273 : vector<8x8xf32> to vector<1x8x8xf32>
    %278 = vector.shape_cast %274 : vector<8x8xf32> to vector<1x8x8xf32>
    %279 = tpu.concatenate %275, %276, %277, %278 in 0 : vector<1x8x8xf32>, vector<1x8x8xf32>, vector<1x8x8xf32>, vector<1x8x8xf32> -> vector<4x8x8xf32>
    %280 = vector.extract_strided_slice %261 {offsets = [0, 64], sizes = [8, 8], strides = [1, 1]} : vector<8x96xf32> to vector<8x8xf32>
    %281 = vector.extract_strided_slice %261 {offsets = [0, 72], sizes = [8, 8], strides = [1, 1]} : vector<8x96xf32> to vector<8x8xf32>
    %282 = vector.extract_strided_slice %261 {offsets = [0, 80], sizes = [8, 8], strides = [1, 1]} : vector<8x96xf32> to vector<8x8xf32>
    %283 = vector.extract_strided_slice %261 {offsets = [0, 88], sizes = [8, 8], strides = [1, 1]} : vector<8x96xf32> to vector<8x8xf32>
    %284 = vector.shape_cast %280 : vector<8x8xf32> to vector<1x8x8xf32>
    %285 = vector.shape_cast %281 : vector<8x8xf32> to vector<1x8x8xf32>
    %286 = vector.shape_cast %282 : vector<8x8xf32> to vector<1x8x8xf32>
    %287 = vector.shape_cast %283 : vector<8x8xf32> to vector<1x8x8xf32>
    %288 = tpu.concatenate %284, %285, %286, %287 in 0 : vector<1x8x8xf32>, vector<1x8x8xf32>, vector<1x8x8xf32>, vector<1x8x8xf32> -> vector<4x8x8xf32>
    "tpu.trace_start"() <{level = 10 : i32, message = "hld,hmd->hlm"}> : () -> ()
    %cst_112 = arith.constant dense<0.000000e+00> : vector<4x8x8xf32>
    %289 = tpu.matmul %270, %279, %cst_112 {dimension_numbers = #tpu.dot_dimension_numbers<[2], [2], [1], [1], [0, 0, 0, 1, 1, 1], [0], [0]>} : vector<4x8x8xf32>, vector<4x8x8xf32>, vector<4x8x8xf32> -> vector<4x8x8xf32>
    "tpu.trace_stop"() : () -> ()
    %290 = vector.broadcast %6 : vector<1x1x8xf32> to vector<4x8x8xf32>
    %291 = arith.addf %289, %290 : vector<4x8x8xf32>
    %cst_113 = arith.constant dense<0xFF800000> : vector<4x8xf32>
    %292 = vector.multi_reduction <maximumf>, %291, %cst_113 [2] : vector<4x8x8xf32> to vector<4x8xf32>
    %293 = vector.shape_cast %292 : vector<4x8xf32> to vector<4x8x1xf32>
    %294 = vector.broadcast %293 : vector<4x8x1xf32> to vector<4x8x8xf32>
    %295 = arith.subf %291, %294 : vector<4x8x8xf32>
    %296 = math.exp %295 : vector<4x8x8xf32>
    %cst_114 = arith.constant dense<0.000000e+00> : vector<4x8xf32>
    %297 = vector.multi_reduction <add>, %296, %cst_114 [2] : vector<4x8x8xf32> to vector<4x8xf32>
    %298 = vector.shape_cast %297 : vector<4x8xf32> to vector<4x8x1xf32>
    %299 = tpu.reciprocal %298 {approx = true} : vector<4x8x1xf32> -> vector<4x8x1xf32>
    %300 = vector.broadcast %299 : vector<4x8x1xf32> to vector<4x8x8xf32>
    %301 = arith.mulf %296, %300 : vector<4x8x8xf32>
    "tpu.trace_start"() <{level = 10 : i32, message = "hlm,hmd->hld"}> : () -> ()
    %cst_115 = arith.constant dense<0.000000e+00> : vector<4x8x8xf32>
    %302 = tpu.matmul %301, %288, %cst_115 {dimension_numbers = #tpu.dot_dimension_numbers<[2], [1], [1], [2], [0, 0, 0, 1, 1, 2], [0], [0]>} : vector<4x8x8xf32>, vector<4x8x8xf32>, vector<4x8x8xf32> -> vector<4x8x8xf32>
    "tpu.trace_stop"() : () -> ()
    %303 = vector.extract_strided_slice %302 {offsets = [0, 0, 0], sizes = [1, 8, 8], strides = [1, 1, 1]} : vector<4x8x8xf32> to vector<1x8x8xf32>
    %304 = vector.shape_cast %303 : vector<1x8x8xf32> to vector<8x8xf32>
    %305 = vector.extract_strided_slice %302 {offsets = [1, 0, 0], sizes = [1, 8, 8], strides = [1, 1, 1]} : vector<4x8x8xf32> to vector<1x8x8xf32>
    %306 = vector.shape_cast %305 : vector<1x8x8xf32> to vector<8x8xf32>
    %307 = vector.extract_strided_slice %302 {offsets = [2, 0, 0], sizes = [1, 8, 8], strides = [1, 1, 1]} : vector<4x8x8xf32> to vector<1x8x8xf32>
    %308 = vector.shape_cast %307 : vector<1x8x8xf32> to vector<8x8xf32>
    %309 = vector.extract_strided_slice %302 {offsets = [3, 0, 0], sizes = [1, 8, 8], strides = [1, 1, 1]} : vector<4x8x8xf32> to vector<1x8x8xf32>
    %310 = vector.shape_cast %309 : vector<1x8x8xf32> to vector<8x8xf32>
    %311 = tpu.concatenate %304, %306, %308, %310 in 1 : vector<8x8xf32>, vector<8x8xf32>, vector<8x8xf32>, vector<8x8xf32> -> vector<8x32xf32>
    %c2_116 = arith.constant 2 : index
    %c0_117 = arith.constant 0 : index
    %c0_118 = arith.constant 0 : index
    %312 = vector.load %arg5[%c2_116, %c0_117, %c0_118] : memref<3x32x32xf32, #tpu.memory_space<vmem>>, vector<1x32x32xf32>
    %313 = vector.shape_cast %312 : vector<1x32x32xf32> to vector<32x32xf32>
    %cst_119 = arith.constant dense<0.000000e+00> : vector<8x32xf32>
    %314 = tpu.matmul %311, %313, %cst_119 {dimension_numbers = #tpu.dot_dimension_numbers<[1], [0], [0], [1], [0, 0, 1, 1], [], []>} : vector<8x32xf32>, vector<32x32xf32>, vector<8x32xf32> -> vector<8x32xf32>
    %c2_120 = arith.constant 2 : index
    %c0_121 = arith.constant 0 : index
    %c0_122 = arith.constant 0 : index
    %315 = vector.load %arg6[%c2_120, %c0_121, %c0_122] : memref<3x1x32xf32, #tpu.memory_space<vmem>>, vector<1x1x32xf32>
    %316 = vector.shape_cast %315 : vector<1x1x32xf32> to vector<1x32xf32>
    %317 = vector.broadcast %316 : vector<1x32xf32> to vector<8x32xf32>
    %318 = arith.addf %314, %317 : vector<8x32xf32>
    %319 = arith.addf %258, %318 : vector<8x32xf32>
    %c2_123 = arith.constant 2 : index
    %c0_124 = arith.constant 0 : index
    %c0_125 = arith.constant 0 : index
    %320 = vector.load %arg7[%c2_123, %c0_124, %c0_125] : memref<3x1x32xf32, #tpu.memory_space<vmem>>, vector<1x1x32xf32>
    %321 = vector.shape_cast %320 : vector<1x1x32xf32> to vector<1x32xf32>
    %c2_126 = arith.constant 2 : index
    %c0_127 = arith.constant 0 : index
    %c0_128 = arith.constant 0 : index
    %322 = vector.load %arg8[%c2_126, %c0_127, %c0_128] : memref<3x1x32xf32, #tpu.memory_space<vmem>>, vector<1x1x32xf32>
    %323 = vector.shape_cast %322 : vector<1x1x32xf32> to vector<1x32xf32>
    %cst_129 = arith.constant dense<0.000000e+00> : vector<8xf32>
    %324 = vector.multi_reduction <add>, %319, %cst_129 [1] : vector<8x32xf32> to vector<8xf32>
    %325 = vector.shape_cast %324 : vector<8xf32> to vector<8x1xf32>
    %cst_130 = arith.constant 3.200000e+01 : f32
    %326 = vector.broadcast %cst_130 : f32 to vector<8x1xf32>
    %327 = arith.divf %325, %326 : vector<8x1xf32>
    %328 = vector.broadcast %327 : vector<8x1xf32> to vector<8x32xf32>
    %329 = arith.subf %319, %328 : vector<8x32xf32>
    %330 = arith.mulf %329, %329 : vector<8x32xf32>
    %cst_131 = arith.constant dense<0.000000e+00> : vector<8xf32>
    %331 = vector.multi_reduction <add>, %330, %cst_131 [1] : vector<8x32xf32> to vector<8xf32>
    %332 = vector.shape_cast %331 : vector<8xf32> to vector<8x1xf32>
    %cst_132 = arith.constant 3.200000e+01 : f32
    %333 = vector.broadcast %cst_132 : f32 to vector<8x1xf32>
    %334 = arith.divf %332, %333 : vector<8x1xf32>
    %cst_133 = arith.constant 9.99999974E-6 : f32
    %335 = vector.broadcast %cst_133 : f32 to vector<8x1xf32>
    %336 = arith.addf %334, %335 : vector<8x1xf32>
    %337 = math.rsqrt %336 : vector<8x1xf32>
    %338 = vector.broadcast %337 : vector<8x1xf32> to vector<8x32xf32>
    %339 = arith.mulf %329, %338 : vector<8x32xf32>
    %340 = vector.broadcast %321 : vector<1x32xf32> to vector<8x32xf32>
    %341 = arith.mulf %339, %340 : vector<8x32xf32>
    %342 = vector.broadcast %323 : vector<1x32xf32> to vector<8x32xf32>
    %343 = arith.addf %341, %342 : vector<8x32xf32>
    %c2_134 = arith.constant 2 : index
    %c0_135 = arith.constant 0 : index
    %c0_136 = arith.constant 0 : index
    %344 = vector.load %arg9[%c2_134, %c0_135, %c0_136] : memref<3x32x128xf32, #tpu.memory_space<vmem>>, vector<1x32x128xf32>
    %345 = vector.shape_cast %344 : vector<1x32x128xf32> to vector<32x128xf32>
    %cst_137 = arith.constant dense<0.000000e+00> : vector<8x128xf32>
    %346 = tpu.matmul %343, %345, %cst_137 {dimension_numbers = #tpu.dot_dimension_numbers<[1], [0], [0], [1], [0, 0, 1, 1], [], []>} : vector<8x32xf32>, vector<32x128xf32>, vector<8x128xf32> -> vector<8x128xf32>
    %c2_138 = arith.constant 2 : index
    %c0_139 = arith.constant 0 : index
    %c0_140 = arith.constant 0 : index
    %347 = vector.load %arg10[%c2_138, %c0_139, %c0_140] : memref<3x1x128xf32, #tpu.memory_space<vmem>>, vector<1x1x128xf32>
    %348 = vector.shape_cast %347 : vector<1x1x128xf32> to vector<1x128xf32>
    %349 = vector.broadcast %348 : vector<1x128xf32> to vector<8x128xf32>
    %350 = arith.addf %346, %349 : vector<8x128xf32>
    %cst_141 = arith.constant 0.000000e+00 : f32
    %351 = vector.broadcast %cst_141 : f32 to vector<8x128xf32>
    %352 = arith.maximumf %350, %351 : vector<8x128xf32>
    %c2_142 = arith.constant 2 : index
    %c0_143 = arith.constant 0 : index
    %c0_144 = arith.constant 0 : index
    %353 = vector.load %arg11[%c2_142, %c0_143, %c0_144] : memref<3x128x32xf32, #tpu.memory_space<vmem>>, vector<1x128x32xf32>
    %354 = vector.shape_cast %353 : vector<1x128x32xf32> to vector<128x32xf32>
    %cst_145 = arith.constant dense<0.000000e+00> : vector<8x32xf32>
    %355 = tpu.matmul %352, %354, %cst_145 {dimension_numbers = #tpu.dot_dimension_numbers<[1], [0], [0], [1], [0, 0, 1, 1], [], []>} : vector<8x128xf32>, vector<128x32xf32>, vector<8x32xf32> -> vector<8x32xf32>
    %c2_146 = arith.constant 2 : index
    %c0_147 = arith.constant 0 : index
    %c0_148 = arith.constant 0 : index
    %356 = vector.load %arg12[%c2_146, %c0_147, %c0_148] : memref<3x1x32xf32, #tpu.memory_space<vmem>>, vector<1x1x32xf32>
    %357 = vector.shape_cast %356 : vector<1x1x32xf32> to vector<1x32xf32>
    %358 = vector.broadcast %357 : vector<1x32xf32> to vector<8x32xf32>
    %359 = arith.addf %355, %358 : vector<8x32xf32>
    %360 = arith.addf %343, %359 : vector<8x32xf32>
    %c2_149 = arith.constant 2 : index
    %c0_150 = arith.constant 0 : index
    %c0_151 = arith.constant 0 : index
    %361 = vector.load %arg13[%c2_149, %c0_150, %c0_151] : memref<3x1x32xf32, #tpu.memory_space<vmem>>, vector<1x1x32xf32>
    %362 = vector.shape_cast %361 : vector<1x1x32xf32> to vector<1x32xf32>
    %c2_152 = arith.constant 2 : index
    %c0_153 = arith.constant 0 : index
    %c0_154 = arith.constant 0 : index
    %363 = vector.load %arg14[%c2_152, %c0_153, %c0_154] : memref<3x1x32xf32, #tpu.memory_space<vmem>>, vector<1x1x32xf32>
    %364 = vector.shape_cast %363 : vector<1x1x32xf32> to vector<1x32xf32>
    %cst_155 = arith.constant dense<0.000000e+00> : vector<8xf32>
    %365 = vector.multi_reduction <add>, %360, %cst_155 [1] : vector<8x32xf32> to vector<8xf32>
    %366 = vector.shape_cast %365 : vector<8xf32> to vector<8x1xf32>
    %cst_156 = arith.constant 3.200000e+01 : f32
    %367 = vector.broadcast %cst_156 : f32 to vector<8x1xf32>
    %368 = arith.divf %366, %367 : vector<8x1xf32>
    %369 = vector.broadcast %368 : vector<8x1xf32> to vector<8x32xf32>
    %370 = arith.subf %360, %369 : vector<8x32xf32>
    %371 = arith.mulf %370, %370 : vector<8x32xf32>
    %cst_157 = arith.constant dense<0.000000e+00> : vector<8xf32>
    %372 = vector.multi_reduction <add>, %371, %cst_157 [1] : vector<8x32xf32> to vector<8xf32>
    %373 = vector.shape_cast %372 : vector<8xf32> to vector<8x1xf32>
    %cst_158 = arith.constant 3.200000e+01 : f32
    %374 = vector.broadcast %cst_158 : f32 to vector<8x1xf32>
    %375 = arith.divf %373, %374 : vector<8x1xf32>
    %cst_159 = arith.constant 9.99999974E-6 : f32
    %376 = vector.broadcast %cst_159 : f32 to vector<8x1xf32>
    %377 = arith.addf %375, %376 : vector<8x1xf32>
    %378 = math.rsqrt %377 : vector<8x1xf32>
    %379 = vector.broadcast %378 : vector<8x1xf32> to vector<8x32xf32>
    %380 = arith.mulf %370, %379 : vector<8x32xf32>
    %381 = vector.broadcast %362 : vector<1x32xf32> to vector<8x32xf32>
    %382 = arith.mulf %380, %381 : vector<8x32xf32>
    %383 = vector.broadcast %364 : vector<1x32xf32> to vector<8x32xf32>
    %384 = arith.addf %382, %383 : vector<8x32xf32>
    %c0_160 = arith.constant 0 : index
    %c0_161 = arith.constant 0 : index
    %c0_162 = arith.constant 0 : index
    %385 = vector.load %arg3[%c0_160, %c0_161, %c0_162] : memref<1x8x1xf32, #tpu.memory_space<vmem>>, vector<1x8x1xf32>
    %386 = vector.shape_cast %385 : vector<1x8x1xf32> to vector<8x1xf32>
    %cst_163 = arith.constant 0.000000e+00 : f32
    %387 = vector.broadcast %cst_163 : f32 to vector<8x1xf32>
    %388 = arith.cmpf ogt, %386, %387 : vector<8x1xf32>
    %cst_164 = arith.constant -1.000000e+30 : f32
    %389 = vector.shape_cast %388 : vector<8x1xi1> to vector<8x1xi1>
    %390 = vector.broadcast %389 : vector<8x1xi1> to vector<8x32xi1>
    %391 = vector.broadcast %cst_164 : f32 to vector<8x32xf32>
    %392 = arith.select %390, %384, %391 : vector<8x32xi1>, vector<8x32xf32>
    %cst_165 = arith.constant dense<0xFF800000> : vector<32xf32>
    %393 = vector.multi_reduction <maximumf>, %392, %cst_165 [0] : vector<8x32xf32> to vector<32xf32>
    %394 = vector.shape_cast %393 : vector<32xf32> to vector<1x32xf32>
    %c0_166 = arith.constant 0 : index
    %c0_167 = arith.constant 0 : index
    %395 = vector.load %arg15[%c0_166, %c0_167] : memref<32x2xf32, #tpu.memory_space<vmem>>, vector<32x2xf32>
    %cst_168 = arith.constant dense<0.000000e+00> : vector<1x2xf32>
    %396 = tpu.matmul %394, %395, %cst_168 {dimension_numbers = #tpu.dot_dimension_numbers<[1], [0], [0], [1], [0, 0, 1, 1], [], []>} : vector<1x32xf32>, vector<32x2xf32>, vector<1x2xf32> -> vector<1x2xf32>
    %c0_169 = arith.constant 0 : index
    %c0_170 = arith.constant 0 : index
    %397 = vector.load %arg16[%c0_169, %c0_170] : memref<1x2xf32, #tpu.memory_space<vmem>>, vector<1x2xf32>
    %398 = arith.addf %396, %397 : vector<1x2xf32>
    %c0_171 = arith.constant 0 : index
    %c0_172 = arith.constant 0 : index
    %c0_173 = arith.constant 0 : index
    %399 = vector.load %arg17[%c0_171, %c0_172, %c0_173] : memref<1x1x2xf32, #tpu.memory_space<vmem>>, vector<1x1x2xf32>
    %400 = vector.shape_cast %399 : vector<1x1x2xf32> to vector<1x2xf32>
    %401 = vector.shape_cast %398 : vector<1x2xf32> to vector<1x1x2xf32>
    tpu.vector_store %arg17[%c0_171, %c0_172, %c0_173], %401 {strides = array<i32>} : memref<1x1x2xf32, #tpu.memory_space<vmem>>, vector<1x1x2xf32>,
    return
  }
  func.func @transform_0(%arg0: i32) -> (i32, i32, i32) {
    %c0_i32 = arith.constant 0 : i32
    %c0_i32_0 = arith.constant 0 : i32
    %c0_i32_1 = arith.constant 0 : i32
    return %arg0, %c0_i32, %c0_i32_0 : i32, i32, i32
  }
  func.func @transform_1(%arg0: i32) -> (i32, i32, i32) {
    %c0_i32 = arith.constant 0 : i32
    %c0_i32_0 = arith.constant 0 : i32
    %c0_i32_1 = arith.constant 0 : i32
    return %arg0, %c0_i32, %c0_i32_0 : i32, i32, i32
  }
  func.func @transform_2(%arg0: i32) -> (i32, i32, i32) {
    %c0_i32 = arith.constant 0 : i32
    %c0_i32_0 = arith.constant 0 : i32
    %c0_i32_1 = arith.constant 0 : i32
    return %arg0, %c0_i32, %c0_i32_0 : i32, i32, i32
  }
  func.func @transform_3(%arg0: i32) -> (i32, i32, i32) {
    %c0_i32 = arith.constant 0 : i32
    %c0_i32_0 = arith.constant 0 : i32
    %c0_i32_1 = arith.constant 0 : i32
    %c0_i32_2 = arith.constant 0 : i32
    return %c0_i32, %c0_i32_0, %c0_i32_1 : i32, i32, i32
  }
  func.func @transform_4(%arg0: i32) -> (i32, i32, i32) {
    %c0_i32 = arith.constant 0 : i32
    %c0_i32_0 = arith.constant 0 : i32
    %c0_i32_1 = arith.constant 0 : i32
    %c0_i32_2 = arith.constant 0 : i32
    return %c0_i32, %c0_i32_0, %c0_i32_1 : i32, i32, i32
  }
  func.func @transform_5(%arg0: i32) -> (i32, i32, i32) {
    %c0_i32 = arith.constant 0 : i32
    %c0_i32_0 = arith.constant 0 : i32
    %c0_i32_1 = arith.constant 0 : i32
    %c0_i32_2 = arith.constant 0 : i32
    return %c0_i32, %c0_i32_0, %c0_i32_1 : i32, i32, i32
  }
  func.func @transform_6(%arg0: i32) -> (i32, i32, i32) {
    %c0_i32 = arith.constant 0 : i32
    %c0_i32_0 = arith.constant 0 : i32
    %c0_i32_1 = arith.constant 0 : i32
    %c0_i32_2 = arith.constant 0 : i32
    return %c0_i32, %c0_i32_0, %c0_i32_1 : i32, i32, i32
  }
  func.func @transform_7(%arg0: i32) -> (i32, i32, i32) {
    %c0_i32 = arith.constant 0 : i32
    %c0_i32_0 = arith.constant 0 : i32
    %c0_i32_1 = arith.constant 0 : i32
    %c0_i32_2 = arith.constant 0 : i32
    return %c0_i32, %c0_i32_0, %c0_i32_1 : i32, i32, i32
  }
  func.func @transform_8(%arg0: i32) -> (i32, i32, i32) {
    %c0_i32 = arith.constant 0 : i32
    %c0_i32_0 = arith.constant 0 : i32
    %c0_i32_1 = arith.constant 0 : i32
    %c0_i32_2 = arith.constant 0 : i32
    return %c0_i32, %c0_i32_0, %c0_i32_1 : i32, i32, i32
  }
  func.func @transform_9(%arg0: i32) -> (i32, i32, i32) {
    %c0_i32 = arith.constant 0 : i32
    %c0_i32_0 = arith.constant 0 : i32
    %c0_i32_1 = arith.constant 0 : i32
    %c0_i32_2 = arith.constant 0 : i32
    return %c0_i32, %c0_i32_0, %c0_i32_1 : i32, i32, i32
  }
  func.func @transform_10(%arg0: i32) -> (i32, i32, i32) {
    %c0_i32 = arith.constant 0 : i32
    %c0_i32_0 = arith.constant 0 : i32
    %c0_i32_1 = arith.constant 0 : i32
    %c0_i32_2 = arith.constant 0 : i32
    return %c0_i32, %c0_i32_0, %c0_i32_1 : i32, i32, i32
  }
  func.func @transform_11(%arg0: i32) -> (i32, i32, i32) {
    %c0_i32 = arith.constant 0 : i32
    %c0_i32_0 = arith.constant 0 : i32
    %c0_i32_1 = arith.constant 0 : i32
    %c0_i32_2 = arith.constant 0 : i32
    return %c0_i32, %c0_i32_0, %c0_i32_1 : i32, i32, i32
  }
  func.func @transform_12(%arg0: i32) -> (i32, i32, i32) {
    %c0_i32 = arith.constant 0 : i32
    %c0_i32_0 = arith.constant 0 : i32
    %c0_i32_1 = arith.constant 0 : i32
    %c0_i32_2 = arith.constant 0 : i32
    return %c0_i32, %c0_i32_0, %c0_i32_1 : i32, i32, i32
  }
  func.func @transform_13(%arg0: i32) -> (i32, i32, i32) {
    %c0_i32 = arith.constant 0 : i32
    %c0_i32_0 = arith.constant 0 : i32
    %c0_i32_1 = arith.constant 0 : i32
    %c0_i32_2 = arith.constant 0 : i32
    return %c0_i32, %c0_i32_0, %c0_i32_1 : i32, i32, i32
  }
  func.func @transform_14(%arg0: i32) -> (i32, i32) {
    %c0_i32 = arith.constant 0 : i32
    %c0_i32_0 = arith.constant 0 : i32
    %c0_i32_1 = arith.constant 0 : i32
    return %c0_i32, %c0_i32_0 : i32, i32
  }
  func.func @transform_15(%arg0: i32) -> (i32, i32) {
    %c0_i32 = arith.constant 0 : i32
    %c0_i32_0 = arith.constant 0 : i32
    %c0_i32_1 = arith.constant 0 : i32
    return %c0_i32, %c0_i32_0 : i32, i32
  }
  func.func @transform_16(%arg0: i32) -> (i32, i32, i32) {
    %c0_i32 = arith.constant 0 : i32
    %c0_i32_0 = arith.constant 0 : i32
    %c0_i32_1 = arith.constant 0 : i32
    return %arg0, %c0_i32, %c0_i32_0 : i32, i32, i32
  }
}

</mosaic_0001>

<llo_original>
// kernel: tpu_custom_call.1
$region0: #{tpu_custom_call.1}
  #allocation0 [shape = 'u32[]', space=smem, size = 0x4, offset = 0x4, fixed_abs, tag = 'smem constant byte address 0x4 - core index']
  #allocation1 [shape = 'u32[144,128]{1,0:T(1,128)}', space=vmem, size = 0x12000, scoped, tag = 'internal scratch']
  %s0 = inlined_call_operand.vmem [shape: f32[2,8,32], index: 0, kind: input, shape index: {}]
  %s1 = inlined_call_operand.vmem [shape: f32[2,1,8], index: 1, kind: input, shape index: {}]
  %s2 = inlined_call_operand.vmem [shape: f32[2,8,1], index: 2, kind: input, shape index: {}]
  %s3 = inlined_call_operand.vmem [shape: f32[3,32,96], index: 3, kind: input, shape index: {}]
  %s4 = inlined_call_operand.vmem [shape: f32[3,32,32], index: 4, kind: input, shape index: {}]
  %s5 = inlined_call_operand.vmem [shape: f32[3,1,32], index: 5, kind: input, shape index: {}]
  %s6 = inlined_call_operand.vmem [shape: f32[3,1,32], index: 6, kind: input, shape index: {}]
  %s7 = inlined_call_operand.vmem [shape: f32[3,1,32], index: 7, kind: input, shape index: {}]
  %s8 = inlined_call_operand.vmem [shape: f32[3,32,128], index: 8, kind: input, shape index: {}]
  %s9 = inlined_call_operand.vmem [shape: f32[3,1,128], index: 9, kind: input, shape index: {}]
  %s10 = inlined_call_operand.vmem [shape: f32[3,128,32], index: 10, kind: input, shape index: {}]
  %s11 = inlined_call_operand.vmem [shape: f32[3,1,32], index: 11, kind: input, shape index: {}]
  %s12 = inlined_call_operand.vmem [shape: f32[3,1,32], index: 12, kind: input, shape index: {}]
  %s13 = inlined_call_operand.vmem [shape: f32[3,1,32], index: 13, kind: input, shape index: {}]
  %s14 = inlined_call_operand.vmem [shape: f32[32,2], index: 14, kind: input, shape index: {}]
  %s15 = inlined_call_operand.vmem [shape: f32[1,2], index: 15, kind: input, shape index: {}]
  %s16 = inlined_call_operand.hbm [shape: f32[2,1,2], index: 16, kind: output, shape index: {}]
  %s17 = sld [smem:[#allocation0]]
  $region97: #{tpu_custom_call.1} parent=0
    _
  %s19 = ssub.s32 1, %s17
  %s20 = scalar_select 0, %s19, %s17
  $region1: #{tpu_custom_call.1} parent=0
    #allocation2 [shape = 'u8[1024]{0}', space=vmem, size = 0x400, scoped, tag = 'output window, operand 0']
    #allocation3 [shape = 's32[2]{0}', space=sflag, size = 0x8, scoped, tag = 'scoped memory for tpu_custom_call.1']
    %21 = vsyncpa [#allocation3], 0
    %s22 = scalar_lea.sflag [#allocation3], 1
    %23 = vsyncpa %s22, 0
    loop: start=0, step=1, limit=4
    $region2: #{tpu_custom_call.1} parent=1 // loop_pre_header
      _
    $region3: #{tpu_custom_call.1} parent=1 // loop_header
      %s25 = sphi 0, %s29
      %p26 = scmp.ge.s32.totalorder %s25, 4
      %s35 = sphi 0, %s37
      %s38 = sphi 0, %s35
      %s39 = sphi 0, %s38
      %s55 = sphi 0, %s39
      %s61 = sphi 0, %s63
      %s64 = sphi 0, %s61
      %s65 = sphi 0, %s64
      %s81 = sphi 0, %s65
      %s87 = sphi 0, %s89
      %s90 = sphi 0, %s87
      %s91 = sphi 0, %s90
      %s107 = sphi 0, %s91
      %s111 = sphi 0, %s111
      %s113 = sphi 0, %s111
      %s114 = sphi 0, %s113
      %s128 = sphi 0, %s114
      %s132 = sphi 0, %s132
      %s134 = sphi 0, %s132
      %s135 = sphi 0, %s134
      %s149 = sphi 0, %s135
      %s153 = sphi 0, %s153
      %s155 = sphi 0, %s153
      %s156 = sphi 0, %s155
      %s170 = sphi 0, %s156
      %s174 = sphi 0, %s174
      %s176 = sphi 0, %s174
      %s177 = sphi 0, %s176
      %s191 = sphi 0, %s177
      %s195 = sphi 0, %s195
      %s197 = sphi 0, %s195
      %s198 = sphi 0, %s197
      %s212 = sphi 0, %s198
      %s216 = sphi 0, %s216
      %s218 = sphi 0, %s216
      %s219 = sphi 0, %s218
      %s233 = sphi 0, %s219
      %s237 = sphi 0, %s237
      %s239 = sphi 0, %s237
      %s240 = sphi 0, %s239
      %s254 = sphi 0, %s240
      %s258 = sphi 0, %s258
      %s260 = sphi 0, %s258
      %s261 = sphi 0, %s260
      %s275 = sphi 0, %s261
      %s279 = sphi 0, %s279
      %s281 = sphi 0, %s279
      %s282 = sphi 0, %s281
      %s296 = sphi 0, %s282
      %s300 = sphi 0, %s300
      %s302 = sphi 0, %s300
      %s303 = sphi 0, %s302
      %s317 = sphi 0, %s303
      %s321 = sphi 0, %s321
      %s323 = sphi 0, %s321
      %s324 = sphi 0, %s323
      %s338 = sphi 0, %s324
      %s342 = sphi 0, %s342
      %s344 = sphi 0, %s342
      %s345 = sphi 0, %s344
      %s359 = sphi 0, %s345
      %s363 = sphi 0, %s363
      %s365 = sphi 0, %s363
      %s366 = sphi 0, %s365
      %s380 = sphi 0, %s366
      %s386 = sphi 0, %s388
      %s389 = sphi 0, %s386
      %s390 = sphi 0, %s389
      %s406 = sphi 0, %s390
    $region4: #{tpu_custom_call.1} parent=1 // loop_header_branch
      %28 = sbr.rel (%p26) target = $region8
    $region5: #{tpu_custom_call.1} parent=1 // loop_body
      %s30 = ssub.s32 %s25, 1
      %s31 = ssub.s32 %s25, 2
      %s32 = sadd.s32 %s25, 1
      %s33 = ssub.s32 %s25, %s32
      %p34 = scmp.eq.s32.totalorder %s33, 0
      %s36 = sadd.s32 %s35, 1
      %s37 = scalar_select %p34, %s35, %s36
      %p40 = pneg %p34
      %p41 = scmp.eq.s32.totalorder %s25, 1
      %p42 = por %p40, %p41
      %p43 = scmp.ne.s32.totalorder %s35, %s38
      %p44 = scmp.eq.s32.totalorder %s25, 0
      %p45 = por %p43, %p44
      %p46 = scmp.ne.s32.totalorder %s35, %s38
      %p47 = scmp.eq.s32.totalorder %s30, 1
      %p48 = por %p46, %p47
      %p49 = scmp.ne.s32.totalorder %s38, %s39
      %p50 = scmp.eq.s32.totalorder %s30, 0
      %p51 = por %p49, %p50
      %p52 = scmp.ne.s32.totalorder %s38, %s39
      %p53 = scmp.eq.s32.totalorder %s31, 1
      %p54 = por %p52, %p53
      %p56 = scmp.ne.s32.totalorder %s39, %s55
      %p57 = scmp.eq.s32.totalorder %s31, 0
      %p58 = por %p56, %p57
      %s59 = ssub.s32 %s25, %s32
      %p60 = scmp.eq.s32.totalorder %s59, 0
      %s62 = sadd.s32 %s61, 1
      %s63 = scalar_select %p60, %s61, %s62
      %p66 = pneg %p60
      %p67 = scmp.eq.s32.totalorder %s25, 1
      %p68 = por %p66, %p67
      %p69 = scmp.ne.s32.totalorder %s61, %s64
      %p70 = scmp.eq.s32.totalorder %s25, 0
      %p71 = por %p69, %p70
      %p72 = scmp.ne.s32.totalorder %s61, %s64
      %p73 = scmp.eq.s32.totalorder %s30, 1
      %p74 = por %p72, %p73
      %p75 = scmp.ne.s32.totalorder %s64, %s65
      %p76 = scmp.eq.s32.totalorder %s30, 0
      %p77 = por %p75, %p76
      %p78 = scmp.ne.s32.totalorder %s64, %s65
      %p79 = scmp.eq.s32.totalorder %s31, 1
      %p80 = por %p78, %p79
      %p82 = scmp.ne.s32.totalorder %s65, %s81
      %p83 = scmp.eq.s32.totalorder %s31, 0
      %p84 = por %p82, %p83
      %s85 = ssub.s32 %s25, %s32
      %p86 = scmp.eq.s32.totalorder %s85, 0
      %s88 = sadd.s32 %s87, 1
      %s89 = scalar_select %p86, %s87, %s88
      %p92 = pneg %p86
      %p93 = scmp.eq.s32.totalorder %s25, 1
      %p94 = por %p92, %p93
      %p95 = scmp.ne.s32.totalorder %s87, %s90
      %p96 = scmp.eq.s32.totalorder %s25, 0
      %p97 = por %p95, %p96
      %p98 = scmp.ne.s32.totalorder %s87, %s90
      %p99 = scmp.eq.s32.totalorder %s30, 1
      %p100 = por %p98, %p99
      %p101 = scmp.ne.s32.totalorder %s90, %s91
      %p102 = scmp.eq.s32.totalorder %s30, 0
      %p103 = por %p101, %p102
      %p104 = scmp.ne.s32.totalorder %s90, %s91
      %p105 = scmp.eq.s32.totalorder %s31, 1
      %p106 = por %p104, %p105
      %p108 = scmp.ne.s32.totalorder %s91, %s107
      %p109 = scmp.eq.s32.totalorder %s31, 0
      %p110 = por %p108, %p109
      %s112 = sadd.s32 %s111, 1
      %p115 = scmp.eq.s32.totalorder %s25, 1
      %p116 = scmp.ne.s32.totalorder %s111, %s113
      %p117 = scmp.eq.s32.totalorder %s25, 0
      %p118 = por %p116, %p117
      %p119 = scmp.ne.s32.totalorder %s111, %s113
      %p120 = scmp.eq.s32.totalorder %s30, 1
      %p121 = por %p119, %p120
      %p122 = scmp.ne.s32.totalorder %s113, %s114
      %p123 = scmp.eq.s32.totalorder %s30, 0
      %p124 = por %p122, %p123
      %p125 = scmp.ne.s32.totalorder %s113, %s114
      %p126 = scmp.eq.s32.totalorder %s31, 1
      %p127 = por %p125, %p126
      %p129 = scmp.ne.s32.totalorder %s114, %s128
      %p130 = scmp.eq.s32.totalorder %s31, 0
      %p131 = por %p129, %p130
      %s133 = sadd.s32 %s132, 1
      %p136 = scmp.eq.s32.totalorder %s25, 1
      %p137 = scmp.ne.s32.totalorder %s132, %s134
      %p138 = scmp.eq.s32.totalorder %s25, 0
      %p139 = por %p137, %p138
      %p140 = scmp.ne.s32.totalorder %s132, %s134
      %p141 = scmp.eq.s32.totalorder %s30, 1
      %p142 = por %p140, %p141
      %p143 = scmp.ne.s32.totalorder %s134, %s135
      %p144 = scmp.eq.s32.totalorder %s30, 0
      %p145 = por %p143, %p144
      %p146 = scmp.ne.s32.totalorder %s134, %s135
      %p147 = scmp.eq.s32.totalorder %s31, 1
      %p148 = por %p146, %p147
      %p150 = scmp.ne.s32.totalorder %s135, %s149
      %p151 = scmp.eq.s32.totalorder %s31, 0
      %p152 = por %p150, %p151
      %s154 = sadd.s32 %s153, 1
      %p157 = scmp.eq.s32.totalorder %s25, 1
      %p158 = scmp.ne.s32.totalorder %s153, %s155
      %p159 = scmp.eq.s32.totalorder %s25, 0
      %p160 = por %p158, %p159
      %p161 = scmp.ne.s32.totalorder %s153, %s155
      %p162 = scmp.eq.s32.totalorder %s30, 1
      %p163 = por %p161, %p162
      %p164 = scmp.ne.s32.totalorder %s155, %s156
      %p165 = scmp.eq.s32.totalorder %s30, 0
      %p166 = por %p164, %p165
      %p167 = scmp.ne.s32.totalorder %s155, %s156
      %p168 = scmp.eq.s32.totalorder %s31, 1
      %p169 = por %p167, %p168
      %p171 = scmp.ne.s32.totalorder %s156, %s170
      %p172 = scmp.eq.s32.totalorder %s31, 0
      %p173 = por %p171, %p172
      %s175 = sadd.s32 %s174, 1
      %p178 = scmp.eq.s32.totalorder %s25, 1
      %p179 = scmp.ne.s32.totalorder %s174, %s176
      %p180 = scmp.eq.s32.totalorder %s25, 0
      %p181 = por %p179, %p180
      %p182 = scmp.ne.s32.totalorder %s174, %s176
      %p183 = scmp.eq.s32.totalorder %s30, 1
      %p184 = por %p182, %p183
      %p185 = scmp.ne.s32.totalorder %s176, %s177
      %p186 = scmp.eq.s32.totalorder %s30, 0
      %p187 = por %p185, %p186
      %p188 = scmp.ne.s32.totalorder %s176, %s177
      %p189 = scmp.eq.s32.totalorder %s31, 1
      %p190 = por %p188, %p189
      %p192 = scmp.ne.s32.totalorder %s177, %s191
      %p193 = scmp.eq.s32.totalorder %s31, 0
      %p194 = por %p192, %p193
      %s196 = sadd.s32 %s195, 1
      %p199 = scmp.eq.s32.totalorder %s25, 1
      %p200 = scmp.ne.s32.totalorder %s195, %s197
      %p201 = scmp.eq.s32.totalorder %s25, 0
      %p202 = por %p200, %p201
      %p203 = scmp.ne.s32.totalorder %s195, %s197
      %p204 = scmp.eq.s32.totalorder %s30, 1
      %p205 = por %p203, %p204
      %p206 = scmp.ne.s32.totalorder %s197, %s198
      %p207 = scmp.eq.s32.totalorder %s30, 0
      %p208 = por %p206, %p207
      %p209 = scmp.ne.s32.totalorder %s197, %s198
      %p210 = scmp.eq.s32.totalorder %s31, 1
      %p211 = por %p209, %p210
      %p213 = scmp.ne.s32.totalorder %s198, %s212
      %p214 = scmp.eq.s32.totalorder %s31, 0
      %p215 = por %p213, %p214
      %s217 = sadd.s32 %s216, 1
      %p220 = scmp.eq.s32.totalorder %s25, 1
      %p221 = scmp.ne.s32.totalorder %s216, %s218
      %p222 = scmp.eq.s32.totalorder %s25, 0
      %p223 = por %p221, %p222
      %p224 = scmp.ne.s32.totalorder %s216, %s218
      %p225 = scmp.eq.s32.totalorder %s30, 1
      %p226 = por %p224, %p225
      %p227 = scmp.ne.s32.totalorder %s218, %s219
      %p228 = scmp.eq.s32.totalorder %s30, 0
      %p229 = por %p227, %p228
      %p230 = scmp.ne.s32.totalorder %s218, %s219
      %p231 = scmp.eq.s32.totalorder %s31, 1
      %p232 = por %p230, %p231
      %p234 = scmp.ne.s32.totalorder %s219, %s233
      %p235 = scmp.eq.s32.totalorder %s31, 0
      %p236 = por %p234, %p235
      %s238 = sadd.s32 %s237, 1
      %p241 = scmp.eq.s32.totalorder %s25, 1
      %p242 = scmp.ne.s32.totalorder %s237, %s239
      %p243 = scmp.eq.s32.totalorder %s25, 0
      %p244 = por %p242, %p243
      %p245 = scmp.ne.s32.totalorder %s237, %s239
      %p246 = scmp.eq.s32.totalorder %s30, 1
      %p247 = por %p245, %p246
      %p248 = scmp.ne.s32.totalorder %s239, %s240
      %p249 = scmp.eq.s32.totalorder %s30, 0
      %p250 = por %p248, %p249
      %p251 = scmp.ne.s32.totalorder %s239, %s240
      %p252 = scmp.eq.s32.totalorder %s31, 1
      %p253 = por %p251, %p252
      %p255 = scmp.ne.s32.totalorder %s240, %s254
      %p256 = scmp.eq.s32.totalorder %s31, 0
      %p257 = por %p255, %p256
      %s259 = sadd.s32 %s258, 1
      %p262 = scmp.eq.s32.totalorder %s25, 1
      %p263 = scmp.ne.s32.totalorder %s258, %s260
      %p264 = scmp.eq.s32.totalorder %s25, 0
      %p265 = por %p263, %p264
      %p266 = scmp.ne.s32.totalorder %s258, %s260
      %p267 = scmp.eq.s32.totalorder %s30, 1
      %p268 = por %p266, %p267
      %p269 = scmp.ne.s32.totalorder %s260, %s261
      %p270 = scmp.eq.s32.totalorder %s30, 0
      %p271 = por %p269, %p270
      %p272 = scmp.ne.s32.totalorder %s260, %s261
      %p273 = scmp.eq.s32.totalorder %s31, 1
      %p274 = por %p272, %p273
      %p276 = scmp.ne.s32.totalorder %s261, %s275
      %p277 = scmp.eq.s32.totalorder %s31, 0
      %p278 = por %p276, %p277
      %s280 = sadd.s32 %s279, 1
      %p283 = scmp.eq.s32.totalorder %s25, 1
      %p284 = scmp.ne.s32.totalorder %s279, %s281
      %p285 = scmp.eq.s32.totalorder %s25, 0
      %p286 = por %p284, %p285
      %p287 = scmp.ne.s32.totalorder %s279, %s281
      %p288 = scmp.eq.s32.totalorder %s30, 1
      %p289 = por %p287, %p288
      %p290 = scmp.ne.s32.totalorder %s281, %s282
      %p291 = scmp.eq.s32.totalorder %s30, 0
      %p292 = por %p290, %p291
      %p293 = scmp.ne.s32.totalorder %s281, %s282
      %p294 = scmp.eq.s32.totalorder %s31, 1
      %p295 = por %p293, %p294
      %p297 = scmp.ne.s32.totalorder %s282, %s296
      %p298 = scmp.eq.s32.totalorder %s31, 0
      %p299 = por %p297, %p298
      %s301 = sadd.s32 %s300, 1
      %p304 = scmp.eq.s32.totalorder %s25, 1
      %p305 = scmp.ne.s32.totalorder %s300, %s302
      %p306 = scmp.eq.s32.totalorder %s25, 0
      %p307 = por %p305, %p306
      %p308 = scmp.ne.s32.totalorder %s300, %s302
      %p309 = scmp.eq.s32.totalorder %s30, 1
      %p310 = por %p308, %p309
      %p311 = scmp.ne.s32.totalorder %s302, %s303
      %p312 = scmp.eq.s32.totalorder %s30, 0
      %p313 = por %p311, %p312
      %p314 = scmp.ne.s32.totalorder %s302, %s303
      %p315 = scmp.eq.s32.totalorder %s31, 1
      %p316 = por %p314, %p315
      %p318 = scmp.ne.s32.totalorder %s303, %s317
      %p319 = scmp.eq.s32.totalorder %s31, 0
      %p320 = por %p318, %p319
      %s322 = sadd.s32 %s321, 1
      %p325 = scmp.eq.s32.totalorder %s25, 1
      %p326 = scmp.ne.s32.totalorder %s321, %s323
      %p327 = scmp.eq.s32.totalorder %s25, 0
      %p328 = por %p326, %p327
      %p329 = scmp.ne.s32.totalorder %s321, %s323
      %p330 = scmp.eq.s32.totalorder %s30, 1
      %p331 = por %p329, %p330
      %p332 = scmp.ne.s32.totalorder %s323, %s324
      %p333 = scmp.eq.s32.totalorder %s30, 0
      %p334 = por %p332, %p333
      %p335 = scmp.ne.s32.totalorder %s323, %s324
      %p336 = scmp.eq.s32.totalorder %s31, 1
      %p337 = por %p335, %p336
      %p339 = scmp.ne.s32.totalorder %s324, %s338
      %p340 = scmp.eq.s32.totalorder %s31, 0
      %p341 = por %p339, %p340
      %s343 = sadd.s32 %s342, 1
      %p346 = scmp.eq.s32.totalorder %s25, 1
      %p347 = scmp.ne.s32.totalorder %s342, %s344
      %p348 = scmp.eq.s32.totalorder %s25, 0
      %p349 = por %p347, %p348
      %p350 = scmp.ne.s32.totalorder %s342, %s344
      %p351 = scmp.eq.s32.totalorder %s30, 1
      %p352 = por %p350, %p351
      %p353 = scmp.ne.s32.totalorder %s344, %s345
      %p354 = scmp.eq.s32.totalorder %s30, 0
      %p355 = por %p353, %p354
      %p356 = scmp.ne.s32.totalorder %s344, %s345
      %p357 = scmp.eq.s32.totalorder %s31, 1
      %p358 = por %p356, %p357
      %p360 = scmp.ne.s32.totalorder %s345, %s359
      %p361 = scmp.eq.s32.totalorder %s31, 0
      %p362 = por %p360, %p361
      %s364 = sadd.s32 %s363, 1
      %p367 = scmp.eq.s32.totalorder %s25, 1
      %p368 = scmp.ne.s32.totalorder %s363, %s365
      %p369 = scmp.eq.s32.totalorder %s25, 0
      %p370 = por %p368, %p369
      %p371 = scmp.ne.s32.totalorder %s363, %s365
      %p372 = scmp.eq.s32.totalorder %s30, 1
      %p373 = por %p371, %p372
      %p374 = scmp.ne.s32.totalorder %s365, %s366
      %p375 = scmp.eq.s32.totalorder %s30, 0
      %p376 = por %p374, %p375
      %p377 = scmp.ne.s32.totalorder %s365, %s366
      %p378 = scmp.eq.s32.totalorder %s31, 1
      %p379 = por %p377, %p378
      %p381 = scmp.ne.s32.totalorder %s366, %s380
      %p382 = scmp.eq.s32.totalorder %s31, 0
      %p383 = por %p381, %p382
      %s384 = ssub.s32 %s25, %s32
      %p385 = scmp.eq.s32.totalorder %s384, 0
      %s387 = sadd.s32 %s386, 1
      %s388 = scalar_select %p385, %s386, %s387
      %p391 = pneg %p385
      %p392 = scmp.eq.s32.totalorder %s25, 1
      %p393 = por %p391, %p392
      %p394 = scmp.ne.s32.totalorder %s386, %s389
      %p395 = scmp.eq.s32.totalorder %s25, 0
      %p396 = por %p394, %p395
      %p397 = scmp.ne.s32.totalorder %s386, %s389
      %p398 = scmp.eq.s32.totalorder %s30, 1
      %p399 = por %p397, %p398
      %p400 = scmp.ne.s32.totalorder %s389, %s390
      %p401 = scmp.eq.s32.totalorder %s30, 0
      %p402 = por %p400, %p401
      %p403 = scmp.ne.s32.totalorder %s389, %s390
      %p404 = scmp.eq.s32.totalorder %s31, 1
      %p405 = por %p403, %p404
      %p407 = scmp.ne.s32.totalorder %s390, %s406
      %p408 = scmp.eq.s32.totalorder %s31, 0
      %p409 = por %p407, %p408
      %p410 = scmp.le.s32.totalorder 1, %s25
      %p411 = scmp.lt.s32.totalorder %s25, 3
      %p412 = pnand %p410, %p411
      %p413 = pneg %p412
      // Predicated region
      $region9: #{tpu_custom_call.1} parent=5 // pred_check
        _
      $region10: #{tpu_custom_call.1} parent=5 // pred_check_branch
        %415 = sbr.rel (%p412) target = $region12
      $region11: #{tpu_custom_call.1} parent=5 // pred_region
        %s416 = ssub.s32 %s25, 1
        // Predicated region
        $region13: #{tpu_custom_call.1} parent=11 // pred_check
          %p417 = pneg %p124
        $region14: #{tpu_custom_call.1} parent=11 // pred_check_branch
          %419 = sbr.rel (%p417) target = $region16
        $region15: #{tpu_custom_call.1} parent=11 // pred_region
          _
        $region16: #{tpu_custom_call.1} parent=11 // pred_fallthru
          _
        // Predicated region
        $region17: #{tpu_custom_call.1} parent=11 // pred_check
          %p420 = pneg %p145
        $region18: #{tpu_custom_call.1} parent=11 // pred_check_branch
          %422 = sbr.rel (%p420) target = $region20
        $region19: #{tpu_custom_call.1} parent=11 // pred_region
          _
        $region20: #{tpu_custom_call.1} parent=11 // pred_fallthru
          _
        // Predicated region
        $region21: #{tpu_custom_call.1} parent=11 // pred_check
          %p423 = pneg %p166
        $region22: #{tpu_custom_call.1} parent=11 // pred_check_branch
          %425 = sbr.rel (%p423) target = $region24
        $region23: #{tpu_custom_call.1} parent=11 // pred_region
          _
        $region24: #{tpu_custom_call.1} parent=11 // pred_fallthru
          _
        // Predicated region
        $region25: #{tpu_custom_call.1} parent=11 // pred_check
          %p426 = pneg %p187
        $region26: #{tpu_custom_call.1} parent=11 // pred_check_branch
          %428 = sbr.rel (%p426) target = $region28
        $region27: #{tpu_custom_call.1} parent=11 // pred_region
          _
        $region28: #{tpu_custom_call.1} parent=11 // pred_fallthru
          _
        // Predicated region
        $region29: #{tpu_custom_call.1} parent=11 // pred_check
          %p429 = pneg %p208
        $region30: #{tpu_custom_call.1} parent=11 // pred_check_branch
          %431 = sbr.rel (%p429) target = $region32
        $region31: #{tpu_custom_call.1} parent=11 // pred_region
          _
        $region32: #{tpu_custom_call.1} parent=11 // pred_fallthru
          _
        // Predicated region
        $region33: #{tpu_custom_call.1} parent=11 // pred_check
          %p432 = pneg %p229
        $region34: #{tpu_custom_call.1} parent=11 // pred_check_branch
          %434 = sbr.rel (%p432) target = $region36
        $region35: #{tpu_custom_call.1} parent=11 // pred_region
          _
        $region36: #{tpu_custom_call.1} parent=11 // pred_fallthru
          _
        // Predicated region
        $region37: #{tpu_custom_call.1} parent=11 // pred_check
          %p435 = pneg %p250
        $region38: #{tpu_custom_call.1} parent=11 // pred_check_branch
          %437 = sbr.rel (%p435) target = $region40
        $region39: #{tpu_custom_call.1} parent=11 // pred_region
          _
        $region40: #{tpu_custom_call.1} parent=11 // pred_fallthru
          _
        // Predicated region
        $region41: #{tpu_custom_call.1} parent=11 // pred_check
          %p438 = pneg %p271
        $region42: #{tpu_custom_call.1} parent=11 // pred_check_branch
          %440 = sbr.rel (%p438) target = $region44
        $region43: #{tpu_custom_call.1} parent=11 // pred_region
          _
        $region44: #{tpu_custom_call.1} parent=11 // pred_fallthru
          _
        // Predicated region
        $region45: #{tpu_custom_call.1} parent=11 // pred_check
          %p441 = pneg %p292
        $region46: #{tpu_custom_call.1} parent=11 // pred_check_branch
          %443 = sbr.rel (%p441) target = $region48
        $region47: #{tpu_custom_call.1} parent=11 // pred_region
          _
        $region48: #{tpu_custom_call.1} parent=11 // pred_fallthru
          _
        // Predicated region
        $region49: #{tpu_custom_call.1} parent=11 // pred_check
          %p444 = pneg %p313
        $region50: #{tpu_custom_call.1} parent=11 // pred_check_branch
          %446 = sbr.rel (%p444) target = $region52
        $region51: #{tpu_custom_call.1} parent=11 // pred_region
          _
        $region52: #{tpu_custom_call.1} parent=11 // pred_fallthru
          _
        // Predicated region
        $region53: #{tpu_custom_call.1} parent=11 // pred_check
          %p447 = pneg %p334
        $region54: #{tpu_custom_call.1} parent=11 // pred_check_branch
          %449 = sbr.rel (%p447) target = $region56
        $region55: #{tpu_custom_call.1} parent=11 // pred_region
          _
        $region56: #{tpu_custom_call.1} parent=11 // pred_fallthru
          _
        // Predicated region
        $region57: #{tpu_custom_call.1} parent=11 // pred_check
          %p450 = pneg %p355
        $region58: #{tpu_custom_call.1} parent=11 // pred_check_branch
          %452 = sbr.rel (%p450) target = $region60
        $region59: #{tpu_custom_call.1} parent=11 // pred_region
          _
        $region60: #{tpu_custom_call.1} parent=11 // pred_fallthru
          _
        // Predicated region
        $region61: #{tpu_custom_call.1} parent=11 // pred_check
          %p453 = pneg %p376
        $region62: #{tpu_custom_call.1} parent=11 // pred_check_branch
          %455 = sbr.rel (%p453) target = $region64
        $region63: #{tpu_custom_call.1} parent=11 // pred_region
          _
        $region64: #{tpu_custom_call.1} parent=11 // pred_fallthru
          _
      $region12: #{tpu_custom_call.1} parent=5 // pred_fallthru
        _
      %p456 = scmp.lt.s32.totalorder %s25, 2
      // Predicated region
      $region65: #{tpu_custom_call.1} parent=5 // pred_check
        %p457 = pneg %p456
      $region66: #{tpu_custom_call.1} parent=5 // pred_check_branch
        %459 = sbr.rel (%p457) target = $region68
      $region67: #{tpu_custom_call.1} parent=5 // pred_region
        // Predicated region
        $region69: #{tpu_custom_call.1} parent=67 // pred_check
          %p460 = pneg %p45
        $region70: #{tpu_custom_call.1} parent=67 // pred_check_branch
          %462 = sbr.rel (%p460) target = $region72
        $region71: #{tpu_custom_call.1} parent=67 // pred_region
          %p463 = scmp.lt.s32.totalorder %s25, 1
          %s464 = scalar_select %p463, %s25, 1
          %s465 = smul.addr %s464, 8
          %s466 = scalar_lea.vmem %s0, %s465
        $region72: #{tpu_custom_call.1} parent=67 // pred_fallthru
          _
        // Predicated region
        $region73: #{tpu_custom_call.1} parent=67 // pred_check
          %p467 = pneg %p71
        $region74: #{tpu_custom_call.1} parent=67 // pred_check_branch
          %469 = sbr.rel (%p467) target = $region76
        $region75: #{tpu_custom_call.1} parent=67 // pred_region
          %p470 = scmp.lt.s32.totalorder %s25, 1
          %s471 = scalar_select %p470, %s25, 1
          %s472 = scalar_lea.vmem %s1, %s471
        $region76: #{tpu_custom_call.1} parent=67 // pred_fallthru
          _
        // Predicated region
        $region77: #{tpu_custom_call.1} parent=67 // pred_check
          %p473 = pneg %p97
        $region78: #{tpu_custom_call.1} parent=67 // pred_check_branch
          %475 = sbr.rel (%p473) target = $region80
        $region79: #{tpu_custom_call.1} parent=67 // pred_region
          %p476 = scmp.lt.s32.totalorder %s25, 1
          %s477 = scalar_select %p476, %s25, 1
          %s478 = smul.addr %s477, 8
          %s479 = scalar_lea.vmem %s2, %s478
        $region80: #{tpu_custom_call.1} parent=67 // pred_fallthru
          _
      $region68: #{tpu_custom_call.1} parent=5 // pred_fallthru
        _
      %p480 = scmp.le.s32.totalorder 1, %s25
      %p481 = scmp.lt.s32.totalorder %s25, 3
      %p482 = pnand %p480, %p481
      %p483 = pneg %p482
      // Predicated region
      $region81: #{tpu_custom_call.1} parent=5 // pred_check
        _
      $region82: #{tpu_custom_call.1} parent=5 // pred_check_branch
        %485 = sbr.rel (%p482) target = $region84
      $region83: #{tpu_custom_call.1} parent=5 // pred_region
        %s486 = ssub.s32 %s25, 1
        %p487 = scmp.lt.s32.totalorder %s30, 1
        %s488 = scalar_select %p487, %s30, 1
        %s489 = smul.addr %s488, 8
        %s490 = scalar_lea.vmem %s0, %s489
        %p491 = pneg %p51
        %p492 = pneg %p48
        %p493 = scmp.lt.s32.totalorder %s30, 1
        %s494 = scalar_select %p493, %s30, 1
        %s495 = scalar_lea.vmem %s1, %s494
        %p496 = pneg %p77
        %p497 = pneg %p74
        %p498 = scmp.lt.s32.totalorder %s30, 1
        %s499 = scalar_select %p498, %s30, 1
        %s500 = smul.addr %s499, 8
        %s501 = scalar_lea.vmem %s2, %s500
        %p502 = pneg %p103
        %p503 = pneg %p100
        %p504 = pneg %p124
        %p505 = pneg %p121
        %p506 = pneg %p145
        %p507 = pneg %p142
        %p508 = pneg %p166
        %p509 = pneg %p163
        %p510 = pneg %p187
        %p511 = pneg %p184
        %p512 = pneg %p208
        %p513 = pneg %p205
        %p514 = pneg %p229
        %p515 = pneg %p226
        %p516 = pneg %p250
        %p517 = pneg %p247
        %p518 = pneg %p271
        %p519 = pneg %p268
        %p520 = pneg %p292
        %p521 = pneg %p289
        %p522 = pneg %p313
        %p523 = pneg %p310
        %p524 = pneg %p334
        %p525 = pneg %p331
        %p526 = pneg %p355
        %p527 = pneg %p352
        %p528 = pneg %p376
        %p529 = pneg %p373
        %p530 = pneg %p402
        %p531 = pneg %p399
        %s532 = sand.u32 %s389, 1
        %s533 = scalar_lea.sflag [#allocation3], %s532
        %s534 = sand.u32 %s389, 1
        %s535 = scalar_lea.vmem [#allocation2], %s534
        %p536 = scmp.lt.s32.totalorder %s30, 1
        %s537 = scalar_select %p536, %s30, 1
        %s538 = smul.addr %s537, 8
        %s539 = scalar_lea.vmem %s0, %s538
        %p540 = scmp.lt.s32.totalorder %s30, 1
        %s541 = scalar_select %p540, %s30, 1
        %s542 = scalar_lea.vmem %s1, %s541
        %p543 = scmp.lt.s32.totalorder %s30, 1
        %s544 = scalar_select %p543, %s30, 1
        %s545 = smul.addr %s544, 8
        %s546 = scalar_lea.vmem %s2, %s545
        %v547 = vld [vmem:[%s539] sm:$0xff]
        %v548 = vld [vmem:[%s542] sm:$0x1]
        %v549 = vsub.f32 1.0, %v548
        %v550 = vmul.f32 %v549, -1e+30
        %v551 = vld [vmem:[%s3] sm:$0xff]
        %v552 = vld [vmem:[%s3 + $0x8] sm:$0xff]
        %v553 = vld [vmem:[%s3 + $0x10] sm:$0xff]
        %v554 = vld [vmem:[%s3 + $0x18] sm:$0xff]
        %vm555 = vcmask 261120
        %v557 = vsel %vm555, %v547, 0
        %559 = vmatprep.subr.mxu0 0.0
        %560 = vmatpush1.msra.mxu0 0.0
        %561 = vmatprep.subr.mxu0 0.0
        %562 = vmatpush1.msra.mxu0 0.0
        %563 = vmatprep.subr.mxu0 0.0
        %564 = vmatpush1.msra.mxu0 0.0
        %565 = vmatprep.subr.mxu0 0.0
        %566 = vmatpush1.msra.mxu0 0.0
        %567 = vmatprep.subr.mxu0 0.0
        %568 = vmatpush1.msra.mxu0 0.0
        %569 = vmatprep.subr.mxu0 0.0
        %570 = vmatpush1.msra.mxu0 0.0
        %571 = vmatprep.subr.mxu0 0.0
        %572 = vmatpush1.msra.mxu0 0.0
        %573 = vmatprep.subr.mxu0 0.0
        %574 = vmatpush1.msra.mxu0 0.0
        %575 = vmatprep.subr.mxu0 0.0
        %576 = vmatpush1.msra.mxu0 0.0
        %577 = vmatprep.subr.mxu0 0.0
        %578 = vmatpush1.msra.mxu0 0.0
        %579 = vmatprep.subr.mxu0 0.0
        %580 = vmatpush1.msra.mxu0 0.0
        %581 = vmatprep.subr.mxu0 0.0
        %582 = vmatpush1.msra.mxu0 0.0
        %583 = vmatprep.subr.mxu0 0.0
        %584 = vmatpush1.msra.mxu0 %v554
        %585 = vmatprep.subr.mxu0 0.0
        %586 = vmatpush1.msra.mxu0 %v553
        %587 = vmatprep.subr.mxu0 0.0
        %588 = vmatpush1.msra.mxu0 %v552
        %589 = vmatprep.subr.mxu0 0.0
        %590 = vmatpush1.msra.mxu0 %v551
        %591 = vmatprep.subr.mxu0 0.0
        %592 = vmatpush2.msra.mxu0 0.0
        %593 = vmatprep.subr.mxu0 0.0
        %594 = vmatpush2.msra.mxu0 0.0
        %595 = vmatprep.subr.mxu0 0.0
        %596 = vmatpush2.msra.mxu0 0.0
        %597 = vmatprep.subr.mxu0 0.0
        %598 = vmatpush2.msra.mxu0 0.0
        %599 = vmatprep.subr.mxu0 0.0
        %600 = vmatpush2.msra.mxu0 0.0
        %601 = vmatprep.subr.mxu0 0.0
        %602 = vmatpush2.msra.mxu0 0.0
        %603 = vmatprep.subr.mxu0 0.0
        %604 = vmatpush2.msra.mxu0 0.0
        %605 = vmatprep.subr.mxu0 0.0
        %606 = vmatpush2.msra.mxu0 0.0
        %607 = vmatprep.subr.mxu0 0.0
        %608 = vmatpush2.msra.mxu0 0.0
        %609 = vmatprep.subr.mxu0 0.0
        %610 = vmatpush2.msra.mxu0 0.0
        %611 = vmatprep.subr.mxu0 0.0
        %612 = vmatpush2.msra.mxu0 0.0
        %613 = vmatprep.subr.mxu0 0.0
        %614 = vmatpush2.msra.mxu0 0.0
        %615 = vmatprep.subr.mxu0 0.0
        %616 = vmatpush2.msra.mxu0 0.0
        %617 = vmatprep.subr.mxu0 0.0
        %618 = vmatpush2.msra.mxu0 0.0
        %619 = vmatprep.subr.mxu0 0.0
        %620 = vmatpush2.msra.mxu0 0.0
        %621 = vmatprep.subr.mxu0 0.0
        %622 = vmatpush2.msra.mxu0 0.0
        %623 = vmatprep.mubr.f32.mxu0 0.0
        %624 = vmatmul.mubr.f32.gmra.mxu0 %v557
        %v625 = vpop.f32.mrf.mxu0
        %v626 = vadd.f32 0.0, %v625
        %v627 = vpop.f32.mrf.mxu0
        %628 = vdwg.mxu0
        %630 = vrot.lane.b32.xlu0 %v626, 120
        %v631 = vpop.permute.xlu0 %630
        %632 = vrot.lane.b32.xlu0 %v626, 112
        %v633 = vpop.permute.xlu0 %632
        %634 = vrot.lane.b32.xlu0 %v626, 104
        %v635 = vpop.permute.xlu0 %634
        %v637 = vlaneseq
        %v638 = vshrl.u32 %v637, 7
        %v639 = vsub.s32 0, %v638
        %v640 = vrot.slane %v550, %v639
        %642 = vrot.lane.b32.xlu0 %v626, 96
        %v643 = vpop.permute.xlu0 %642
        %vm644 = vcmask 64512
        %v645 = vsel %vm644, %v626, 0
        %v647 = vsel %vm644, %v643, 0
        %649 = vmatprep.subr.mxu0 0.0
        %650 = vmatpush1.xpose.msra.mxu0 0.0
        %651 = vmatprep.subr.mxu0 0.0
        %652 = vmatpush1.xpose.msra.mxu0 0.0
        %653 = vmatprep.subr.mxu0 0.0
        %654 = vmatpush1.xpose.msra.mxu0 0.0
        %655 = vmatprep.subr.mxu0 0.0
        %656 = vmatpush1.xpose.msra.mxu0 0.0
        %657 = vmatprep.subr.mxu0 0.0
        %658 = vmatpush1.xpose.msra.mxu0 0.0
        %659 = vmatprep.subr.mxu0 0.0
        %660 = vmatpush1.xpose.msra.mxu0 0.0
        %661 = vmatprep.subr.mxu0 0.0
        %662 = vmatpush1.xpose.msra.mxu0 0.0
        %663 = vmatprep.subr.mxu0 0.0
        %664 = vmatpush1.xpose.msra.mxu0 0.0
        %665 = vmatprep.subr.mxu0 0.0
        %666 = vmatpush1.xpose.msra.mxu0 0.0
        %667 = vmatprep.subr.mxu0 0.0
        %668 = vmatpush1.xpose.msra.mxu0 0.0
        %669 = vmatprep.subr.mxu0 0.0
        %670 = vmatpush1.xpose.msra.mxu0 0.0
        %671 = vmatprep.subr.mxu0 0.0
        %672 = vmatpush1.xpose.msra.mxu0 0.0
        %673 = vmatprep.subr.mxu0 0.0
        %674 = vmatpush1.xpose.msra.mxu0 0.0
        %675 = vmatprep.subr.mxu0 0.0
        %676 = vmatpush1.xpose.msra.mxu0 0.0
        %677 = vmatprep.subr.mxu0 0.0
        %678 = vmatpush1.xpose.msra.mxu0 0.0
        %679 = vmatprep.subr.mxu0 0.0
        %680 = vmatpush1.xpose.msra.mxu0 %v647
        %681 = vmatprep.subr.mxu0 0.0
        %682 = vmatpush2.xpose.msra.mxu0 0.0
        %683 = vmatprep.subr.mxu0 0.0
        %684 = vmatpush2.xpose.msra.mxu0 0.0
        %685 = vmatprep.subr.mxu0 0.0
        %686 = vmatpush2.xpose.msra.mxu0 0.0
        %687 = vmatprep.subr.mxu0 0.0
        %688 = vmatpush2.xpose.msra.mxu0 0.0
        %689 = vmatprep.subr.mxu0 0.0
        %690 = vmatpush2.xpose.msra.mxu0 0.0
        %691 = vmatprep.subr.mxu0 0.0
        %692 = vmatpush2.xpose.msra.mxu0 0.0
        %693 = vmatprep.subr.mxu0 0.0
        %694 = vmatpush2.xpose.msra.mxu0 0.0
        %695 = vmatprep.subr.mxu0 0.0
        %696 = vmatpush2.xpose.msra.mxu0 0.0
        %697 = vmatprep.subr.mxu0 0.0
        %698 = vmatpush2.xpose.msra.mxu0 0.0
        %699 = vmatprep.subr.mxu0 0.0
        %700 = vmatpush2.xpose.msra.mxu0 0.0
        %701 = vmatprep.subr.mxu0 0.0
        %702 = vmatpush2.xpose.msra.mxu0 0.0
        %703 = vmatprep.subr.mxu0 0.0
        %704 = vmatpush2.xpose.msra.mxu0 0.0
        %705 = vmatprep.subr.mxu0 0.0
        %706 = vmatpush2.xpose.msra.mxu0 0.0
        %707 = vmatprep.subr.mxu0 0.0
        %708 = vmatpush2.xpose.msra.mxu0 0.0
        %709 = vmatprep.subr.mxu0 0.0
        %710 = vmatpush2.xpose.msra.mxu0 0.0
        %711 = vmatprep.subr.mxu0 0.0
        %712 = vmatpush2.xpose.msra.mxu0 0.0
        %713 = vmatprep.mubr.f32.mxu0 0.0
        %714 = vmatmul.mubr.f32.gmra.mxu0 %v645
        %v715 = vpop.f32.mrf.mxu0
        %v716 = vadd.f32 %v640, %v715
        %v717 = vpop.f32.mrf.mxu0
        %718 = vdwg.mxu0
        %719 = vrot.lane.b32.xlu0 %v631, 96
        %v720 = vpop.permute.xlu0 %719
        %v721 = vsel %vm644, %v631, 0
        %v723 = vsel %vm644, %v720, 0
        %725 = vmatprep.subr.mxu0 0.0
        %726 = vmatpush1.xpose.msra.mxu0 0.0
        %727 = vmatprep.subr.mxu0 0.0
        %728 = vmatpush1.xpose.msra.mxu0 0.0
        %729 = vmatprep.subr.mxu0 0.0
        %730 = vmatpush1.xpose.msra.mxu0 0.0
        %731 = vmatprep.subr.mxu0 0.0
        %732 = vmatpush1.xpose.msra.mxu0 0.0
        %733 = vmatprep.subr.mxu0 0.0
        %734 = vmatpush1.xpose.msra.mxu0 0.0
        %735 = vmatprep.subr.mxu0 0.0
        %736 = vmatpush1.xpose.msra.mxu0 0.0
        %737 = vmatprep.subr.mxu0 0.0
        %738 = vmatpush1.xpose.msra.mxu0 0.0
        %739 = vmatprep.subr.mxu0 0.0
        %740 = vmatpush1.xpose.msra.mxu0 0.0
        %741 = vmatprep.subr.mxu0 0.0
        %742 = vmatpush1.xpose.msra.mxu0 0.0
        %743 = vmatprep.subr.mxu0 0.0
        %744 = vmatpush1.xpose.msra.mxu0 0.0
        %745 = vmatprep.subr.mxu0 0.0
        %746 = vmatpush1.xpose.msra.mxu0 0.0
        %747 = vmatprep.subr.mxu0 0.0
        %748 = vmatpush1.xpose.msra.mxu0 0.0
        %749 = vmatprep.subr.mxu0 0.0
        %750 = vmatpush1.xpose.msra.mxu0 0.0
        %751 = vmatprep.subr.mxu0 0.0
        %752 = vmatpush1.xpose.msra.mxu0 0.0
        %753 = vmatprep.subr.mxu0 0.0
        %754 = vmatpush1.xpose.msra.mxu0 0.0
        %755 = vmatprep.subr.mxu0 0.0
        %756 = vmatpush1.xpose.msra.mxu0 %v723
        %757 = vmatprep.subr.mxu0 0.0
        %758 = vmatpush2.xpose.msra.mxu0 0.0
        %759 = vmatprep.subr.mxu0 0.0
        %760 = vmatpush2.xpose.msra.mxu0 0.0
        %761 = vmatprep.subr.mxu0 0.0
        %762 = vmatpush2.xpose.msra.mxu0 0.0
        %763 = vmatprep.subr.mxu0 0.0
        %764 = vmatpush2.xpose.msra.mxu0 0.0
        %765 = vmatprep.subr.mxu0 0.0
        %766 = vmatpush2.xpose.msra.mxu0 0.0
        %767 = vmatprep.subr.mxu0 0.0
        %768 = vmatpush2.xpose.msra.mxu0 0.0
        %769 = vmatprep.subr.mxu0 0.0
        %770 = vmatpush2.xpose.msra.mxu0 0.0
        %771 = vmatprep.subr.mxu0 0.0
        %772 = vmatpush2.xpose.msra.mxu0 0.0
        %773 = vmatprep.subr.mxu0 0.0
        %774 = vmatpush2.xpose.msra.mxu0 0.0
        %775 = vmatprep.subr.mxu0 0.0
        %776 = vmatpush2.xpose.msra.mxu0 0.0
        %777 = vmatprep.subr.mxu0 0.0
        %778 = vmatpush2.xpose.msra.mxu0 0.0
        %779 = vmatprep.subr.mxu0 0.0
        %780 = vmatpush2.xpose.msra.mxu0 0.0
        %781 = vmatprep.subr.mxu0 0.0
        %782 = vmatpush2.xpose.msra.mxu0 0.0
        %783 = vmatprep.subr.mxu0 0.0
        %784 = vmatpush2.xpose.msra.mxu0 0.0
        %785 = vmatprep.subr.mxu0 0.0
        %786 = vmatpush2.xpose.msra.mxu0 0.0
        %787 = vmatprep.subr.mxu0 0.0
        %788 = vmatpush2.xpose.msra.mxu0 0.0
        %789 = vmatprep.mubr.f32.mxu0 0.0
        %790 = vmatmul.mubr.f32.gmra.mxu0 %v721
        %v791 = vpop.f32.mrf.mxu0
        %v792 = vadd.f32 %v640, %v791
        %v793 = vpop.f32.mrf.mxu0
        %794 = vdwg.mxu0
        %795 = vrot.lane.b32.xlu0 %v633, 96
        %v796 = vpop.permute.xlu0 %795
        %v797 = vsel %vm644, %v633, 0
        %v799 = vsel %vm644, %v796, 0
        %801 = vmatprep.subr.mxu0 0.0
        %802 = vmatpush1.xpose.msra.mxu0 0.0
        %803 = vmatprep.subr.mxu0 0.0
        %804 = vmatpush1.xpose.msra.mxu0 0.0
        %805 = vmatprep.subr.mxu0 0.0
        %806 = vmatpush1.xpose.msra.mxu0 0.0
        %807 = vmatprep.subr.mxu0 0.0
        %808 = vmatpush1.xpose.msra.mxu0 0.0
        %809 = vmatprep.subr.mxu0 0.0
        %810 = vmatpush1.xpose.msra.mxu0 0.0
        %811 = vmatprep.subr.mxu0 0.0
        %812 = vmatpush1.xpose.msra.mxu0 0.0
        %813 = vmatprep.subr.mxu0 0.0
        %814 = vmatpush1.xpose.msra.mxu0 0.0
        %815 = vmatprep.subr.mxu0 0.0
        %816 = vmatpush1.xpose.msra.mxu0 0.0
        %817 = vmatprep.subr.mxu0 0.0
        %818 = vmatpush1.xpose.msra.mxu0 0.0
        %819 = vmatprep.subr.mxu0 0.0
        %820 = vmatpush1.xpose.msra.mxu0 0.0
        %821 = vmatprep.subr.mxu0 0.0
        %822 = vmatpush1.xpose.msra.mxu0 0.0
        %823 = vmatprep.subr.mxu0 0.0
        %824 = vmatpush1.xpose.msra.mxu0 0.0
        %825 = vmatprep.subr.mxu0 0.0
        %826 = vmatpush1.xpose.msra.mxu0 0.0
        %827 = vmatprep.subr.mxu0 0.0
        %828 = vmatpush1.xpose.msra.mxu0 0.0
        %829 = vmatprep.subr.mxu0 0.0
        %830 = vmatpush1.xpose.msra.mxu0 0.0
        %831 = vmatprep.subr.mxu0 0.0
        %832 = vmatpush1.xpose.msra.mxu0 %v799
        %833 = vmatprep.subr.mxu0 0.0
        %834 = vmatpush2.xpose.msra.mxu0 0.0
        %835 = vmatprep.subr.mxu0 0.0
        %836 = vmatpush2.xpose.msra.mxu0 0.0
        %837 = vmatprep.subr.mxu0 0.0
        %838 = vmatpush2.xpose.msra.mxu0 0.0
        %839 = vmatprep.subr.mxu0 0.0
        %840 = vmatpush2.xpose.msra.mxu0 0.0
        %841 = vmatprep.subr.mxu0 0.0
        %842 = vmatpush2.xpose.msra.mxu0 0.0
        %843 = vmatprep.subr.mxu0 0.0
        %844 = vmatpush2.xpose.msra.mxu0 0.0
        %845 = vmatprep.subr.mxu0 0.0
        %846 = vmatpush2.xpose.msra.mxu0 0.0
        %847 = vmatprep.subr.mxu0 0.0
        %848 = vmatpush2.xpose.msra.mxu0 0.0
        %849 = vmatprep.subr.mxu0 0.0
        %850 = vmatpush2.xpose.msra.mxu0 0.0
        %851 = vmatprep.subr.mxu0 0.0
        %852 = vmatpush2.xpose.msra.mxu0 0.0
        %853 = vmatprep.subr.mxu0 0.0
        %854 = vmatpush2.xpose.msra.mxu0 0.0
        %855 = vmatprep.subr.mxu0 0.0
        %856 = vmatpush2.xpose.msra.mxu0 0.0
        %857 = vmatprep.subr.mxu0 0.0
        %858 = vmatpush2.xpose.msra.mxu0 0.0
        %859 = vmatprep.subr.mxu0 0.0
        %860 = vmatpush2.xpose.msra.mxu0 0.0
        %861 = vmatprep.subr.mxu0 0.0
        %862 = vmatpush2.xpose.msra.mxu0 0.0
        %863 = vmatprep.subr.mxu0 0.0
        %864 = vmatpush2.xpose.msra.mxu0 0.0
        %865 = vmatprep.mubr.f32.mxu0 0.0
        %866 = vmatmul.mubr.f32.gmra.mxu0 %v797
        %v867 = vpop.f32.mrf.mxu0
        %v868 = vadd.f32 %v640, %v867
        %v869 = vpop.f32.mrf.mxu0
        %870 = vdwg.mxu0
        %871 = vrot.lane.b32.xlu0 %v635, 96
        %v872 = vpop.permute.xlu0 %871
        %v873 = vsel %vm644, %v635, 0
        %v875 = vsel %vm644, %v872, 0
        %877 = vmatprep.subr.mxu0 0.0
        %878 = vmatpush1.xpose.msra.mxu0 0.0
        %879 = vmatprep.subr.mxu0 0.0
        %880 = vmatpush1.xpose.msra.mxu0 0.0
        %881 = vmatprep.subr.mxu0 0.0
        %882 = vmatpush1.xpose.msra.mxu0 0.0
        %883 = vmatprep.subr.mxu0 0.0
        %884 = vmatpush1.xpose.msra.mxu0 0.0
        %885 = vmatprep.subr.mxu0 0.0
        %886 = vmatpush1.xpose.msra.mxu0 0.0
        %887 = vmatprep.subr.mxu0 0.0
        %888 = vmatpush1.xpose.msra.mxu0 0.0
        %889 = vmatprep.subr.mxu0 0.0
        %890 = vmatpush1.xpose.msra.mxu0 0.0
        %891 = vmatprep.subr.mxu0 0.0
        %892 = vmatpush1.xpose.msra.mxu0 0.0
        %893 = vmatprep.subr.mxu0 0.0
        %894 = vmatpush1.xpose.msra.mxu0 0.0
        %895 = vmatprep.subr.mxu0 0.0
        %896 = vmatpush1.xpose.msra.mxu0 0.0
        %897 = vmatprep.subr.mxu0 0.0
        %898 = vmatpush1.xpose.msra.mxu0 0.0
        %899 = vmatprep.subr.mxu0 0.0
        %900 = vmatpush1.xpose.msra.mxu0 0.0
        %901 = vmatprep.subr.mxu0 0.0
        %902 = vmatpush1.xpose.msra.mxu0 0.0
        %903 = vmatprep.subr.mxu0 0.0
        %904 = vmatpush1.xpose.msra.mxu0 0.0
        %905 = vmatprep.subr.mxu0 0.0
        %906 = vmatpush1.xpose.msra.mxu0 0.0
        %907 = vmatprep.subr.mxu0 0.0
        %908 = vmatpush1.xpose.msra.mxu0 %v875
        %909 = vmatprep.subr.mxu0 0.0
        %910 = vmatpush2.xpose.msra.mxu0 0.0
        %911 = vmatprep.subr.mxu0 0.0
        %912 = vmatpush2.xpose.msra.mxu0 0.0
        %913 = vmatprep.subr.mxu0 0.0
        %914 = vmatpush2.xpose.msra.mxu0 0.0
        %915 = vmatprep.subr.mxu0 0.0
        %916 = vmatpush2.xpose.msra.mxu0 0.0
        %917 = vmatprep.subr.mxu0 0.0
        %918 = vmatpush2.xpose.msra.mxu0 0.0
        %919 = vmatprep.subr.mxu0 0.0
        %920 = vmatpush2.xpose.msra.mxu0 0.0
        %921 = vmatprep.subr.mxu0 0.0
        %922 = vmatpush2.xpose.msra.mxu0 0.0
        %923 = vmatprep.subr.mxu0 0.0
        %924 = vmatpush2.xpose.msra.mxu0 0.0
        %925 = vmatprep.subr.mxu0 0.0
        %926 = vmatpush2.xpose.msra.mxu0 0.0
        %927 = vmatprep.subr.mxu0 0.0
        %928 = vmatpush2.xpose.msra.mxu0 0.0
        %929 = vmatprep.subr.mxu0 0.0
        %930 = vmatpush2.xpose.msra.mxu0 0.0
        %931 = vmatprep.subr.mxu0 0.0
        %932 = vmatpush2.xpose.msra.mxu0 0.0
        %933 = vmatprep.subr.mxu0 0.0
        %934 = vmatpush2.xpose.msra.mxu0 0.0
        %935 = vmatprep.subr.mxu0 0.0
        %936 = vmatpush2.xpose.msra.mxu0 0.0
        %937 = vmatprep.subr.mxu0 0.0
        %938 = vmatpush2.xpose.msra.mxu0 0.0
        %939 = vmatprep.subr.mxu0 0.0
        %940 = vmatpush2.xpose.msra.mxu0 0.0
        %941 = vmatprep.mubr.f32.mxu0 0.0
        %942 = vmatmul.mubr.f32.gmra.mxu0 %v873
        %v943 = vpop.f32.mrf.mxu0
        %v944 = vadd.f32 %v640, %v943
        %v945 = vpop.f32.mrf.mxu0
        %946 = vdwg.mxu0
        %v947 = vsel %vm644, %v716, -inf
        %948 = vmax.xlane.f32.xlu0 %v947
        %v949 = vpop.xlane.xlu0 %948
        %v950 = vsel %vm644, %v792, -inf
        %951 = vmax.xlane.f32.xlu0 %v950
        %v952 = vpop.xlane.xlu0 %951
        %v953 = vsel %vm644, %v868, -inf
        %954 = vmax.xlane.f32.xlu0 %v953
        %v955 = vpop.xlane.xlu0 %954
        %v956 = vsel %vm644, %v944, -inf
        %957 = vmax.xlane.f32.xlu0 %v956
        %v958 = vpop.xlane.xlu0 %957
        %v959 = vsub.f32 %v716, %v949
        %v960 = vsub.f32 %v792, %v952
        %v961 = vsub.f32 %v868, %v955
        %v962 = vsub.f32 %v944, %v958
        %v963 = vmul.f32 %v959, 1.442695
        %v964 = vpow.pop %v963
        %v965 = vmul.f32 %v960, 1.442695
        %v966 = vpow.pop %v965
        %v967 = vmul.f32 %v961, 1.442695
        %v968 = vpow.pop %v967
        %v969 = vmul.f32 %v962, 1.442695
        %v970 = vpow.pop %v969
        %v971 = vsel %vm644, %v964, 0.0
        %972 = vadd.xlane.f32.xlu0 %v971
        %v973 = vpop.xlane.xlu0 %972
        %v974 = vsel %vm644, %v966, 0.0
        %975 = vadd.xlane.f32.xlu0 %v974
        %v976 = vpop.xlane.xlu0 %975
        %v977 = vsel %vm644, %v968, 0.0
        %978 = vadd.xlane.f32.xlu0 %v977
        %v979 = vpop.xlane.xlu0 %978
        %v980 = vsel %vm644, %v970, 0.0
        %981 = vadd.xlane.f32.xlu0 %v980
        %v982 = vpop.xlane.xlu0 %981
        %v983 = vrcp.pop %v973
        %v984 = vrcp.pop %v976
        %v985 = vrcp.pop %v979
        %v986 = vrcp.pop %v982
        %v987 = vmul.f32 %v964, %v983
        %v988 = vmul.f32 %v966, %v984
        %v989 = vmul.f32 %v968, %v985
        %v990 = vmul.f32 %v970, %v986
        %991 = vrot.lane.b32.xlu0 %v626, 64
        %v992 = vpop.permute.xlu0 %991
        %v995 = vsel %vm644, %v987, 0
        %997 = vmatprep.subr.mxu0 0.0
        %998 = vmatpush1.msra.mxu0 0.0
        %999 = vmatprep.subr.mxu0 0.0
        %1000 = vmatpush1.msra.mxu0 0.0
        %1001 = vmatprep.subr.mxu0 0.0
        %1002 = vmatpush1.msra.mxu0 0.0
        %1003 = vmatprep.subr.mxu0 0.0
        %1004 = vmatpush1.msra.mxu0 0.0
        %1005 = vmatprep.subr.mxu0 0.0
        %1006 = vmatpush1.msra.mxu0 0.0
        %1007 = vmatprep.subr.mxu0 0.0
        %1008 = vmatpush1.msra.mxu0 0.0
        %1009 = vmatprep.subr.mxu0 0.0
        %1010 = vmatpush1.msra.mxu0 0.0
        %1011 = vmatprep.subr.mxu0 0.0
        %1012 = vmatpush1.msra.mxu0 0.0
        %1013 = vmatprep.subr.mxu0 0.0
        %1014 = vmatpush1.msra.mxu0 0.0
        %1015 = vmatprep.subr.mxu0 0.0
        %1016 = vmatpush1.msra.mxu0 0.0
        %1017 = vmatprep.subr.mxu0 0.0
        %1018 = vmatpush1.msra.mxu0 0.0
        %1019 = vmatprep.subr.mxu0 0.0
        %1020 = vmatpush1.msra.mxu0 0.0
        %1021 = vmatprep.subr.mxu0 0.0
        %1022 = vmatpush1.msra.mxu0 0.0
        %1023 = vmatprep.subr.mxu0 0.0
        %1024 = vmatpush1.msra.mxu0 0.0
        %1025 = vmatprep.subr.mxu0 0.0
        %1026 = vmatpush1.msra.mxu0 0.0
        %1027 = vmatprep.subr.mxu0 0.0
        %1028 = vmatpush1.msra.mxu0 %v992
        %1029 = vmatprep.subr.mxu0 0.0
        %1030 = vmatpush2.msra.mxu0 0.0
        %1031 = vmatprep.subr.mxu0 0.0
        %1032 = vmatpush2.msra.mxu0 0.0
        %1033 = vmatprep.subr.mxu0 0.0
        %1034 = vmatpush2.msra.mxu0 0.0
        %1035 = vmatprep.subr.mxu0 0.0
        %1036 = vmatpush2.msra.mxu0 0.0
        %1037 = vmatprep.subr.mxu0 0.0
        %1038 = vmatpush2.msra.mxu0 0.0
        %1039 = vmatprep.subr.mxu0 0.0
        %1040 = vmatpush2.msra.mxu0 0.0
        %1041 = vmatprep.subr.mxu0 0.0
        %1042 = vmatpush2.msra.mxu0 0.0
        %1043 = vmatprep.subr.mxu0 0.0
        %1044 = vmatpush2.msra.mxu0 0.0
        %1045 = vmatprep.subr.mxu0 0.0
        %1046 = vmatpush2.msra.mxu0 0.0
        %1047 = vmatprep.subr.mxu0 0.0
        %1048 = vmatpush2.msra.mxu0 0.0
        %1049 = vmatprep.subr.mxu0 0.0
        %1050 = vmatpush2.msra.mxu0 0.0
        %1051 = vmatprep.subr.mxu0 0.0
        %1052 = vmatpush2.msra.mxu0 0.0
        %1053 = vmatprep.subr.mxu0 0.0
        %1054 = vmatpush2.msra.mxu0 0.0
        %1055 = vmatprep.subr.mxu0 0.0
        %1056 = vmatpush2.msra.mxu0 0.0
        %1057 = vmatprep.subr.mxu0 0.0
        %1058 = vmatpush2.msra.mxu0 0.0
        %1059 = vmatprep.subr.mxu0 0.0
        %1060 = vmatpush2.msra.mxu0 0.0
        %1061 = vmatprep.mubr.f32.mxu0 0.0
        %1062 = vmatmul.mubr.f32.gmra.mxu0 %v995
        %v1063 = vpop.f32.mrf.mxu0
        %v1064 = vadd.f32 0.0, %v1063
        %v1065 = vpop.f32.mrf.mxu0
        %1066 = vdwg.mxu0
        %1067 = vrot.lane.b32.xlu0 %v631, 64
        %v1068 = vpop.permute.xlu0 %1067
        %v1071 = vsel %vm644, %v988, 0
        %1073 = vmatprep.subr.mxu0 0.0
        %1074 = vmatpush1.msra.mxu0 0.0
        %1075 = vmatprep.subr.mxu0 0.0
        %1076 = vmatpush1.msra.mxu0 0.0
        %1077 = vmatprep.subr.mxu0 0.0
        %1078 = vmatpush1.msra.mxu0 0.0
        %1079 = vmatprep.subr.mxu0 0.0
        %1080 = vmatpush1.msra.mxu0 0.0
        %1081 = vmatprep.subr.mxu0 0.0
        %1082 = vmatpush1.msra.mxu0 0.0
        %1083 = vmatprep.subr.mxu0 0.0
        %1084 = vmatpush1.msra.mxu0 0.0
        %1085 = vmatprep.subr.mxu0 0.0
        %1086 = vmatpush1.msra.mxu0 0.0
        %1087 = vmatprep.subr.mxu0 0.0
        %1088 = vmatpush1.msra.mxu0 0.0
        %1089 = vmatprep.subr.mxu0 0.0
        %1090 = vmatpush1.msra.mxu0 0.0
        %1091 = vmatprep.subr.mxu0 0.0
        %1092 = vmatpush1.msra.mxu0 0.0
        %1093 = vmatprep.subr.mxu0 0.0
        %1094 = vmatpush1.msra.mxu0 0.0
        %1095 = vmatprep.subr.mxu0 0.0
        %1096 = vmatpush1.msra.mxu0 0.0
        %1097 = vmatprep.subr.mxu0 0.0
        %1098 = vmatpush1.msra.mxu0 0.0
        %1099 = vmatprep.subr.mxu0 0.0
        %1100 = vmatpush1.msra.mxu0 0.0
        %1101 = vmatprep.subr.mxu0 0.0
        %1102 = vmatpush1.msra.mxu0 0.0
        %1103 = vmatprep.subr.mxu0 0.0
        %1104 = vmatpush1.msra.mxu0 %v1068
        %1105 = vmatprep.subr.mxu0 0.0
        %1106 = vmatpush2.msra.mxu0 0.0
        %1107 = vmatprep.subr.mxu0 0.0
        %1108 = vmatpush2.msra.mxu0 0.0
        %1109 = vmatprep.subr.mxu0 0.0
        %1110 = vmatpush2.msra.mxu0 0.0
        %1111 = vmatprep.subr.mxu0 0.0
        %1112 = vmatpush2.msra.mxu0 0.0
        %1113 = vmatprep.subr.mxu0 0.0
        %1114 = vmatpush2.msra.mxu0 0.0
        %1115 = vmatprep.subr.mxu0 0.0
        %1116 = vmatpush2.msra.mxu0 0.0
        %1117 = vmatprep.subr.mxu0 0.0
        %1118 = vmatpush2.msra.mxu0 0.0
        %1119 = vmatprep.subr.mxu0 0.0
        %1120 = vmatpush2.msra.mxu0 0.0
        %1121 = vmatprep.subr.mxu0 0.0
        %1122 = vmatpush2.msra.mxu0 0.0
        %1123 = vmatprep.subr.mxu0 0.0
        %1124 = vmatpush2.msra.mxu0 0.0
        %1125 = vmatprep.subr.mxu0 0.0
        %1126 = vmatpush2.msra.mxu0 0.0
        %1127 = vmatprep.subr.mxu0 0.0
        %1128 = vmatpush2.msra.mxu0 0.0
        %1129 = vmatprep.subr.mxu0 0.0
        %1130 = vmatpush2.msra.mxu0 0.0
        %1131 = vmatprep.subr.mxu0 0.0
        %1132 = vmatpush2.msra.mxu0 0.0
        %1133 = vmatprep.subr.mxu0 0.0
        %1134 = vmatpush2.msra.mxu0 0.0
        %1135 = vmatprep.subr.mxu0 0.0
        %1136 = vmatpush2.msra.mxu0 0.0
        %1137 = vmatprep.mubr.f32.mxu0 0.0
        %1138 = vmatmul.mubr.f32.gmra.mxu0 %v1071
        %v1139 = vpop.f32.mrf.mxu0
        %v1140 = vadd.f32 0.0, %v1139
        %v1141 = vpop.f32.mrf.mxu0
        %1142 = vdwg.mxu0
        %1143 = vrot.lane.b32.xlu0 %v633, 64
        %v1144 = vpop.permute.xlu0 %1143
        %v1147 = vsel %vm644, %v989, 0
        %1149 = vmatprep.subr.mxu0 0.0
        %1150 = vmatpush1.msra.mxu0 0.0
        %1151 = vmatprep.subr.mxu0 0.0
        %1152 = vmatpush1.msra.mxu0 0.0
        %1153 = vmatprep.subr.mxu0 0.0
        %1154 = vmatpush1.msra.mxu0 0.0
        %1155 = vmatprep.subr.mxu0 0.0
        %1156 = vmatpush1.msra.mxu0 0.0
        %1157 = vmatprep.subr.mxu0 0.0
        %1158 = vmatpush1.msra.mxu0 0.0
        %1159 = vmatprep.subr.mxu0 0.0
        %1160 = vmatpush1.msra.mxu0 0.0
        %1161 = vmatprep.subr.mxu0 0.0
        %1162 = vmatpush1.msra.mxu0 0.0
        %1163 = vmatprep.subr.mxu0 0.0
        %1164 = vmatpush1.msra.mxu0 0.0
        %1165 = vmatprep.subr.mxu0 0.0
        %1166 = vmatpush1.msra.mxu0 0.0
        %1167 = vmatprep.subr.mxu0 0.0
        %1168 = vmatpush1.msra.mxu0 0.0
        %1169 = vmatprep.subr.mxu0 0.0
        %1170 = vmatpush1.msra.mxu0 0.0
        %1171 = vmatprep.subr.mxu0 0.0
        %1172 = vmatpush1.msra.mxu0 0.0
        %1173 = vmatprep.subr.mxu0 0.0
        %1174 = vmatpush1.msra.mxu0 0.0
        %1175 = vmatprep.subr.mxu0 0.0
        %1176 = vmatpush1.msra.mxu0 0.0
        %1177 = vmatprep.subr.mxu0 0.0
        %1178 = vmatpush1.msra.mxu0 0.0
        %1179 = vmatprep.subr.mxu0 0.0
        %1180 = vmatpush1.msra.mxu0 %v1144
        %1181 = vmatprep.subr.mxu0 0.0
        %1182 = vmatpush2.msra.mxu0 0.0
        %1183 = vmatprep.subr.mxu0 0.0
        %1184 = vmatpush2.msra.mxu0 0.0
        %1185 = vmatprep.subr.mxu0 0.0
        %1186 = vmatpush2.msra.mxu0 0.0
        %1187 = vmatprep.subr.mxu0 0.0
        %1188 = vmatpush2.msra.mxu0 0.0
        %1189 = vmatprep.subr.mxu0 0.0
        %1190 = vmatpush2.msra.mxu0 0.0
        %1191 = vmatprep.subr.mxu0 0.0
        %1192 = vmatpush2.msra.mxu0 0.0
        %1193 = vmatprep.subr.mxu0 0.0
        %1194 = vmatpush2.msra.mxu0 0.0
        %1195 = vmatprep.subr.mxu0 0.0
        %1196 = vmatpush2.msra.mxu0 0.0
        %1197 = vmatprep.subr.mxu0 0.0
        %1198 = vmatpush2.msra.mxu0 0.0
        %1199 = vmatprep.subr.mxu0 0.0
        %1200 = vmatpush2.msra.mxu0 0.0
        %1201 = vmatprep.subr.mxu0 0.0
        %1202 = vmatpush2.msra.mxu0 0.0
        %1203 = vmatprep.subr.mxu0 0.0
        %1204 = vmatpush2.msra.mxu0 0.0
        %1205 = vmatprep.subr.mxu0 0.0
        %1206 = vmatpush2.msra.mxu0 0.0
        %1207 = vmatprep.subr.mxu0 0.0
        %1208 = vmatpush2.msra.mxu0 0.0
        %1209 = vmatprep.subr.mxu0 0.0
        %1210 = vmatpush2.msra.mxu0 0.0
        %1211 = vmatprep.subr.mxu0 0.0
        %1212 = vmatpush2.msra.mxu0 0.0
        %1213 = vmatprep.mubr.f32.mxu0 0.0
        %1214 = vmatmul.mubr.f32.gmra.mxu0 %v1147
        %v1215 = vpop.f32.mrf.mxu0
        %v1216 = vadd.f32 0.0, %v1215
        %v1217 = vpop.f32.mrf.mxu0
        %1218 = vdwg.mxu0
        %1219 = vrot.lane.b32.xlu0 %v635, 64
        %v1220 = vpop.permute.xlu0 %1219
        %v1223 = vsel %vm644, %v990, 0
        %1225 = vmatprep.subr.mxu0 0.0
        %1226 = vmatpush1.msra.mxu0 0.0
        %1227 = vmatprep.subr.mxu0 0.0
        %1228 = vmatpush1.msra.mxu0 0.0
        %1229 = vmatprep.subr.mxu0 0.0
        %1230 = vmatpush1.msra.mxu0 0.0
        %1231 = vmatprep.subr.mxu0 0.0
        %1232 = vmatpush1.msra.mxu0 0.0
        %1233 = vmatprep.subr.mxu0 0.0
        %1234 = vmatpush1.msra.mxu0 0.0
        %1235 = vmatprep.subr.mxu0 0.0
        %1236 = vmatpush1.msra.mxu0 0.0
        %1237 = vmatprep.subr.mxu0 0.0
        %1238 = vmatpush1.msra.mxu0 0.0
        %1239 = vmatprep.subr.mxu0 0.0
        %1240 = vmatpush1.msra.mxu0 0.0
        %1241 = vmatprep.subr.mxu0 0.0
        %1242 = vmatpush1.msra.mxu0 0.0
        %1243 = vmatprep.subr.mxu0 0.0
        %1244 = vmatpush1.msra.mxu0 0.0
        %1245 = vmatprep.subr.mxu0 0.0
        %1246 = vmatpush1.msra.mxu0 0.0
        %1247 = vmatprep.subr.mxu0 0.0
        %1248 = vmatpush1.msra.mxu0 0.0
        %1249 = vmatprep.subr.mxu0 0.0
        %1250 = vmatpush1.msra.mxu0 0.0
        %1251 = vmatprep.subr.mxu0 0.0
        %1252 = vmatpush1.msra.mxu0 0.0
        %1253 = vmatprep.subr.mxu0 0.0
        %1254 = vmatpush1.msra.mxu0 0.0
        %1255 = vmatprep.subr.mxu0 0.0
        %1256 = vmatpush1.msra.mxu0 %v1220
        %1257 = vmatprep.subr.mxu0 0.0
        %1258 = vmatpush2.msra.mxu0 0.0
        %1259 = vmatprep.subr.mxu0 0.0
        %1260 = vmatpush2.msra.mxu0 0.0
        %1261 = vmatprep.subr.mxu0 0.0
        %1262 = vmatpush2.msra.mxu0 0.0
        %1263 = vmatprep.subr.mxu0 0.0
        %1264 = vmatpush2.msra.mxu0 0.0
        %1265 = vmatprep.subr.mxu0 0.0
        %1266 = vmatpush2.msra.mxu0 0.0
        %1267 = vmatprep.subr.mxu0 0.0
        %1268 = vmatpush2.msra.mxu0 0.0
        %1269 = vmatprep.subr.mxu0 0.0
        %1270 = vmatpush2.msra.mxu0 0.0
        %1271 = vmatprep.subr.mxu0 0.0
        %1272 = vmatpush2.msra.mxu0 0.0
        %1273 = vmatprep.subr.mxu0 0.0
        %1274 = vmatpush2.msra.mxu0 0.0
        %1275 = vmatprep.subr.mxu0 0.0
        %1276 = vmatpush2.msra.mxu0 0.0
        %1277 = vmatprep.subr.mxu0 0.0
        %1278 = vmatpush2.msra.mxu0 0.0
        %1279 = vmatprep.subr.mxu0 0.0
        %1280 = vmatpush2.msra.mxu0 0.0
        %1281 = vmatprep.subr.mxu0 0.0
        %1282 = vmatpush2.msra.mxu0 0.0
        %1283 = vmatprep.subr.mxu0 0.0
        %1284 = vmatpush2.msra.mxu0 0.0
        %1285 = vmatprep.subr.mxu0 0.0
        %1286 = vmatpush2.msra.mxu0 0.0
        %1287 = vmatprep.subr.mxu0 0.0
        %1288 = vmatpush2.msra.mxu0 0.0
        %1289 = vmatprep.mubr.f32.mxu0 0.0
        %1290 = vmatmul.mubr.f32.gmra.mxu0 %v1223
        %v1291 = vpop.f32.mrf.mxu0
        %v1292 = vadd.f32 0.0, %v1291
        %v1293 = vpop.f32.mrf.mxu0
        %1294 = vdwg.mxu0
        %1296 = vrot.lane.b32.xlu0 %v1140, 8
        %v1297 = vpop.permute.xlu0 %1296
        %1300 = vrot.lane.b32.xlu0 %v1216, 16
        %v1301 = vpop.permute.xlu0 %1300
        %1304 = vrot.lane.b32.xlu0 %v1292, 24
        %v1305 = vpop.permute.xlu0 %1304
        %v1307 = vsel %vm644, %v1064, %v1297
        %vm1308 = vcmask 130048
        %v1309 = vsel %vm1308, %v1307, %v1301
        %vm1310 = vcmask 195584
        %v1311 = vsel %vm1310, %v1309, %v1305
        %v1312 = vld [vmem:[%s4] sm:$0xff]
        %v1313 = vld [vmem:[%s4 + $0x8] sm:$0xff]
        %v1314 = vld [vmem:[%s4 + $0x10] sm:$0xff]
        %v1315 = vld [vmem:[%s4 + $0x18] sm:$0xff]
        %v1316 = vld [vmem:[%s5] sm:$0x1]
        %v1318 = vlaneseq
        %v1319 = vshrl.u32 %v1318, 7
        %v1320 = vsub.s32 0, %v1319
        %v1321 = vrot.slane %v1316, %v1320
        %v1324 = vsel %vm555, %v1311, 0
        %1326 = vmatprep.subr.mxu0 0.0
        %1327 = vmatpush1.msra.mxu0 0.0
        %1328 = vmatprep.subr.mxu0 0.0
        %1329 = vmatpush1.msra.mxu0 0.0
        %1330 = vmatprep.subr.mxu0 0.0
        %1331 = vmatpush1.msra.mxu0 0.0
        %1332 = vmatprep.subr.mxu0 0.0
        %1333 = vmatpush1.msra.mxu0 0.0
        %1334 = vmatprep.subr.mxu0 0.0
        %1335 = vmatpush1.msra.mxu0 0.0
        %1336 = vmatprep.subr.mxu0 0.0
        %1337 = vmatpush1.msra.mxu0 0.0
        %1338 = vmatprep.subr.mxu0 0.0
        %1339 = vmatpush1.msra.mxu0 0.0
        %1340 = vmatprep.subr.mxu0 0.0
        %1341 = vmatpush1.msra.mxu0 0.0
        %1342 = vmatprep.subr.mxu0 0.0
        %1343 = vmatpush1.msra.mxu0 0.0
        %1344 = vmatprep.subr.mxu0 0.0
        %1345 = vmatpush1.msra.mxu0 0.0
        %1346 = vmatprep.subr.mxu0 0.0
        %1347 = vmatpush1.msra.mxu0 0.0
        %1348 = vmatprep.subr.mxu0 0.0
        %1349 = vmatpush1.msra.mxu0 0.0
        %1350 = vmatprep.subr.mxu0 0.0
        %1351 = vmatpush1.msra.mxu0 %v1315
        %1352 = vmatprep.subr.mxu0 0.0
        %1353 = vmatpush1.msra.mxu0 %v1314
        %1354 = vmatprep.subr.mxu0 0.0
        %1355 = vmatpush1.msra.mxu0 %v1313
        %1356 = vmatprep.subr.mxu0 0.0
        %1357 = vmatpush1.msra.mxu0 %v1312
        %1358 = vmatprep.subr.mxu0 0.0
        %1359 = vmatpush2.msra.mxu0 0.0
        %1360 = vmatprep.subr.mxu0 0.0
        %1361 = vmatpush2.msra.mxu0 0.0
        %1362 = vmatprep.subr.mxu0 0.0
        %1363 = vmatpush2.msra.mxu0 0.0
        %1364 = vmatprep.subr.mxu0 0.0
        %1365 = vmatpush2.msra.mxu0 0.0
        %1366 = vmatprep.subr.mxu0 0.0
        %1367 = vmatpush2.msra.mxu0 0.0
        %1368 = vmatprep.subr.mxu0 0.0
        %1369 = vmatpush2.msra.mxu0 0.0
        %1370 = vmatprep.subr.mxu0 0.0
        %1371 = vmatpush2.msra.mxu0 0.0
        %1372 = vmatprep.subr.mxu0 0.0
        %1373 = vmatpush2.msra.mxu0 0.0
        %1374 = vmatprep.subr.mxu0 0.0
        %1375 = vmatpush2.msra.mxu0 0.0
        %1376 = vmatprep.subr.mxu0 0.0
        %1377 = vmatpush2.msra.mxu0 0.0
        %1378 = vmatprep.subr.mxu0 0.0
        %1379 = vmatpush2.msra.mxu0 0.0
        %1380 = vmatprep.subr.mxu0 0.0
        %1381 = vmatpush2.msra.mxu0 0.0
        %1382 = vmatprep.subr.mxu0 0.0
        %1383 = vmatpush2.msra.mxu0 0.0
        %1384 = vmatprep.subr.mxu0 0.0
        %1385 = vmatpush2.msra.mxu0 0.0
        %1386 = vmatprep.subr.mxu0 0.0
        %1387 = vmatpush2.msra.mxu0 0.0
        %1388 = vmatprep.subr.mxu0 0.0
        %1389 = vmatpush2.msra.mxu0 0.0
        %1390 = vmatprep.mubr.f32.mxu0 0.0
        %1391 = vmatmul.mubr.f32.gmra.mxu0 %v1324
        %v1392 = vpop.f32.mrf.mxu0
        %v1393 = vadd.f32 %v1321, %v1392
        %v1394 = vpop.f32.mrf.mxu0
        %1395 = vdwg.mxu0
        %v1396 = vadd.f32 %v547, %v1393
        %v1397 = vld [vmem:[%s6] sm:$0x1]
        %v1398 = vld [vmem:[%s7] sm:$0x1]
        %v1399 = vsel %vm555, %v1396, 0.0
        %1400 = vadd.xlane.f32.xlu0 %v1399
        %v1401 = vpop.xlane.xlu0 %1400
        %v1402 = vrcp.pop 32.0
        %v1403 = vmul.f32 %v1401, %v1402
        %v1404 = vsub.f32 %v1396, %v1403
        %v1405 = vmul.f32 %v1404, %v1404
        %v1406 = vsel %vm555, %v1405, 0.0
        %1407 = vadd.xlane.f32.xlu0 %v1406
        %v1408 = vpop.xlane.xlu0 %1407
        %v1409 = vmul.f32 %v1408, %v1402
        %v1410 = vadd.f32 %v1409, 1e-05
        %v1411 = vrsqrt.pop %v1410
        %v1412 = vmul.f32 %v1404, %v1411
        %v1414 = vlaneseq
        %v1415 = vshrl.u32 %v1414, 7
        %v1416 = vsub.s32 0, %v1415
        %v1417 = vrot.slane %v1397, %v1416
        %v1419 = vmul.f32 %v1412, %v1417
        %v1421 = vlaneseq
        %v1422 = vshrl.u32 %v1421, 7
        %v1423 = vsub.s32 0, %v1422
        %v1424 = vrot.slane %v1398, %v1423
        %v1426 = vadd.f32 %v1419, %v1424
        %v1427 = vld [vmem:[%s8] sm:$0xff]
        %v1428 = vld [vmem:[%s8 + $0x8] sm:$0xff]
        %v1429 = vld [vmem:[%s8 + $0x10] sm:$0xff]
        %v1430 = vld [vmem:[%s8 + $0x18] sm:$0xff]
        %v1431 = vld [vmem:[%s9] sm:$0x1]
        %v1433 = vlaneseq
        %v1434 = vshrl.u32 %v1433, 7
        %v1435 = vsub.s32 0, %v1434
        %v1436 = vrot.slane %v1431, %v1435
        %v1439 = vsel %vm555, %v1426, 0
        %1441 = vmatprep.subr.mxu0 0.0
        %1442 = vmatpush1.msra.mxu0 0.0
        %1443 = vmatprep.subr.mxu0 0.0
        %1444 = vmatpush1.msra.mxu0 0.0
        %1445 = vmatprep.subr.mxu0 0.0
        %1446 = vmatpush1.msra.mxu0 0.0
        %1447 = vmatprep.subr.mxu0 0.0
        %1448 = vmatpush1.msra.mxu0 0.0
        %1449 = vmatprep.subr.mxu0 0.0
        %1450 = vmatpush1.msra.mxu0 0.0
        %1451 = vmatprep.subr.mxu0 0.0
        %1452 = vmatpush1.msra.mxu0 0.0
        %1453 = vmatprep.subr.mxu0 0.0
        %1454 = vmatpush1.msra.mxu0 0.0
        %1455 = vmatprep.subr.mxu0 0.0
        %1456 = vmatpush1.msra.mxu0 0.0
        %1457 = vmatprep.subr.mxu0 0.0
        %1458 = vmatpush1.msra.mxu0 0.0
        %1459 = vmatprep.subr.mxu0 0.0
        %1460 = vmatpush1.msra.mxu0 0.0
        %1461 = vmatprep.subr.mxu0 0.0
        %1462 = vmatpush1.msra.mxu0 0.0
        %1463 = vmatprep.subr.mxu0 0.0
        %1464 = vmatpush1.msra.mxu0 0.0
        %1465 = vmatprep.subr.mxu0 0.0
        %1466 = vmatpush1.msra.mxu0 %v1430
        %1467 = vmatprep.subr.mxu0 0.0
        %1468 = vmatpush1.msra.mxu0 %v1429
        %1469 = vmatprep.subr.mxu0 0.0
        %1470 = vmatpush1.msra.mxu0 %v1428
        %1471 = vmatprep.subr.mxu0 0.0
        %1472 = vmatpush1.msra.mxu0 %v1427
        %1473 = vmatprep.subr.mxu0 0.0
        %1474 = vmatpush2.msra.mxu0 0.0
        %1475 = vmatprep.subr.mxu0 0.0
        %1476 = vmatpush2.msra.mxu0 0.0
        %1477 = vmatprep.subr.mxu0 0.0
        %1478 = vmatpush2.msra.mxu0 0.0
        %1479 = vmatprep.subr.mxu0 0.0
        %1480 = vmatpush2.msra.mxu0 0.0
        %1481 = vmatprep.subr.mxu0 0.0
        %1482 = vmatpush2.msra.mxu0 0.0
        %1483 = vmatprep.subr.mxu0 0.0
        %1484 = vmatpush2.msra.mxu0 0.0
        %1485 = vmatprep.subr.mxu0 0.0
        %1486 = vmatpush2.msra.mxu0 0.0
        %1487 = vmatprep.subr.mxu0 0.0
        %1488 = vmatpush2.msra.mxu0 0.0
        %1489 = vmatprep.subr.mxu0 0.0
        %1490 = vmatpush2.msra.mxu0 0.0
        %1491 = vmatprep.subr.mxu0 0.0
        %1492 = vmatpush2.msra.mxu0 0.0
        %1493 = vmatprep.subr.mxu0 0.0
        %1494 = vmatpush2.msra.mxu0 0.0
        %1495 = vmatprep.subr.mxu0 0.0
        %1496 = vmatpush2.msra.mxu0 0.0
        %1497 = vmatprep.subr.mxu0 0.0
        %1498 = vmatpush2.msra.mxu0 0.0
        %1499 = vmatprep.subr.mxu0 0.0
        %1500 = vmatpush2.msra.mxu0 0.0
        %1501 = vmatprep.subr.mxu0 0.0
        %1502 = vmatpush2.msra.mxu0 0.0
        %1503 = vmatprep.subr.mxu0 0.0
        %1504 = vmatpush2.msra.mxu0 0.0
        %1505 = vmatprep.mubr.f32.mxu0 0.0
        %1506 = vmatmul.mubr.f32.gmra.mxu0 %v1439
        %v1507 = vpop.f32.mrf.mxu0
        %v1508 = vadd.f32 %v1436, %v1507
        %v1509 = vpop.f32.mrf.mxu0
        %1510 = vdwg.mxu0
        %v1511 = vmax.f32 %v1508, 0.0
        %v1512 = vld [vmem:[%s10] sm:$0xff]
        %v1513 = vld [vmem:[%s10 + $0x8] sm:$0xff]
        %v1514 = vld [vmem:[%s10 + $0x10] sm:$0xff]
        %v1515 = vld [vmem:[%s10 + $0x18] sm:$0xff]
        %v1516 = vld [vmem:[%s10 + $0x20] sm:$0xff]
        %v1517 = vld [vmem:[%s10 + $0x28] sm:$0xff]
        %v1518 = vld [vmem:[%s10 + $0x30] sm:$0xff]
        %v1519 = vld [vmem:[%s10 + $0x38] sm:$0xff]
        %v1520 = vld [vmem:[%s10 + $0x40] sm:$0xff]
        %v1521 = vld [vmem:[%s10 + $0x48] sm:$0xff]
        %v1522 = vld [vmem:[%s10 + $0x50] sm:$0xff]
        %v1523 = vld [vmem:[%s10 + $0x58] sm:$0xff]
        %v1524 = vld [vmem:[%s10 + $0x60] sm:$0xff]
        %v1525 = vld [vmem:[%s10 + $0x68] sm:$0xff]
        %v1526 = vld [vmem:[%s10 + $0x70] sm:$0xff]
        %v1527 = vld [vmem:[%s10 + $0x78] sm:$0xff]
        %v1528 = vld [vmem:[%s11] sm:$0x1]
        %v1530 = vlaneseq
        %v1531 = vshrl.u32 %v1530, 7
        %v1532 = vsub.s32 0, %v1531
        %v1533 = vrot.slane %v1528, %v1532
        %1535 = vmatprep.subr.mxu0 0.0
        %1536 = vmatpush1.msra.mxu0 %v1527
        %1537 = vmatprep.subr.mxu0 0.0
        %1538 = vmatpush1.msra.mxu0 %v1526
        %1539 = vmatprep.subr.mxu0 0.0
        %1540 = vmatpush1.msra.mxu0 %v1525
        %1541 = vmatprep.subr.mxu0 0.0
        %1542 = vmatpush1.msra.mxu0 %v1524
        %1543 = vmatprep.subr.mxu0 0.0
        %1544 = vmatpush1.msra.mxu0 %v1523
        %1545 = vmatprep.subr.mxu0 0.0
        %1546 = vmatpush1.msra.mxu0 %v1522
        %1547 = vmatprep.subr.mxu0 0.0
        %1548 = vmatpush1.msra.mxu0 %v1521
        %1549 = vmatprep.subr.mxu0 0.0
        %1550 = vmatpush1.msra.mxu0 %v1520
        %1551 = vmatprep.subr.mxu0 0.0
        %1552 = vmatpush1.msra.mxu0 %v1519
        %1553 = vmatprep.subr.mxu0 0.0
        %1554 = vmatpush1.msra.mxu0 %v1518
        %1555 = vmatprep.subr.mxu0 0.0
        %1556 = vmatpush1.msra.mxu0 %v1517
        %1557 = vmatprep.subr.mxu0 0.0
        %1558 = vmatpush1.msra.mxu0 %v1516
        %1559 = vmatprep.subr.mxu0 0.0
        %1560 = vmatpush1.msra.mxu0 %v1515
        %1561 = vmatprep.subr.mxu0 0.0
        %1562 = vmatpush1.msra.mxu0 %v1514
        %1563 = vmatprep.subr.mxu0 0.0
        %1564 = vmatpush1.msra.mxu0 %v1513
        %1565 = vmatprep.subr.mxu0 0.0
        %1566 = vmatpush1.msra.mxu0 %v1512
        %1567 = vmatprep.subr.mxu0 0.0
        %1568 = vmatpush2.msra.mxu0 0.0
        %1569 = vmatprep.subr.mxu0 0.0
        %1570 = vmatpush2.msra.mxu0 0.0
        %1571 = vmatprep.subr.mxu0 0.0
        %1572 = vmatpush2.msra.mxu0 0.0
        %1573 = vmatprep.subr.mxu0 0.0
        %1574 = vmatpush2.msra.mxu0 0.0
        %1575 = vmatprep.subr.mxu0 0.0
        %1576 = vmatpush2.msra.mxu0 0.0
        %1577 = vmatprep.subr.mxu0 0.0
        %1578 = vmatpush2.msra.mxu0 0.0
        %1579 = vmatprep.subr.mxu0 0.0
        %1580 = vmatpush2.msra.mxu0 0.0
        %1581 = vmatprep.subr.mxu0 0.0
        %1582 = vmatpush2.msra.mxu0 0.0
        %1583 = vmatprep.subr.mxu0 0.0
        %1584 = vmatpush2.msra.mxu0 0.0
        %1585 = vmatprep.subr.mxu0 0.0
        %1586 = vmatpush2.msra.mxu0 0.0
        %1587 = vmatprep.subr.mxu0 0.0
        %1588 = vmatpush2.msra.mxu0 0.0
        %1589 = vmatprep.subr.mxu0 0.0
        %1590 = vmatpush2.msra.mxu0 0.0
        %1591 = vmatprep.subr.mxu0 0.0
        %1592 = vmatpush2.msra.mxu0 0.0
        %1593 = vmatprep.subr.mxu0 0.0
        %1594 = vmatpush2.msra.mxu0 0.0
        %1595 = vmatprep.subr.mxu0 0.0
        %1596 = vmatpush2.msra.mxu0 0.0
        %1597 = vmatprep.subr.mxu0 0.0
        %1598 = vmatpush2.msra.mxu0 0.0
        %1599 = vmatprep.mubr.f32.mxu0 0.0
        %1600 = vmatmul.mubr.f32.gmra.mxu0 %v1511
        %v1601 = vpop.f32.mrf.mxu0
        %v1602 = vadd.f32 %v1533, %v1601
        %v1603 = vpop.f32.mrf.mxu0
        %1604 = vdwg.mxu0
        %v1605 = vadd.f32 %v1426, %v1602
        %v1606 = vld [vmem:[%s12] sm:$0x1]
        %v1607 = vld [vmem:[%s13] sm:$0x1]
        %v1608 = vsel %vm555, %v1605, 0.0
        %1609 = vadd.xlane.f32.xlu0 %v1608
        %v1610 = vpop.xlane.xlu0 %1609
        %v1611 = vmul.f32 %v1610, %v1402
        %v1612 = vsub.f32 %v1605, %v1611
        %v1613 = vmul.f32 %v1612, %v1612
        %v1614 = vsel %vm555, %v1613, 0.0
        %1615 = vadd.xlane.f32.xlu0 %v1614
        %v1616 = vpop.xlane.xlu0 %1615
        %v1617 = vmul.f32 %v1616, %v1402
        %v1618 = vadd.f32 %v1617, 1e-05
        %v1619 = vrsqrt.pop %v1618
        %v1620 = vmul.f32 %v1612, %v1619
        %v1622 = vlaneseq
        %v1623 = vshrl.u32 %v1622, 7
        %v1624 = vsub.s32 0, %v1623
        %v1625 = vrot.slane %v1606, %v1624
        %v1627 = vmul.f32 %v1620, %v1625
        %v1629 = vlaneseq
        %v1630 = vshrl.u32 %v1629, 7
        %v1631 = vsub.s32 0, %v1630
        %v1632 = vrot.slane %v1607, %v1631
        %v1634 = vadd.f32 %v1627, %v1632
        %s1635 = scalar_lea.vmem %s3, 32
        %v1636 = vld [vmem:[%s1635] sm:$0xff]
        %v1637 = vld [vmem:[%s1635 + $0x8] sm:$0xff]
        %v1638 = vld [vmem:[%s1635 + $0x10] sm:$0xff]
        %v1639 = vld [vmem:[%s1635 + $0x18] sm:$0xff]
        %v1641 = vsel %vm555, %v1634, 0
        %1643 = vmatprep.subr.mxu0 0.0
        %1644 = vmatpush1.msra.mxu0 0.0
        %1645 = vmatprep.subr.mxu0 0.0
        %1646 = vmatpush1.msra.mxu0 0.0
        %1647 = vmatprep.subr.mxu0 0.0
        %1648 = vmatpush1.msra.mxu0 0.0
        %1649 = vmatprep.subr.mxu0 0.0
        %1650 = vmatpush1.msra.mxu0 0.0
        %1651 = vmatprep.subr.mxu0 0.0
        %1652 = vmatpush1.msra.mxu0 0.0
        %1653 = vmatprep.subr.mxu0 0.0
        %1654 = vmatpush1.msra.mxu0 0.0
        %1655 = vmatprep.subr.mxu0 0.0
        %1656 = vmatpush1.msra.mxu0 0.0
        %1657 = vmatprep.subr.mxu0 0.0
        %1658 = vmatpush1.msra.mxu0 0.0
        %1659 = vmatprep.subr.mxu0 0.0
        %1660 = vmatpush1.msra.mxu0 0.0
        %1661 = vmatprep.subr.mxu0 0.0
        %1662 = vmatpush1.msra.mxu0 0.0
        %1663 = vmatprep.subr.mxu0 0.0
        %1664 = vmatpush1.msra.mxu0 0.0
        %1665 = vmatprep.subr.mxu0 0.0
        %1666 = vmatpush1.msra.mxu0 0.0
        %1667 = vmatprep.subr.mxu0 0.0
        %1668 = vmatpush1.msra.mxu0 %v1639
        %1669 = vmatprep.subr.mxu0 0.0
        %1670 = vmatpush1.msra.mxu0 %v1638
        %1671 = vmatprep.subr.mxu0 0.0
        %1672 = vmatpush1.msra.mxu0 %v1637
        %1673 = vmatprep.subr.mxu0 0.0
        %1674 = vmatpush1.msra.mxu0 %v1636
        %1675 = vmatprep.subr.mxu0 0.0
        %1676 = vmatpush2.msra.mxu0 0.0
        %1677 = vmatprep.subr.mxu0 0.0
        %1678 = vmatpush2.msra.mxu0 0.0
        %1679 = vmatprep.subr.mxu0 0.0
        %1680 = vmatpush2.msra.mxu0 0.0
        %1681 = vmatprep.subr.mxu0 0.0
        %1682 = vmatpush2.msra.mxu0 0.0
        %1683 = vmatprep.subr.mxu0 0.0
        %1684 = vmatpush2.msra.mxu0 0.0
        %1685 = vmatprep.subr.mxu0 0.0
        %1686 = vmatpush2.msra.mxu0 0.0
        %1687 = vmatprep.subr.mxu0 0.0
        %1688 = vmatpush2.msra.mxu0 0.0
        %1689 = vmatprep.subr.mxu0 0.0
        %1690 = vmatpush2.msra.mxu0 0.0
        %1691 = vmatprep.subr.mxu0 0.0
        %1692 = vmatpush2.msra.mxu0 0.0
        %1693 = vmatprep.subr.mxu0 0.0
        %1694 = vmatpush2.msra.mxu0 0.0
        %1695 = vmatprep.subr.mxu0 0.0
        %1696 = vmatpush2.msra.mxu0 0.0
        %1697 = vmatprep.subr.mxu0 0.0
        %1698 = vmatpush2.msra.mxu0 0.0
        %1699 = vmatprep.subr.mxu0 0.0
        %1700 = vmatpush2.msra.mxu0 0.0
        %1701 = vmatprep.subr.mxu0 0.0
        %1702 = vmatpush2.msra.mxu0 0.0
        %1703 = vmatprep.subr.mxu0 0.0
        %1704 = vmatpush2.msra.mxu0 0.0
        %1705 = vmatprep.subr.mxu0 0.0
        %1706 = vmatpush2.msra.mxu0 0.0
        %1707 = vmatprep.mubr.f32.mxu0 0.0
        %1708 = vmatmul.mubr.f32.gmra.mxu0 %v1641
        %v1709 = vpop.f32.mrf.mxu0
        %v1710 = vadd.f32 0.0, %v1709
        %v1711 = vpop.f32.mrf.mxu0
        %1712 = vdwg.mxu0
        %1714 = vrot.lane.b32.xlu0 %v1710, 120
        %v1715 = vpop.permute.xlu0 %1714
        %1716 = vrot.lane.b32.xlu0 %v1710, 112
        %v1717 = vpop.permute.xlu0 %1716
        %1718 = vrot.lane.b32.xlu0 %v1710, 104
        %v1719 = vpop.permute.xlu0 %1718
        %1720 = vrot.lane.b32.xlu0 %v1710, 96
        %v1721 = vpop.permute.xlu0 %1720
        %v1722 = vsel %vm644, %v1710, 0
        %v1724 = vsel %vm644, %v1721, 0
        %1726 = vmatprep.subr.mxu0 0.0
        %1727 = vmatpush1.xpose.msra.mxu0 0.0
        %1728 = vmatprep.subr.mxu0 0.0
        %1729 = vmatpush1.xpose.msra.mxu0 0.0
        %1730 = vmatprep.subr.mxu0 0.0
        %1731 = vmatpush1.xpose.msra.mxu0 0.0
        %1732 = vmatprep.subr.mxu0 0.0
        %1733 = vmatpush1.xpose.msra.mxu0 0.0
        %1734 = vmatprep.subr.mxu0 0.0
        %1735 = vmatpush1.xpose.msra.mxu0 0.0
        %1736 = vmatprep.subr.mxu0 0.0
        %1737 = vmatpush1.xpose.msra.mxu0 0.0
        %1738 = vmatprep.subr.mxu0 0.0
        %1739 = vmatpush1.xpose.msra.mxu0 0.0
        %1740 = vmatprep.subr.mxu0 0.0
        %1741 = vmatpush1.xpose.msra.mxu0 0.0
        %1742 = vmatprep.subr.mxu0 0.0
        %1743 = vmatpush1.xpose.msra.mxu0 0.0
        %1744 = vmatprep.subr.mxu0 0.0
        %1745 = vmatpush1.xpose.msra.mxu0 0.0
        %1746 = vmatprep.subr.mxu0 0.0
        %1747 = vmatpush1.xpose.msra.mxu0 0.0
        %1748 = vmatprep.subr.mxu0 0.0
        %1749 = vmatpush1.xpose.msra.mxu0 0.0
        %1750 = vmatprep.subr.mxu0 0.0
        %1751 = vmatpush1.xpose.msra.mxu0 0.0
        %1752 = vmatprep.subr.mxu0 0.0
        %1753 = vmatpush1.xpose.msra.mxu0 0.0
        %1754 = vmatprep.subr.mxu0 0.0
        %1755 = vmatpush1.xpose.msra.mxu0 0.0
        %1756 = vmatprep.subr.mxu0 0.0
        %1757 = vmatpush1.xpose.msra.mxu0 %v1724
        %1758 = vmatprep.subr.mxu0 0.0
        %1759 = vmatpush2.xpose.msra.mxu0 0.0
        %1760 = vmatprep.subr.mxu0 0.0
        %1761 = vmatpush2.xpose.msra.mxu0 0.0
        %1762 = vmatprep.subr.mxu0 0.0
        %1763 = vmatpush2.xpose.msra.mxu0 0.0
        %1764 = vmatprep.subr.mxu0 0.0
        %1765 = vmatpush2.xpose.msra.mxu0 0.0
        %1766 = vmatprep.subr.mxu0 0.0
        %1767 = vmatpush2.xpose.msra.mxu0 0.0
        %1768 = vmatprep.subr.mxu0 0.0
        %1769 = vmatpush2.xpose.msra.mxu0 0.0
        %1770 = vmatprep.subr.mxu0 0.0
        %1771 = vmatpush2.xpose.msra.mxu0 0.0
        %1772 = vmatprep.subr.mxu0 0.0
        %1773 = vmatpush2.xpose.msra.mxu0 0.0
        %1774 = vmatprep.subr.mxu0 0.0
        %1775 = vmatpush2.xpose.msra.mxu0 0.0
        %1776 = vmatprep.subr.mxu0 0.0
        %1777 = vmatpush2.xpose.msra.mxu0 0.0
        %1778 = vmatprep.subr.mxu0 0.0
        %1779 = vmatpush2.xpose.msra.mxu0 0.0
        %1780 = vmatprep.subr.mxu0 0.0
        %1781 = vmatpush2.xpose.msra.mxu0 0.0
        %1782 = vmatprep.subr.mxu0 0.0
        %1783 = vmatpush2.xpose.msra.mxu0 0.0
        %1784 = vmatprep.subr.mxu0 0.0
        %1785 = vmatpush2.xpose.msra.mxu0 0.0
        %1786 = vmatprep.subr.mxu0 0.0
        %1787 = vmatpush2.xpose.msra.mxu0 0.0
        %1788 = vmatprep.subr.mxu0 0.0
        %1789 = vmatpush2.xpose.msra.mxu0 0.0
        %1790 = vmatprep.mubr.f32.mxu0 0.0
        %1791 = vmatmul.mubr.f32.gmra.mxu0 %v1722
        %v1792 = vpop.f32.mrf.mxu0
        %v1793 = vadd.f32 %v640, %v1792
        %v1794 = vpop.f32.mrf.mxu0
        %1795 = vdwg.mxu0
        %1796 = vrot.lane.b32.xlu0 %v1715, 96
        %v1797 = vpop.permute.xlu0 %1796
        %v1798 = vsel %vm644, %v1715, 0
        %v1800 = vsel %vm644, %v1797, 0
        %1802 = vmatprep.subr.mxu0 0.0
        %1803 = vmatpush1.xpose.msra.mxu0 0.0
        %1804 = vmatprep.subr.mxu0 0.0
        %1805 = vmatpush1.xpose.msra.mxu0 0.0
        %1806 = vmatprep.subr.mxu0 0.0
        %1807 = vmatpush1.xpose.msra.mxu0 0.0
        %1808 = vmatprep.subr.mxu0 0.0
        %1809 = vmatpush1.xpose.msra.mxu0 0.0
        %1810 = vmatprep.subr.mxu0 0.0
        %1811 = vmatpush1.xpose.msra.mxu0 0.0
        %1812 = vmatprep.subr.mxu0 0.0
        %1813 = vmatpush1.xpose.msra.mxu0 0.0
        %1814 = vmatprep.subr.mxu0 0.0
        %1815 = vmatpush1.xpose.msra.mxu0 0.0
        %1816 = vmatprep.subr.mxu0 0.0
        %1817 = vmatpush1.xpose.msra.mxu0 0.0
        %1818 = vmatprep.subr.mxu0 0.0
        %1819 = vmatpush1.xpose.msra.mxu0 0.0
        %1820 = vmatprep.subr.mxu0 0.0
        %1821 = vmatpush1.xpose.msra.mxu0 0.0
        %1822 = vmatprep.subr.mxu0 0.0
        %1823 = vmatpush1.xpose.msra.mxu0 0.0
        %1824 = vmatprep.subr.mxu0 0.0
        %1825 = vmatpush1.xpose.msra.mxu0 0.0
        %1826 = vmatprep.subr.mxu0 0.0
        %1827 = vmatpush1.xpose.msra.mxu0 0.0
        %1828 = vmatprep.subr.mxu0 0.0
        %1829 = vmatpush1.xpose.msra.mxu0 0.0
        %1830 = vmatprep.subr.mxu0 0.0
        %1831 = vmatpush1.xpose.msra.mxu0 0.0
        %1832 = vmatprep.subr.mxu0 0.0
        %1833 = vmatpush1.xpose.msra.mxu0 %v1800
        %1834 = vmatprep.subr.mxu0 0.0
        %1835 = vmatpush2.xpose.msra.mxu0 0.0
        %1836 = vmatprep.subr.mxu0 0.0
        %1837 = vmatpush2.xpose.msra.mxu0 0.0
        %1838 = vmatprep.subr.mxu0 0.0
        %1839 = vmatpush2.xpose.msra.mxu0 0.0
        %1840 = vmatprep.subr.mxu0 0.0
        %1841 = vmatpush2.xpose.msra.mxu0 0.0
        %1842 = vmatprep.subr.mxu0 0.0
        %1843 = vmatpush2.xpose.msra.mxu0 0.0
        %1844 = vmatprep.subr.mxu0 0.0
        %1845 = vmatpush2.xpose.msra.mxu0 0.0
        %1846 = vmatprep.subr.mxu0 0.0
        %1847 = vmatpush2.xpose.msra.mxu0 0.0
        %1848 = vmatprep.subr.mxu0 0.0
        %1849 = vmatpush2.xpose.msra.mxu0 0.0
        %1850 = vmatprep.subr.mxu0 0.0
        %1851 = vmatpush2.xpose.msra.mxu0 0.0
        %1852 = vmatprep.subr.mxu0 0.0
        %1853 = vmatpush2.xpose.msra.mxu0 0.0
        %1854 = vmatprep.subr.mxu0 0.0
        %1855 = vmatpush2.xpose.msra.mxu0 0.0
        %1856 = vmatprep.subr.mxu0 0.0
        %1857 = vmatpush2.xpose.msra.mxu0 0.0
        %1858 = vmatprep.subr.mxu0 0.0
        %1859 = vmatpush2.xpose.msra.mxu0 0.0
        %1860 = vmatprep.subr.mxu0 0.0
        %1861 = vmatpush2.xpose.msra.mxu0 0.0
        %1862 = vmatprep.subr.mxu0 0.0
        %1863 = vmatpush2.xpose.msra.mxu0 0.0
        %1864 = vmatprep.subr.mxu0 0.0
        %1865 = vmatpush2.xpose.msra.mxu0 0.0
        %1866 = vmatprep.mubr.f32.mxu0 0.0
        %1867 = vmatmul.mubr.f32.gmra.mxu0 %v1798
        %v1868 = vpop.f32.mrf.mxu0
        %v1869 = vadd.f32 %v640, %v1868
        %v1870 = vpop.f32.mrf.mxu0
        %1871 = vdwg.mxu0
        %1872 = vrot.lane.b32.xlu0 %v1717, 96
        %v1873 = vpop.permute.xlu0 %1872
        %v1874 = vsel %vm644, %v1717, 0
        %v1876 = vsel %vm644, %v1873, 0
        %1878 = vmatprep.subr.mxu0 0.0
        %1879 = vmatpush1.xpose.msra.mxu0 0.0
        %1880 = vmatprep.subr.mxu0 0.0
        %1881 = vmatpush1.xpose.msra.mxu0 0.0
        %1882 = vmatprep.subr.mxu0 0.0
        %1883 = vmatpush1.xpose.msra.mxu0 0.0
        %1884 = vmatprep.subr.mxu0 0.0
        %1885 = vmatpush1.xpose.msra.mxu0 0.0
        %1886 = vmatprep.subr.mxu0 0.0
        %1887 = vmatpush1.xpose.msra.mxu0 0.0
        %1888 = vmatprep.subr.mxu0 0.0
        %1889 = vmatpush1.xpose.msra.mxu0 0.0
        %1890 = vmatprep.subr.mxu0 0.0
        %1891 = vmatpush1.xpose.msra.mxu0 0.0
        %1892 = vmatprep.subr.mxu0 0.0
        %1893 = vmatpush1.xpose.msra.mxu0 0.0
        %1894 = vmatprep.subr.mxu0 0.0
        %1895 = vmatpush1.xpose.msra.mxu0 0.0
        %1896 = vmatprep.subr.mxu0 0.0
        %1897 = vmatpush1.xpose.msra.mxu0 0.0
        %1898 = vmatprep.subr.mxu0 0.0
        %1899 = vmatpush1.xpose.msra.mxu0 0.0
        %1900 = vmatprep.subr.mxu0 0.0
        %1901 = vmatpush1.xpose.msra.mxu0 0.0
        %1902 = vmatprep.subr.mxu0 0.0
        %1903 = vmatpush1.xpose.msra.mxu0 0.0
        %1904 = vmatprep.subr.mxu0 0.0
        %1905 = vmatpush1.xpose.msra.mxu0 0.0
        %1906 = vmatprep.subr.mxu0 0.0
        %1907 = vmatpush1.xpose.msra.mxu0 0.0
        %1908 = vmatprep.subr.mxu0 0.0
        %1909 = vmatpush1.xpose.msra.mxu0 %v1876
        %1910 = vmatprep.subr.mxu0 0.0
        %1911 = vmatpush2.xpose.msra.mxu0 0.0
        %1912 = vmatprep.subr.mxu0 0.0
        %1913 = vmatpush2.xpose.msra.mxu0 0.0
        %1914 = vmatprep.subr.mxu0 0.0
        %1915 = vmatpush2.xpose.msra.mxu0 0.0
        %1916 = vmatprep.subr.mxu0 0.0
        %1917 = vmatpush2.xpose.msra.mxu0 0.0
        %1918 = vmatprep.subr.mxu0 0.0
        %1919 = vmatpush2.xpose.msra.mxu0 0.0
        %1920 = vmatprep.subr.mxu0 0.0
        %1921 = vmatpush2.xpose.msra.mxu0 0.0
        %1922 = vmatprep.subr.mxu0 0.0
        %1923 = vmatpush2.xpose.msra.mxu0 0.0
        %1924 = vmatprep.subr.mxu0 0.0
        %1925 = vmatpush2.xpose.msra.mxu0 0.0
        %1926 = vmatprep.subr.mxu0 0.0
        %1927 = vmatpush2.xpose.msra.mxu0 0.0
        %1928 = vmatprep.subr.mxu0 0.0
        %1929 = vmatpush2.xpose.msra.mxu0 0.0
        %1930 = vmatprep.subr.mxu0 0.0
        %1931 = vmatpush2.xpose.msra.mxu0 0.0
        %1932 = vmatprep.subr.mxu0 0.0
        %1933 = vmatpush2.xpose.msra.mxu0 0.0
        %1934 = vmatprep.subr.mxu0 0.0
        %1935 = vmatpush2.xpose.msra.mxu0 0.0
        %1936 = vmatprep.subr.mxu0 0.0
        %1937 = vmatpush2.xpose.msra.mxu0 0.0
        %1938 = vmatprep.subr.mxu0 0.0
        %1939 = vmatpush2.xpose.msra.mxu0 0.0
        %1940 = vmatprep.subr.mxu0 0.0
        %1941 = vmatpush2.xpose.msra.mxu0 0.0
        %1942 = vmatprep.mubr.f32.mxu0 0.0
        %1943 = vmatmul.mubr.f32.gmra.mxu0 %v1874
        %v1944 = vpop.f32.mrf.mxu0
        %v1945 = vadd.f32 %v640, %v1944
        %v1946 = vpop.f32.mrf.mxu0
        %1947 = vdwg.mxu0
        %1948 = vrot.lane.b32.xlu0 %v1719, 96
        %v1949 = vpop.permute.xlu0 %1948
        %v1950 = vsel %vm644, %v1719, 0
        %v1952 = vsel %vm644, %v1949, 0
        %1954 = vmatprep.subr.mxu0 0.0
        %1955 = vmatpush1.xpose.msra.mxu0 0.0
        %1956 = vmatprep.subr.mxu0 0.0
        %1957 = vmatpush1.xpose.msra.mxu0 0.0
        %1958 = vmatprep.subr.mxu0 0.0
        %1959 = vmatpush1.xpose.msra.mxu0 0.0
        %1960 = vmatprep.subr.mxu0 0.0
        %1961 = vmatpush1.xpose.msra.mxu0 0.0
        %1962 = vmatprep.subr.mxu0 0.0
        %1963 = vmatpush1.xpose.msra.mxu0 0.0
        %1964 = vmatprep.subr.mxu0 0.0
        %1965 = vmatpush1.xpose.msra.mxu0 0.0
        %1966 = vmatprep.subr.mxu0 0.0
        %1967 = vmatpush1.xpose.msra.mxu0 0.0
        %1968 = vmatprep.subr.mxu0 0.0
        %1969 = vmatpush1.xpose.msra.mxu0 0.0
        %1970 = vmatprep.subr.mxu0 0.0
        %1971 = vmatpush1.xpose.msra.mxu0 0.0
        %1972 = vmatprep.subr.mxu0 0.0
        %1973 = vmatpush1.xpose.msra.mxu0 0.0
        %1974 = vmatprep.subr.mxu0 0.0
        %1975 = vmatpush1.xpose.msra.mxu0 0.0
        %1976 = vmatprep.subr.mxu0 0.0
        %1977 = vmatpush1.xpose.msra.mxu0 0.0
        %1978 = vmatprep.subr.mxu0 0.0
        %1979 = vmatpush1.xpose.msra.mxu0 0.0
        %1980 = vmatprep.subr.mxu0 0.0
        %1981 = vmatpush1.xpose.msra.mxu0 0.0
        %1982 = vmatprep.subr.mxu0 0.0
        %1983 = vmatpush1.xpose.msra.mxu0 0.0
        %1984 = vmatprep.subr.mxu0 0.0
        %1985 = vmatpush1.xpose.msra.mxu0 %v1952
        %1986 = vmatprep.subr.mxu0 0.0
        %1987 = vmatpush2.xpose.msra.mxu0 0.0
        %1988 = vmatprep.subr.mxu0 0.0
        %1989 = vmatpush2.xpose.msra.mxu0 0.0
        %1990 = vmatprep.subr.mxu0 0.0
        %1991 = vmatpush2.xpose.msra.mxu0 0.0
        %1992 = vmatprep.subr.mxu0 0.0
        %1993 = vmatpush2.xpose.msra.mxu0 0.0
        %1994 = vmatprep.subr.mxu0 0.0
        %1995 = vmatpush2.xpose.msra.mxu0 0.0
        %1996 = vmatprep.subr.mxu0 0.0
        %1997 = vmatpush2.xpose.msra.mxu0 0.0
        %1998 = vmatprep.subr.mxu0 0.0
        %1999 = vmatpush2.xpose.msra.mxu0 0.0
        %2000 = vmatprep.subr.mxu0 0.0
        %2001 = vmatpush2.xpose.msra.mxu0 0.0
        %2002 = vmatprep.subr.mxu0 0.0
        %2003 = vmatpush2.xpose.msra.mxu0 0.0
        %2004 = vmatprep.subr.mxu0 0.0
        %2005 = vmatpush2.xpose.msra.mxu0 0.0
        %2006 = vmatprep.subr.mxu0 0.0
        %2007 = vmatpush2.xpose.msra.mxu0 0.0
        %2008 = vmatprep.subr.mxu0 0.0
        %2009 = vmatpush2.xpose.msra.mxu0 0.0
        %2010 = vmatprep.subr.mxu0 0.0
        %2011 = vmatpush2.xpose.msra.mxu0 0.0
        %2012 = vmatprep.subr.mxu0 0.0
        %2013 = vmatpush2.xpose.msra.mxu0 0.0
        %2014 = vmatprep.subr.mxu0 0.0
        %2015 = vmatpush2.xpose.msra.mxu0 0.0
        %2016 = vmatprep.subr.mxu0 0.0
        %2017 = vmatpush2.xpose.msra.mxu0 0.0
        %2018 = vmatprep.mubr.f32.mxu0 0.0
        %2019 = vmatmul.mubr.f32.gmra.mxu0 %v1950
        %v2020 = vpop.f32.mrf.mxu0
        %v2021 = vadd.f32 %v640, %v2020
        %v2022 = vpop.f32.mrf.mxu0
        %2023 = vdwg.mxu0
        %v2024 = vsel %vm644, %v1793, -inf
        %2025 = vmax.xlane.f32.xlu0 %v2024
        %v2026 = vpop.xlane.xlu0 %2025
        %v2027 = vsel %vm644, %v1869, -inf
        %2028 = vmax.xlane.f32.xlu0 %v2027
        %v2029 = vpop.xlane.xlu0 %2028
        %v2030 = vsel %vm644, %v1945, -inf
        %2031 = vmax.xlane.f32.xlu0 %v2030
        %v2032 = vpop.xlane.xlu0 %2031
        %v2033 = vsel %vm644, %v2021, -inf
        %2034 = vmax.xlane.f32.xlu0 %v2033
        %v2035 = vpop.xlane.xlu0 %2034
        %v2036 = vsub.f32 %v1793, %v2026
        %v2037 = vsub.f32 %v1869, %v2029
        %v2038 = vsub.f32 %v1945, %v2032
        %v2039 = vsub.f32 %v2021, %v2035
        %v2040 = vmul.f32 %v2036, 1.442695
        %v2041 = vpow.pop %v2040
        %v2042 = vmul.f32 %v2037, 1.442695
        %v2043 = vpow.pop %v2042
        %v2044 = vmul.f32 %v2038, 1.442695
        %v2045 = vpow.pop %v2044
        %v2046 = vmul.f32 %v2039, 1.442695
        %v2047 = vpow.pop %v2046
        %v2048 = vsel %vm644, %v2041, 0.0
        %2049 = vadd.xlane.f32.xlu0 %v2048
        %v2050 = vpop.xlane.xlu0 %2049
        %v2051 = vsel %vm644, %v2043, 0.0
        %2052 = vadd.xlane.f32.xlu0 %v2051
        %v2053 = vpop.xlane.xlu0 %2052
        %v2054 = vsel %vm644, %v2045, 0.0
        %2055 = vadd.xlane.f32.xlu0 %v2054
        %v2056 = vpop.xlane.xlu0 %2055
        %v2057 = vsel %vm644, %v2047, 0.0
        %2058 = vadd.xlane.f32.xlu0 %v2057
        %v2059 = vpop.xlane.xlu0 %2058
        %v2060 = vrcp.pop %v2050
        %v2061 = vrcp.pop %v2053
        %v2062 = vrcp.pop %v2056
        %v2063 = vrcp.pop %v2059
        %v2064 = vmul.f32 %v2041, %v2060
        %v2065 = vmul.f32 %v2043, %v2061
        %v2066 = vmul.f32 %v2045, %v2062
        %v2067 = vmul.f32 %v2047, %v2063
        %2068 = vrot.lane.b32.xlu0 %v1710, 64
        %v2069 = vpop.permute.xlu0 %2068
        %v2072 = vsel %vm644, %v2064, 0
        %2074 = vmatprep.subr.mxu0 0.0
        %2075 = vmatpush1.msra.mxu0 0.0
        %2076 = vmatprep.subr.mxu0 0.0
        %2077 = vmatpush1.msra.mxu0 0.0
        %2078 = vmatprep.subr.mxu0 0.0
        %2079 = vmatpush1.msra.mxu0 0.0
        %2080 = vmatprep.subr.mxu0 0.0
        %2081 = vmatpush1.msra.mxu0 0.0
        %2082 = vmatprep.subr.mxu0 0.0
        %2083 = vmatpush1.msra.mxu0 0.0
        %2084 = vmatprep.subr.mxu0 0.0
        %2085 = vmatpush1.msra.mxu0 0.0
        %2086 = vmatprep.subr.mxu0 0.0
        %2087 = vmatpush1.msra.mxu0 0.0
        %2088 = vmatprep.subr.mxu0 0.0
        %2089 = vmatpush1.msra.mxu0 0.0
        %2090 = vmatprep.subr.mxu0 0.0
        %2091 = vmatpush1.msra.mxu0 0.0
        %2092 = vmatprep.subr.mxu0 0.0
        %2093 = vmatpush1.msra.mxu0 0.0
        %2094 = vmatprep.subr.mxu0 0.0
        %2095 = vmatpush1.msra.mxu0 0.0
        %2096 = vmatprep.subr.mxu0 0.0
        %2097 = vmatpush1.msra.mxu0 0.0
        %2098 = vmatprep.subr.mxu0 0.0
        %2099 = vmatpush1.msra.mxu0 0.0
        %2100 = vmatprep.subr.mxu0 0.0
        %2101 = vmatpush1.msra.mxu0 0.0
        %2102 = vmatprep.subr.mxu0 0.0
        %2103 = vmatpush1.msra.mxu0 0.0
        %2104 = vmatprep.subr.mxu0 0.0
        %2105 = vmatpush1.msra.mxu0 %v2069
        %2106 = vmatprep.subr.mxu0 0.0
        %2107 = vmatpush2.msra.mxu0 0.0
        %2108 = vmatprep.subr.mxu0 0.0
        %2109 = vmatpush2.msra.mxu0 0.0
        %2110 = vmatprep.subr.mxu0 0.0
        %2111 = vmatpush2.msra.mxu0 0.0
        %2112 = vmatprep.subr.mxu0 0.0
        %2113 = vmatpush2.msra.mxu0 0.0
        %2114 = vmatprep.subr.mxu0 0.0
        %2115 = vmatpush2.msra.mxu0 0.0
        %2116 = vmatprep.subr.mxu0 0.0
        %2117 = vmatpush2.msra.mxu0 0.0
        %2118 = vmatprep.subr.mxu0 0.0
        %2119 = vmatpush2.msra.mxu0 0.0
        %2120 = vmatprep.subr.mxu0 0.0
        %2121 = vmatpush2.msra.mxu0 0.0
        %2122 = vmatprep.subr.mxu0 0.0
        %2123 = vmatpush2.msra.mxu0 0.0
        %2124 = vmatprep.subr.mxu0 0.0
        %2125 = vmatpush2.msra.mxu0 0.0
        %2126 = vmatprep.subr.mxu0 0.0
        %2127 = vmatpush2.msra.mxu0 0.0
        %2128 = vmatprep.subr.mxu0 0.0
        %2129 = vmatpush2.msra.mxu0 0.0
        %2130 = vmatprep.subr.mxu0 0.0
        %2131 = vmatpush2.msra.mxu0 0.0
        %2132 = vmatprep.subr.mxu0 0.0
        %2133 = vmatpush2.msra.mxu0 0.0
        %2134 = vmatprep.subr.mxu0 0.0
        %2135 = vmatpush2.msra.mxu0 0.0
        %2136 = vmatprep.subr.mxu0 0.0
        %2137 = vmatpush2.msra.mxu0 0.0
        %2138 = vmatprep.mubr.f32.mxu0 0.0
        %2139 = vmatmul.mubr.f32.gmra.mxu0 %v2072
        %v2140 = vpop.f32.mrf.mxu0
        %v2141 = vadd.f32 0.0, %v2140
        %v2142 = vpop.f32.mrf.mxu0
        %2143 = vdwg.mxu0
        %2144 = vrot.lane.b32.xlu0 %v1715, 64
        %v2145 = vpop.permute.xlu0 %2144
        %v2148 = vsel %vm644, %v2065, 0
        %2150 = vmatprep.subr.mxu0 0.0
        %2151 = vmatpush1.msra.mxu0 0.0
        %2152 = vmatprep.subr.mxu0 0.0
        %2153 = vmatpush1.msra.mxu0 0.0
        %2154 = vmatprep.subr.mxu0 0.0
        %2155 = vmatpush1.msra.mxu0 0.0
        %2156 = vmatprep.subr.mxu0 0.0
        %2157 = vmatpush1.msra.mxu0 0.0
        %2158 = vmatprep.subr.mxu0 0.0
        %2159 = vmatpush1.msra.mxu0 0.0
        %2160 = vmatprep.subr.mxu0 0.0
        %2161 = vmatpush1.msra.mxu0 0.0
        %2162 = vmatprep.subr.mxu0 0.0
        %2163 = vmatpush1.msra.mxu0 0.0
        %2164 = vmatprep.subr.mxu0 0.0
        %2165 = vmatpush1.msra.mxu0 0.0
        %2166 = vmatprep.subr.mxu0 0.0
        %2167 = vmatpush1.msra.mxu0 0.0
        %2168 = vmatprep.subr.mxu0 0.0
        %2169 = vmatpush1.msra.mxu0 0.0
        %2170 = vmatprep.subr.mxu0 0.0
        %2171 = vmatpush1.msra.mxu0 0.0
        %2172 = vmatprep.subr.mxu0 0.0
        %2173 = vmatpush1.msra.mxu0 0.0
        %2174 = vmatprep.subr.mxu0 0.0
        %2175 = vmatpush1.msra.mxu0 0.0
        %2176 = vmatprep.subr.mxu0 0.0
        %2177 = vmatpush1.msra.mxu0 0.0
        %2178 = vmatprep.subr.mxu0 0.0
        %2179 = vmatpush1.msra.mxu0 0.0
        %2180 = vmatprep.subr.mxu0 0.0
        %2181 = vmatpush1.msra.mxu0 %v2145
        %2182 = vmatprep.subr.mxu0 0.0
        %2183 = vmatpush2.msra.mxu0 0.0
        %2184 = vmatprep.subr.mxu0 0.0
        %2185 = vmatpush2.msra.mxu0 0.0
        %2186 = vmatprep.subr.mxu0 0.0
        %2187 = vmatpush2.msra.mxu0 0.0
        %2188 = vmatprep.subr.mxu0 0.0
        %2189 = vmatpush2.msra.mxu0 0.0
        %2190 = vmatprep.subr.mxu0 0.0
        %2191 = vmatpush2.msra.mxu0 0.0
        %2192 = vmatprep.subr.mxu0 0.0
        %2193 = vmatpush2.msra.mxu0 0.0
        %2194 = vmatprep.subr.mxu0 0.0
        %2195 = vmatpush2.msra.mxu0 0.0
        %2196 = vmatprep.subr.mxu0 0.0
        %2197 = vmatpush2.msra.mxu0 0.0
        %2198 = vmatprep.subr.mxu0 0.0
        %2199 = vmatpush2.msra.mxu0 0.0
        %2200 = vmatprep.subr.mxu0 0.0
        %2201 = vmatpush2.msra.mxu0 0.0
        %2202 = vmatprep.subr.mxu0 0.0
        %2203 = vmatpush2.msra.mxu0 0.0
        %2204 = vmatprep.subr.mxu0 0.0
        %2205 = vmatpush2.msra.mxu0 0.0
        %2206 = vmatprep.subr.mxu0 0.0
        %2207 = vmatpush2.msra.mxu0 0.0
        %2208 = vmatprep.subr.mxu0 0.0
        %2209 = vmatpush2.msra.mxu0 0.0
        %2210 = vmatprep.subr.mxu0 0.0
        %2211 = vmatpush2.msra.mxu0 0.0
        %2212 = vmatprep.subr.mxu0 0.0
        %2213 = vmatpush2.msra.mxu0 0.0
        %2214 = vmatprep.mubr.f32.mxu0 0.0
        %2215 = vmatmul.mubr.f32.gmra.mxu0 %v2148
        %v2216 = vpop.f32.mrf.mxu0
        %v2217 = vadd.f32 0.0, %v2216
        %v2218 = vpop.f32.mrf.mxu0
        %2219 = vdwg.mxu0
        %2220 = vrot.lane.b32.xlu0 %v1717, 64
        %v2221 = vpop.permute.xlu0 %2220
        %v2224 = vsel %vm644, %v2066, 0
        %2226 = vmatprep.subr.mxu0 0.0
        %2227 = vmatpush1.msra.mxu0 0.0
        %2228 = vmatprep.subr.mxu0 0.0
        %2229 = vmatpush1.msra.mxu0 0.0
        %2230 = vmatprep.subr.mxu0 0.0
        %2231 = vmatpush1.msra.mxu0 0.0
        %2232 = vmatprep.subr.mxu0 0.0
        %2233 = vmatpush1.msra.mxu0 0.0
        %2234 = vmatprep.subr.mxu0 0.0
        %2235 = vmatpush1.msra.mxu0 0.0
        %2236 = vmatprep.subr.mxu0 0.0
        %2237 = vmatpush1.msra.mxu0 0.0
        %2238 = vmatprep.subr.mxu0 0.0
        %2239 = vmatpush1.msra.mxu0 0.0
        %2240 = vmatprep.subr.mxu0 0.0
        %2241 = vmatpush1.msra.mxu0 0.0
        %2242 = vmatprep.subr.mxu0 0.0
        %2243 = vmatpush1.msra.mxu0 0.0
        %2244 = vmatprep.subr.mxu0 0.0
        %2245 = vmatpush1.msra.mxu0 0.0
        %2246 = vmatprep.subr.mxu0 0.0
        %2247 = vmatpush1.msra.mxu0 0.0
        %2248 = vmatprep.subr.mxu0 0.0
        %2249 = vmatpush1.msra.mxu0 0.0
        %2250 = vmatprep.subr.mxu0 0.0
        %2251 = vmatpush1.msra.mxu0 0.0
        %2252 = vmatprep.subr.mxu0 0.0
        %2253 = vmatpush1.msra.mxu0 0.0
        %2254 = vmatprep.subr.mxu0 0.0
        %2255 = vmatpush1.msra.mxu0 0.0
        %2256 = vmatprep.subr.mxu0 0.0
        %2257 = vmatpush1.msra.mxu0 %v2221
        %2258 = vmatprep.subr.mxu0 0.0
        %2259 = vmatpush2.msra.mxu0 0.0
        %2260 = vmatprep.subr.mxu0 0.0
        %2261 = vmatpush2.msra.mxu0 0.0
        %2262 = vmatprep.subr.mxu0 0.0
        %2263 = vmatpush2.msra.mxu0 0.0
        %2264 = vmatprep.subr.mxu0 0.0
        %2265 = vmatpush2.msra.mxu0 0.0
        %2266 = vmatprep.subr.mxu0 0.0
        %2267 = vmatpush2.msra.mxu0 0.0
        %2268 = vmatprep.subr.mxu0 0.0
        %2269 = vmatpush2.msra.mxu0 0.0
        %2270 = vmatprep.subr.mxu0 0.0
        %2271 = vmatpush2.msra.mxu0 0.0
        %2272 = vmatprep.subr.mxu0 0.0
        %2273 = vmatpush2.msra.mxu0 0.0
        %2274 = vmatprep.subr.mxu0 0.0
        %2275 = vmatpush2.msra.mxu0 0.0
        %2276 = vmatprep.subr.mxu0 0.0
        %2277 = vmatpush2.msra.mxu0 0.0
        %2278 = vmatprep.subr.mxu0 0.0
        %2279 = vmatpush2.msra.mxu0 0.0
        %2280 = vmatprep.subr.mxu0 0.0
        %2281 = vmatpush2.msra.mxu0 0.0
        %2282 = vmatprep.subr.mxu0 0.0
        %2283 = vmatpush2.msra.mxu0 0.0
        %2284 = vmatprep.subr.mxu0 0.0
        %2285 = vmatpush2.msra.mxu0 0.0
        %2286 = vmatprep.subr.mxu0 0.0
        %2287 = vmatpush2.msra.mxu0 0.0
        %2288 = vmatprep.subr.mxu0 0.0
        %2289 = vmatpush2.msra.mxu0 0.0
        %2290 = vmatprep.mubr.f32.mxu0 0.0
        %2291 = vmatmul.mubr.f32.gmra.mxu0 %v2224
        %v2292 = vpop.f32.mrf.mxu0
        %v2293 = vadd.f32 0.0, %v2292
        %v2294 = vpop.f32.mrf.mxu0
        %2295 = vdwg.mxu0
        %2296 = vrot.lane.b32.xlu0 %v1719, 64
        %v2297 = vpop.permute.xlu0 %2296
        %v2300 = vsel %vm644, %v2067, 0
        %2302 = vmatprep.subr.mxu0 0.0
        %2303 = vmatpush1.msra.mxu0 0.0
        %2304 = vmatprep.subr.mxu0 0.0
        %2305 = vmatpush1.msra.mxu0 0.0
        %2306 = vmatprep.subr.mxu0 0.0
        %2307 = vmatpush1.msra.mxu0 0.0
        %2308 = vmatprep.subr.mxu0 0.0
        %2309 = vmatpush1.msra.mxu0 0.0
        %2310 = vmatprep.subr.mxu0 0.0
        %2311 = vmatpush1.msra.mxu0 0.0
        %2312 = vmatprep.subr.mxu0 0.0
        %2313 = vmatpush1.msra.mxu0 0.0
        %2314 = vmatprep.subr.mxu0 0.0
        %2315 = vmatpush1.msra.mxu0 0.0
        %2316 = vmatprep.subr.mxu0 0.0
        %2317 = vmatpush1.msra.mxu0 0.0
        %2318 = vmatprep.subr.mxu0 0.0
        %2319 = vmatpush1.msra.mxu0 0.0
        %2320 = vmatprep.subr.mxu0 0.0
        %2321 = vmatpush1.msra.mxu0 0.0
        %2322 = vmatprep.subr.mxu0 0.0
        %2323 = vmatpush1.msra.mxu0 0.0
        %2324 = vmatprep.subr.mxu0 0.0
        %2325 = vmatpush1.msra.mxu0 0.0
        %2326 = vmatprep.subr.mxu0 0.0
        %2327 = vmatpush1.msra.mxu0 0.0
        %2328 = vmatprep.subr.mxu0 0.0
        %2329 = vmatpush1.msra.mxu0 0.0
        %2330 = vmatprep.subr.mxu0 0.0
        %2331 = vmatpush1.msra.mxu0 0.0
        %2332 = vmatprep.subr.mxu0 0.0
        %2333 = vmatpush1.msra.mxu0 %v2297
        %2334 = vmatprep.subr.mxu0 0.0
        %2335 = vmatpush2.msra.mxu0 0.0
        %2336 = vmatprep.subr.mxu0 0.0
        %2337 = vmatpush2.msra.mxu0 0.0
        %2338 = vmatprep.subr.mxu0 0.0
        %2339 = vmatpush2.msra.mxu0 0.0
        %2340 = vmatprep.subr.mxu0 0.0
        %2341 = vmatpush2.msra.mxu0 0.0
        %2342 = vmatprep.subr.mxu0 0.0
        %2343 = vmatpush2.msra.mxu0 0.0
        %2344 = vmatprep.subr.mxu0 0.0
        %2345 = vmatpush2.msra.mxu0 0.0
        %2346 = vmatprep.subr.mxu0 0.0
        %2347 = vmatpush2.msra.mxu0 0.0
        %2348 = vmatprep.subr.mxu0 0.0
        %2349 = vmatpush2.msra.mxu0 0.0
        %2350 = vmatprep.subr.mxu0 0.0
        %2351 = vmatpush2.msra.mxu0 0.0
        %2352 = vmatprep.subr.mxu0 0.0
        %2353 = vmatpush2.msra.mxu0 0.0
        %2354 = vmatprep.subr.mxu0 0.0
        %2355 = vmatpush2.msra.mxu0 0.0
        %2356 = vmatprep.subr.mxu0 0.0
        %2357 = vmatpush2.msra.mxu0 0.0
        %2358 = vmatprep.subr.mxu0 0.0
        %2359 = vmatpush2.msra.mxu0 0.0
        %2360 = vmatprep.subr.mxu0 0.0
        %2361 = vmatpush2.msra.mxu0 0.0
        %2362 = vmatprep.subr.mxu0 0.0
        %2363 = vmatpush2.msra.mxu0 0.0
        %2364 = vmatprep.subr.mxu0 0.0
        %2365 = vmatpush2.msra.mxu0 0.0
        %2366 = vmatprep.mubr.f32.mxu0 0.0
        %2367 = vmatmul.mubr.f32.gmra.mxu0 %v2300
        %v2368 = vpop.f32.mrf.mxu0
        %v2369 = vadd.f32 0.0, %v2368
        %v2370 = vpop.f32.mrf.mxu0
        %2371 = vdwg.mxu0
        %2373 = vrot.lane.b32.xlu0 %v2217, 8
        %v2374 = vpop.permute.xlu0 %2373
        %2377 = vrot.lane.b32.xlu0 %v2293, 16
        %v2378 = vpop.permute.xlu0 %2377
        %2381 = vrot.lane.b32.xlu0 %v2369, 24
        %v2382 = vpop.permute.xlu0 %2381
        %v2384 = vsel %vm644, %v2141, %v2374
        %v2385 = vsel %vm1308, %v2384, %v2378
        %v2386 = vsel %vm1310, %v2385, %v2382
        %s2387 = scalar_lea.vmem %s4, 32
        %v2388 = vld [vmem:[%s2387] sm:$0xff]
        %v2389 = vld [vmem:[%s2387 + $0x8] sm:$0xff]
        %v2390 = vld [vmem:[%s2387 + $0x10] sm:$0xff]
        %v2391 = vld [vmem:[%s2387 + $0x18] sm:$0xff]
        %s2392 = scalar_lea.vmem %s5, 1
        %v2393 = vld [vmem:[%s2392] sm:$0x1]
        %v2395 = vlaneseq
        %v2396 = vshrl.u32 %v2395, 7
        %v2397 = vsub.s32 0, %v2396
        %v2398 = vrot.slane %v2393, %v2397
        %v2401 = vsel %vm555, %v2386, 0
        %2403 = vmatprep.subr.mxu0 0.0
        %2404 = vmatpush1.msra.mxu0 0.0
        %2405 = vmatprep.subr.mxu0 0.0
        %2406 = vmatpush1.msra.mxu0 0.0
        %2407 = vmatprep.subr.mxu0 0.0
        %2408 = vmatpush1.msra.mxu0 0.0
        %2409 = vmatprep.subr.mxu0 0.0
        %2410 = vmatpush1.msra.mxu0 0.0
        %2411 = vmatprep.subr.mxu0 0.0
        %2412 = vmatpush1.msra.mxu0 0.0
        %2413 = vmatprep.subr.mxu0 0.0
        %2414 = vmatpush1.msra.mxu0 0.0
        %2415 = vmatprep.subr.mxu0 0.0
        %2416 = vmatpush1.msra.mxu0 0.0
        %2417 = vmatprep.subr.mxu0 0.0
        %2418 = vmatpush1.msra.mxu0 0.0
        %2419 = vmatprep.subr.mxu0 0.0
        %2420 = vmatpush1.msra.mxu0 0.0
        %2421 = vmatprep.subr.mxu0 0.0
        %2422 = vmatpush1.msra.mxu0 0.0
        %2423 = vmatprep.subr.mxu0 0.0
        %2424 = vmatpush1.msra.mxu0 0.0
        %2425 = vmatprep.subr.mxu0 0.0
        %2426 = vmatpush1.msra.mxu0 0.0
        %2427 = vmatprep.subr.mxu0 0.0
        %2428 = vmatpush1.msra.mxu0 %v2391
        %2429 = vmatprep.subr.mxu0 0.0
        %2430 = vmatpush1.msra.mxu0 %v2390
        %2431 = vmatprep.subr.mxu0 0.0
        %2432 = vmatpush1.msra.mxu0 %v2389
        %2433 = vmatprep.subr.mxu0 0.0
        %2434 = vmatpush1.msra.mxu0 %v2388
        %2435 = vmatprep.subr.mxu0 0.0
        %2436 = vmatpush2.msra.mxu0 0.0
        %2437 = vmatprep.subr.mxu0 0.0
        %2438 = vmatpush2.msra.mxu0 0.0
        %2439 = vmatprep.subr.mxu0 0.0
        %2440 = vmatpush2.msra.mxu0 0.0
        %2441 = vmatprep.subr.mxu0 0.0
        %2442 = vmatpush2.msra.mxu0 0.0
        %2443 = vmatprep.subr.mxu0 0.0
        %2444 = vmatpush2.msra.mxu0 0.0
        %2445 = vmatprep.subr.mxu0 0.0
        %2446 = vmatpush2.msra.mxu0 0.0
        %2447 = vmatprep.subr.mxu0 0.0
        %2448 = vmatpush2.msra.mxu0 0.0
        %2449 = vmatprep.subr.mxu0 0.0
        %2450 = vmatpush2.msra.mxu0 0.0
        %2451 = vmatprep.subr.mxu0 0.0
        %2452 = vmatpush2.msra.mxu0 0.0
        %2453 = vmatprep.subr.mxu0 0.0
        %2454 = vmatpush2.msra.mxu0 0.0
        %2455 = vmatprep.subr.mxu0 0.0
        %2456 = vmatpush2.msra.mxu0 0.0
        %2457 = vmatprep.subr.mxu0 0.0
        %2458 = vmatpush2.msra.mxu0 0.0
        %2459 = vmatprep.subr.mxu0 0.0
        %2460 = vmatpush2.msra.mxu0 0.0
        %2461 = vmatprep.subr.mxu0 0.0
        %2462 = vmatpush2.msra.mxu0 0.0
        %2463 = vmatprep.subr.mxu0 0.0
        %2464 = vmatpush2.msra.mxu0 0.0
        %2465 = vmatprep.subr.mxu0 0.0
        %2466 = vmatpush2.msra.mxu0 0.0
        %2467 = vmatprep.mubr.f32.mxu0 0.0
        %2468 = vmatmul.mubr.f32.gmra.mxu0 %v2401
        %v2469 = vpop.f32.mrf.mxu0
        %v2470 = vadd.f32 %v2398, %v2469
        %v2471 = vpop.f32.mrf.mxu0
        %2472 = vdwg.mxu0
        %v2473 = vadd.f32 %v1634, %v2470
        %s2474 = scalar_lea.vmem %s6, 1
        %v2475 = vld [vmem:[%s2474] sm:$0x1]
        %s2476 = scalar_lea.vmem %s7, 1
        %v2477 = vld [vmem:[%s2476] sm:$0x1]
        %v2478 = vsel %vm555, %v2473, 0.0
        %2479 = vadd.xlane.f32.xlu0 %v2478
        %v2480 = vpop.xlane.xlu0 %2479
        %v2481 = vmul.f32 %v2480, %v1402
        %v2482 = vsub.f32 %v2473, %v2481
        %v2483 = vmul.f32 %v2482, %v2482
        %v2484 = vsel %vm555, %v2483, 0.0
        %2485 = vadd.xlane.f32.xlu0 %v2484
        %v2486 = vpop.xlane.xlu0 %2485
        %v2487 = vmul.f32 %v2486, %v1402
        %v2488 = vadd.f32 %v2487, 1e-05
        %v2489 = vrsqrt.pop %v2488
        %v2490 = vmul.f32 %v2482, %v2489
        %v2492 = vlaneseq
        %v2493 = vshrl.u32 %v2492, 7
        %v2494 = vsub.s32 0, %v2493
        %v2495 = vrot.slane %v2475, %v2494
        %v2497 = vmul.f32 %v2490, %v2495
        %v2499 = vlaneseq
        %v2500 = vshrl.u32 %v2499, 7
        %v2501 = vsub.s32 0, %v2500
        %v2502 = vrot.slane %v2477, %v2501
        %v2504 = vadd.f32 %v2497, %v2502
        %s2505 = scalar_lea.vmem %s8, 32
        %v2506 = vld [vmem:[%s2505] sm:$0xff]
        %v2507 = vld [vmem:[%s2505 + $0x8] sm:$0xff]
        %v2508 = vld [vmem:[%s2505 + $0x10] sm:$0xff]
        %v2509 = vld [vmem:[%s2505 + $0x18] sm:$0xff]
        %s2510 = scalar_lea.vmem %s9, 1
        %v2511 = vld [vmem:[%s2510] sm:$0x1]
        %v2513 = vlaneseq
        %v2514 = vshrl.u32 %v2513, 7
        %v2515 = vsub.s32 0, %v2514
        %v2516 = vrot.slane %v2511, %v2515
        %v2519 = vsel %vm555, %v2504, 0
        %2521 = vmatprep.subr.mxu0 0.0
        %2522 = vmatpush1.msra.mxu0 0.0
        %2523 = vmatprep.subr.mxu0 0.0
        %2524 = vmatpush1.msra.mxu0 0.0
        %2525 = vmatprep.subr.mxu0 0.0
        %2526 = vmatpush1.msra.mxu0 0.0
        %2527 = vmatprep.subr.mxu0 0.0
        %2528 = vmatpush1.msra.mxu0 0.0
        %2529 = vmatprep.subr.mxu0 0.0
        %2530 = vmatpush1.msra.mxu0 0.0
        %2531 = vmatprep.subr.mxu0 0.0
        %2532 = vmatpush1.msra.mxu0 0.0
        %2533 = vmatprep.subr.mxu0 0.0
        %2534 = vmatpush1.msra.mxu0 0.0
        %2535 = vmatprep.subr.mxu0 0.0
        %2536 = vmatpush1.msra.mxu0 0.0
        %2537 = vmatprep.subr.mxu0 0.0
        %2538 = vmatpush1.msra.mxu0 0.0
        %2539 = vmatprep.subr.mxu0 0.0
        %2540 = vmatpush1.msra.mxu0 0.0
        %2541 = vmatprep.subr.mxu0 0.0
        %2542 = vmatpush1.msra.mxu0 0.0
        %2543 = vmatprep.subr.mxu0 0.0
        %2544 = vmatpush1.msra.mxu0 0.0
        %2545 = vmatprep.subr.mxu0 0.0
        %2546 = vmatpush1.msra.mxu0 %v2509
        %2547 = vmatprep.subr.mxu0 0.0
        %2548 = vmatpush1.msra.mxu0 %v2508
        %2549 = vmatprep.subr.mxu0 0.0
        %2550 = vmatpush1.msra.mxu0 %v2507
        %2551 = vmatprep.subr.mxu0 0.0
        %2552 = vmatpush1.msra.mxu0 %v2506
        %2553 = vmatprep.subr.mxu0 0.0
        %2554 = vmatpush2.msra.mxu0 0.0
        %2555 = vmatprep.subr.mxu0 0.0
        %2556 = vmatpush2.msra.mxu0 0.0
        %2557 = vmatprep.subr.mxu0 0.0
        %2558 = vmatpush2.msra.mxu0 0.0
        %2559 = vmatprep.subr.mxu0 0.0
        %2560 = vmatpush2.msra.mxu0 0.0
        %2561 = vmatprep.subr.mxu0 0.0
        %2562 = vmatpush2.msra.mxu0 0.0
        %2563 = vmatprep.subr.mxu0 0.0
        %2564 = vmatpush2.msra.mxu0 0.0
        %2565 = vmatprep.subr.mxu0 0.0
        %2566 = vmatpush2.msra.mxu0 0.0
        %2567 = vmatprep.subr.mxu0 0.0
        %2568 = vmatpush2.msra.mxu0 0.0
        %2569 = vmatprep.subr.mxu0 0.0
        %2570 = vmatpush2.msra.mxu0 0.0
        %2571 = vmatprep.subr.mxu0 0.0
        %2572 = vmatpush2.msra.mxu0 0.0
        %2573 = vmatprep.subr.mxu0 0.0
        %2574 = vmatpush2.msra.mxu0 0.0
        %2575 = vmatprep.subr.mxu0 0.0
        %2576 = vmatpush2.msra.mxu0 0.0
        %2577 = vmatprep.subr.mxu0 0.0
        %2578 = vmatpush2.msra.mxu0 0.0
        %2579 = vmatprep.subr.mxu0 0.0
        %2580 = vmatpush2.msra.mxu0 0.0
        %2581 = vmatprep.subr.mxu0 0.0
        %2582 = vmatpush2.msra.mxu0 0.0
        %2583 = vmatprep.subr.mxu0 0.0
        %2584 = vmatpush2.msra.mxu0 0.0
        %2585 = vmatprep.mubr.f32.mxu0 0.0
        %2586 = vmatmul.mubr.f32.gmra.mxu0 %v2519
        %v2587 = vpop.f32.mrf.mxu0
        %v2588 = vadd.f32 %v2516, %v2587
        %v2589 = vpop.f32.mrf.mxu0
        %2590 = vdwg.mxu0
        %v2591 = vmax.f32 %v2588, 0.0
        %s2592 = scalar_lea.vmem %s10, 128
        %v2593 = vld [vmem:[%s2592] sm:$0xff]
        %v2594 = vld [vmem:[%s2592 + $0x8] sm:$0xff]
        %v2595 = vld [vmem:[%s2592 + $0x10] sm:$0xff]
        %v2596 = vld [vmem:[%s2592 + $0x18] sm:$0xff]
        %v2597 = vld [vmem:[%s2592 + $0x20] sm:$0xff]
        %v2598 = vld [vmem:[%s2592 + $0x28] sm:$0xff]
        %v2599 = vld [vmem:[%s2592 + $0x30] sm:$0xff]
        %v2600 = vld [vmem:[%s2592 + $0x38] sm:$0xff]
        %v2601 = vld [vmem:[%s2592 + $0x40] sm:$0xff]
        %v2602 = vld [vmem:[%s2592 + $0x48] sm:$0xff]
        %v2603 = vld [vmem:[%s2592 + $0x50] sm:$0xff]
        %v2604 = vld [vmem:[%s2592 + $0x58] sm:$0xff]
        %v2605 = vld [vmem:[%s2592 + $0x60] sm:$0xff]
        %v2606 = vld [vmem:[%s2592 + $0x68] sm:$0xff]
        %v2607 = vld [vmem:[%s2592 + $0x70] sm:$0xff]
        %v2608 = vld [vmem:[%s2592 + $0x78] sm:$0xff]
        %s2609 = scalar_lea.vmem %s11, 1
        %v2610 = vld [vmem:[%s2609] sm:$0x1]
        %v2612 = vlaneseq
        %v2613 = vshrl.u32 %v2612, 7
        %v2614 = vsub.s32 0, %v2613
        %v2615 = vrot.slane %v2610, %v2614
        %2617 = vmatprep.subr.mxu0 0.0
        %2618 = vmatpush1.msra.mxu0 %v2608
        %2619 = vmatprep.subr.mxu0 0.0
        %2620 = vmatpush1.msra.mxu0 %v2607
        %2621 = vmatprep.subr.mxu0 0.0
        %2622 = vmatpush1.msra.mxu0 %v2606
        %2623 = vmatprep.subr.mxu0 0.0
        %2624 = vmatpush1.msra.mxu0 %v2605
        %2625 = vmatprep.subr.mxu0 0.0
        %2626 = vmatpush1.msra.mxu0 %v2604
        %2627 = vmatprep.subr.mxu0 0.0
        %2628 = vmatpush1.msra.mxu0 %v2603
        %2629 = vmatprep.subr.mxu0 0.0
        %2630 = vmatpush1.msra.mxu0 %v2602
        %2631 = vmatprep.subr.mxu0 0.0
        %2632 = vmatpush1.msra.mxu0 %v2601
        %2633 = vmatprep.subr.mxu0 0.0
        %2634 = vmatpush1.msra.mxu0 %v2600
        %2635 = vmatprep.subr.mxu0 0.0
        %2636 = vmatpush1.msra.mxu0 %v2599
        %2637 = vmatprep.subr.mxu0 0.0
        %2638 = vmatpush1.msra.mxu0 %v2598
        %2639 = vmatprep.subr.mxu0 0.0
        %2640 = vmatpush1.msra.mxu0 %v2597
        %2641 = vmatprep.subr.mxu0 0.0
        %2642 = vmatpush1.msra.mxu0 %v2596
        %2643 = vmatprep.subr.mxu0 0.0
        %2644 = vmatpush1.msra.mxu0 %v2595
        %2645 = vmatprep.subr.mxu0 0.0
        %2646 = vmatpush1.msra.mxu0 %v2594
        %2647 = vmatprep.subr.mxu0 0.0
        %2648 = vmatpush1.msra.mxu0 %v2593
        %2649 = vmatprep.subr.mxu0 0.0
        %2650 = vmatpush2.msra.mxu0 0.0
        %2651 = vmatprep.subr.mxu0 0.0
        %2652 = vmatpush2.msra.mxu0 0.0
        %2653 = vmatprep.subr.mxu0 0.0
        %2654 = vmatpush2.msra.mxu0 0.0
        %2655 = vmatprep.subr.mxu0 0.0
        %2656 = vmatpush2.msra.mxu0 0.0
        %2657 = vmatprep.subr.mxu0 0.0
        %2658 = vmatpush2.msra.mxu0 0.0
        %2659 = vmatprep.subr.mxu0 0.0
        %2660 = vmatpush2.msra.mxu0 0.0
        %2661 = vmatprep.subr.mxu0 0.0
        %2662 = vmatpush2.msra.mxu0 0.0
        %2663 = vmatprep.subr.mxu0 0.0
        %2664 = vmatpush2.msra.mxu0 0.0
        %2665 = vmatprep.subr.mxu0 0.0
        %2666 = vmatpush2.msra.mxu0 0.0
        %2667 = vmatprep.subr.mxu0 0.0
        %2668 = vmatpush2.msra.mxu0 0.0
        %2669 = vmatprep.subr.mxu0 0.0
        %2670 = vmatpush2.msra.mxu0 0.0
        %2671 = vmatprep.subr.mxu0 0.0
        %2672 = vmatpush2.msra.mxu0 0.0
        %2673 = vmatprep.subr.mxu0 0.0
        %2674 = vmatpush2.msra.mxu0 0.0
        %2675 = vmatprep.subr.mxu0 0.0
        %2676 = vmatpush2.msra.mxu0 0.0
        %2677 = vmatprep.subr.mxu0 0.0
        %2678 = vmatpush2.msra.mxu0 0.0
        %2679 = vmatprep.subr.mxu0 0.0
        %2680 = vmatpush2.msra.mxu0 0.0
        %2681 = vmatprep.mubr.f32.mxu0 0.0
        %2682 = vmatmul.mubr.f32.gmra.mxu0 %v2591
        %v2683 = vpop.f32.mrf.mxu0
        %v2684 = vadd.f32 %v2615, %v2683
        %v2685 = vpop.f32.mrf.mxu0
        %2686 = vdwg.mxu0
        %v2687 = vadd.f32 %v2504, %v2684
        %s2688 = scalar_lea.vmem %s12, 1
        %v2689 = vld [vmem:[%s2688] sm:$0x1]
        %s2690 = scalar_lea.vmem %s13, 1
        %v2691 = vld [vmem:[%s2690] sm:$0x1]
        %v2692 = vsel %vm555, %v2687, 0.0
        %2693 = vadd.xlane.f32.xlu0 %v2692
        %v2694 = vpop.xlane.xlu0 %2693
        %v2695 = vmul.f32 %v2694, %v1402
        %v2696 = vsub.f32 %v2687, %v2695
        %v2697 = vmul.f32 %v2696, %v2696
        %v2698 = vsel %vm555, %v2697, 0.0
        %2699 = vadd.xlane.f32.xlu0 %v2698
        %v2700 = vpop.xlane.xlu0 %2699
        %v2701 = vmul.f32 %v2700, %v1402
        %v2702 = vadd.f32 %v2701, 1e-05
        %v2703 = vrsqrt.pop %v2702
        %v2704 = vmul.f32 %v2696, %v2703
        %v2706 = vlaneseq
        %v2707 = vshrl.u32 %v2706, 7
        %v2708 = vsub.s32 0, %v2707
        %v2709 = vrot.slane %v2689, %v2708
        %v2711 = vmul.f32 %v2704, %v2709
        %v2713 = vlaneseq
        %v2714 = vshrl.u32 %v2713, 7
        %v2715 = vsub.s32 0, %v2714
        %v2716 = vrot.slane %v2691, %v2715
        %v2718 = vadd.f32 %v2711, %v2716
        %s2719 = scalar_lea.vmem %s3, 64
        %v2720 = vld [vmem:[%s2719] sm:$0xff]
        %v2721 = vld [vmem:[%s2719 + $0x8] sm:$0xff]
        %v2722 = vld [vmem:[%s2719 + $0x10] sm:$0xff]
        %v2723 = vld [vmem:[%s2719 + $0x18] sm:$0xff]
        %v2725 = vsel %vm555, %v2718, 0
        %2727 = vmatprep.subr.mxu0 0.0
        %2728 = vmatpush1.msra.mxu0 0.0
        %2729 = vmatprep.subr.mxu0 0.0
        %2730 = vmatpush1.msra.mxu0 0.0
        %2731 = vmatprep.subr.mxu0 0.0
        %2732 = vmatpush1.msra.mxu0 0.0
        %2733 = vmatprep.subr.mxu0 0.0
        %2734 = vmatpush1.msra.mxu0 0.0
        %2735 = vmatprep.subr.mxu0 0.0
        %2736 = vmatpush1.msra.mxu0 0.0
        %2737 = vmatprep.subr.mxu0 0.0
        %2738 = vmatpush1.msra.mxu0 0.0
        %2739 = vmatprep.subr.mxu0 0.0
        %2740 = vmatpush1.msra.mxu0 0.0
        %2741 = vmatprep.subr.mxu0 0.0
        %2742 = vmatpush1.msra.mxu0 0.0
        %2743 = vmatprep.subr.mxu0 0.0
        %2744 = vmatpush1.msra.mxu0 0.0
        %2745 = vmatprep.subr.mxu0 0.0
        %2746 = vmatpush1.msra.mxu0 0.0
        %2747 = vmatprep.subr.mxu0 0.0
        %2748 = vmatpush1.msra.mxu0 0.0
        %2749 = vmatprep.subr.mxu0 0.0
        %2750 = vmatpush1.msra.mxu0 0.0
        %2751 = vmatprep.subr.mxu0 0.0
        %2752 = vmatpush1.msra.mxu0 %v2723
        %2753 = vmatprep.subr.mxu0 0.0
        %2754 = vmatpush1.msra.mxu0 %v2722
        %2755 = vmatprep.subr.mxu0 0.0
        %2756 = vmatpush1.msra.mxu0 %v2721
        %2757 = vmatprep.subr.mxu0 0.0
        %2758 = vmatpush1.msra.mxu0 %v2720
        %2759 = vmatprep.subr.mxu0 0.0
        %2760 = vmatpush2.msra.mxu0 0.0
        %2761 = vmatprep.subr.mxu0 0.0
        %2762 = vmatpush2.msra.mxu0 0.0
        %2763 = vmatprep.subr.mxu0 0.0
        %2764 = vmatpush2.msra.mxu0 0.0
        %2765 = vmatprep.subr.mxu0 0.0
        %2766 = vmatpush2.msra.mxu0 0.0
        %2767 = vmatprep.subr.mxu0 0.0
        %2768 = vmatpush2.msra.mxu0 0.0
        %2769 = vmatprep.subr.mxu0 0.0
        %2770 = vmatpush2.msra.mxu0 0.0
        %2771 = vmatprep.subr.mxu0 0.0
        %2772 = vmatpush2.msra.mxu0 0.0
        %2773 = vmatprep.subr.mxu0 0.0
        %2774 = vmatpush2.msra.mxu0 0.0
        %2775 = vmatprep.subr.mxu0 0.0
        %2776 = vmatpush2.msra.mxu0 0.0
        %2777 = vmatprep.subr.mxu0 0.0
        %2778 = vmatpush2.msra.mxu0 0.0
        %2779 = vmatprep.subr.mxu0 0.0
        %2780 = vmatpush2.msra.mxu0 0.0
        %2781 = vmatprep.subr.mxu0 0.0
        %2782 = vmatpush2.msra.mxu0 0.0
        %2783 = vmatprep.subr.mxu0 0.0
        %2784 = vmatpush2.msra.mxu0 0.0
        %2785 = vmatprep.subr.mxu0 0.0
        %2786 = vmatpush2.msra.mxu0 0.0
        %2787 = vmatprep.subr.mxu0 0.0
        %2788 = vmatpush2.msra.mxu0 0.0
        %2789 = vmatprep.subr.mxu0 0.0
        %2790 = vmatpush2.msra.mxu0 0.0
        %2791 = vmatprep.mubr.f32.mxu0 0.0
        %2792 = vmatmul.mubr.f32.gmra.mxu0 %v2725
        %v2793 = vpop.f32.mrf.mxu0
        %v2794 = vadd.f32 0.0, %v2793
        %v2795 = vpop.f32.mrf.mxu0
        %2796 = vdwg.mxu0
        %2798 = vrot.lane.b32.xlu0 %v2794, 120
        %v2799 = vpop.permute.xlu0 %2798
        %2800 = vrot.lane.b32.xlu0 %v2794, 112
        %v2801 = vpop.permute.xlu0 %2800
        %2802 = vrot.lane.b32.xlu0 %v2794, 104
        %v2803 = vpop.permute.xlu0 %2802
        %2804 = vrot.lane.b32.xlu0 %v2794, 96
        %v2805 = vpop.permute.xlu0 %2804
        %v2806 = vsel %vm644, %v2794, 0
        %v2808 = vsel %vm644, %v2805, 0
        %2810 = vmatprep.subr.mxu0 0.0
        %2811 = vmatpush1.xpose.msra.mxu0 0.0
        %2812 = vmatprep.subr.mxu0 0.0
        %2813 = vmatpush1.xpose.msra.mxu0 0.0
        %2814 = vmatprep.subr.mxu0 0.0
        %2815 = vmatpush1.xpose.msra.mxu0 0.0
        %2816 = vmatprep.subr.mxu0 0.0
        %2817 = vmatpush1.xpose.msra.mxu0 0.0
        %2818 = vmatprep.subr.mxu0 0.0
        %2819 = vmatpush1.xpose.msra.mxu0 0.0
        %2820 = vmatprep.subr.mxu0 0.0
        %2821 = vmatpush1.xpose.msra.mxu0 0.0
        %2822 = vmatprep.subr.mxu0 0.0
        %2823 = vmatpush1.xpose.msra.mxu0 0.0
        %2824 = vmatprep.subr.mxu0 0.0
        %2825 = vmatpush1.xpose.msra.mxu0 0.0
        %2826 = vmatprep.subr.mxu0 0.0
        %2827 = vmatpush1.xpose.msra.mxu0 0.0
        %2828 = vmatprep.subr.mxu0 0.0
        %2829 = vmatpush1.xpose.msra.mxu0 0.0
        %2830 = vmatprep.subr.mxu0 0.0
        %2831 = vmatpush1.xpose.msra.mxu0 0.0
        %2832 = vmatprep.subr.mxu0 0.0
        %2833 = vmatpush1.xpose.msra.mxu0 0.0
        %2834 = vmatprep.subr.mxu0 0.0
        %2835 = vmatpush1.xpose.msra.mxu0 0.0
        %2836 = vmatprep.subr.mxu0 0.0
        %2837 = vmatpush1.xpose.msra.mxu0 0.0
        %2838 = vmatprep.subr.mxu0 0.0
        %2839 = vmatpush1.xpose.msra.mxu0 0.0
        %2840 = vmatprep.subr.mxu0 0.0
        %2841 = vmatpush1.xpose.msra.mxu0 %v2808
        %2842 = vmatprep.subr.mxu0 0.0
        %2843 = vmatpush2.xpose.msra.mxu0 0.0
        %2844 = vmatprep.subr.mxu0 0.0
        %2845 = vmatpush2.xpose.msra.mxu0 0.0
        %2846 = vmatprep.subr.mxu0 0.0
        %2847 = vmatpush2.xpose.msra.mxu0 0.0
        %2848 = vmatprep.subr.mxu0 0.0
        %2849 = vmatpush2.xpose.msra.mxu0 0.0
        %2850 = vmatprep.subr.mxu0 0.0
        %2851 = vmatpush2.xpose.msra.mxu0 0.0
        %2852 = vmatprep.subr.mxu0 0.0
        %2853 = vmatpush2.xpose.msra.mxu0 0.0
        %2854 = vmatprep.subr.mxu0 0.0
        %2855 = vmatpush2.xpose.msra.mxu0 0.0
        %2856 = vmatprep.subr.mxu0 0.0
        %2857 = vmatpush2.xpose.msra.mxu0 0.0
        %2858 = vmatprep.subr.mxu0 0.0
        %2859 = vmatpush2.xpose.msra.mxu0 0.0
        %2860 = vmatprep.subr.mxu0 0.0
        %2861 = vmatpush2.xpose.msra.mxu0 0.0
        %2862 = vmatprep.subr.mxu0 0.0
        %2863 = vmatpush2.xpose.msra.mxu0 0.0
        %2864 = vmatprep.subr.mxu0 0.0
        %2865 = vmatpush2.xpose.msra.mxu0 0.0
        %2866 = vmatprep.subr.mxu0 0.0
        %2867 = vmatpush2.xpose.msra.mxu0 0.0
        %2868 = vmatprep.subr.mxu0 0.0
        %2869 = vmatpush2.xpose.msra.mxu0 0.0
        %2870 = vmatprep.subr.mxu0 0.0
        %2871 = vmatpush2.xpose.msra.mxu0 0.0
        %2872 = vmatprep.subr.mxu0 0.0
        %2873 = vmatpush2.xpose.msra.mxu0 0.0
        %2874 = vmatprep.mubr.f32.mxu0 0.0
        %2875 = vmatmul.mubr.f32.gmra.mxu0 %v2806
        %v2876 = vpop.f32.mrf.mxu0
        %v2877 = vadd.f32 %v640, %v2876
        %v2878 = vpop.f32.mrf.mxu0
        %2879 = vdwg.mxu0
        %2880 = vrot.lane.b32.xlu0 %v2799, 96
        %v2881 = vpop.permute.xlu0 %2880
        %v2882 = vsel %vm644, %v2799, 0
        %v2884 = vsel %vm644, %v2881, 0
        %2886 = vmatprep.subr.mxu0 0.0
        %2887 = vmatpush1.xpose.msra.mxu0 0.0
        %2888 = vmatprep.subr.mxu0 0.0
        %2889 = vmatpush1.xpose.msra.mxu0 0.0
        %2890 = vmatprep.subr.mxu0 0.0
        %2891 = vmatpush1.xpose.msra.mxu0 0.0
        %2892 = vmatprep.subr.mxu0 0.0
        %2893 = vmatpush1.xpose.msra.mxu0 0.0
        %2894 = vmatprep.subr.mxu0 0.0
        %2895 = vmatpush1.xpose.msra.mxu0 0.0
        %2896 = vmatprep.subr.mxu0 0.0
        %2897 = vmatpush1.xpose.msra.mxu0 0.0
        %2898 = vmatprep.subr.mxu0 0.0
        %2899 = vmatpush1.xpose.msra.mxu0 0.0
        %2900 = vmatprep.subr.mxu0 0.0
        %2901 = vmatpush1.xpose.msra.mxu0 0.0
        %2902 = vmatprep.subr.mxu0 0.0
        %2903 = vmatpush1.xpose.msra.mxu0 0.0
        %2904 = vmatprep.subr.mxu0 0.0
        %2905 = vmatpush1.xpose.msra.mxu0 0.0
        %2906 = vmatprep.subr.mxu0 0.0
        %2907 = vmatpush1.xpose.msra.mxu0 0.0
        %2908 = vmatprep.subr.mxu0 0.0
        %2909 = vmatpush1.xpose.msra.mxu0 0.0
        %2910 = vmatprep.subr.mxu0 0.0
        %2911 = vmatpush1.xpose.msra.mxu0 0.0
        %2912 = vmatprep.subr.mxu0 0.0
        %2913 = vmatpush1.xpose.msra.mxu0 0.0
        %2914 = vmatprep.subr.mxu0 0.0
        %2915 = vmatpush1.xpose.msra.mxu0 0.0
        %2916 = vmatprep.subr.mxu0 0.0
        %2917 = vmatpush1.xpose.msra.mxu0 %v2884
        %2918 = vmatprep.subr.mxu0 0.0
        %2919 = vmatpush2.xpose.msra.mxu0 0.0
        %2920 = vmatprep.subr.mxu0 0.0
        %2921 = vmatpush2.xpose.msra.mxu0 0.0
        %2922 = vmatprep.subr.mxu0 0.0
        %2923 = vmatpush2.xpose.msra.mxu0 0.0
        %2924 = vmatprep.subr.mxu0 0.0
        %2925 = vmatpush2.xpose.msra.mxu0 0.0
        %2926 = vmatprep.subr.mxu0 0.0
        %2927 = vmatpush2.xpose.msra.mxu0 0.0
        %2928 = vmatprep.subr.mxu0 0.0
        %2929 = vmatpush2.xpose.msra.mxu0 0.0
        %2930 = vmatprep.subr.mxu0 0.0
        %2931 = vmatpush2.xpose.msra.mxu0 0.0
        %2932 = vmatprep.subr.mxu0 0.0
        %2933 = vmatpush2.xpose.msra.mxu0 0.0
        %2934 = vmatprep.subr.mxu0 0.0
        %2935 = vmatpush2.xpose.msra.mxu0 0.0
        %2936 = vmatprep.subr.mxu0 0.0
        %2937 = vmatpush2.xpose.msra.mxu0 0.0
        %2938 = vmatprep.subr.mxu0 0.0
        %2939 = vmatpush2.xpose.msra.mxu0 0.0
        %2940 = vmatprep.subr.mxu0 0.0
        %2941 = vmatpush2.xpose.msra.mxu0 0.0
        %2942 = vmatprep.subr.mxu0 0.0
        %2943 = vmatpush2.xpose.msra.mxu0 0.0
        %2944 = vmatprep.subr.mxu0 0.0
        %2945 = vmatpush2.xpose.msra.mxu0 0.0
        %2946 = vmatprep.subr.mxu0 0.0
        %2947 = vmatpush2.xpose.msra.mxu0 0.0
        %2948 = vmatprep.subr.mxu0 0.0
        %2949 = vmatpush2.xpose.msra.mxu0 0.0
        %2950 = vmatprep.mubr.f32.mxu0 0.0
        %2951 = vmatmul.mubr.f32.gmra.mxu0 %v2882
        %v2952 = vpop.f32.mrf.mxu0
        %v2953 = vadd.f32 %v640, %v2952
        %v2954 = vpop.f32.mrf.mxu0
        %2955 = vdwg.mxu0
        %2956 = vrot.lane.b32.xlu0 %v2801, 96
        %v2957 = vpop.permute.xlu0 %2956
        %v2958 = vsel %vm644, %v2801, 0
        %v2960 = vsel %vm644, %v2957, 0
        %2962 = vmatprep.subr.mxu0 0.0
        %2963 = vmatpush1.xpose.msra.mxu0 0.0
        %2964 = vmatprep.subr.mxu0 0.0
        %2965 = vmatpush1.xpose.msra.mxu0 0.0
        %2966 = vmatprep.subr.mxu0 0.0
        %2967 = vmatpush1.xpose.msra.mxu0 0.0
        %2968 = vmatprep.subr.mxu0 0.0
        %2969 = vmatpush1.xpose.msra.mxu0 0.0
        %2970 = vmatprep.subr.mxu0 0.0
        %2971 = vmatpush1.xpose.msra.mxu0 0.0
        %2972 = vmatprep.subr.mxu0 0.0
        %2973 = vmatpush1.xpose.msra.mxu0 0.0
        %2974 = vmatprep.subr.mxu0 0.0
        %2975 = vmatpush1.xpose.msra.mxu0 0.0
        %2976 = vmatprep.subr.mxu0 0.0
        %2977 = vmatpush1.xpose.msra.mxu0 0.0
        %2978 = vmatprep.subr.mxu0 0.0
        %2979 = vmatpush1.xpose.msra.mxu0 0.0
        %2980 = vmatprep.subr.mxu0 0.0
        %2981 = vmatpush1.xpose.msra.mxu0 0.0
        %2982 = vmatprep.subr.mxu0 0.0
        %2983 = vmatpush1.xpose.msra.mxu0 0.0
        %2984 = vmatprep.subr.mxu0 0.0
        %2985 = vmatpush1.xpose.msra.mxu0 0.0
        %2986 = vmatprep.subr.mxu0 0.0
        %2987 = vmatpush1.xpose.msra.mxu0 0.0
        %2988 = vmatprep.subr.mxu0 0.0
        %2989 = vmatpush1.xpose.msra.mxu0 0.0
        %2990 = vmatprep.subr.mxu0 0.0
        %2991 = vmatpush1.xpose.msra.mxu0 0.0
        %2992 = vmatprep.subr.mxu0 0.0
        %2993 = vmatpush1.xpose.msra.mxu0 %v2960
        %2994 = vmatprep.subr.mxu0 0.0
        %2995 = vmatpush2.xpose.msra.mxu0 0.0
        %2996 = vmatprep.subr.mxu0 0.0
        %2997 = vmatpush2.xpose.msra.mxu0 0.0
        %2998 = vmatprep.subr.mxu0 0.0
        %2999 = vmatpush2.xpose.msra.mxu0 0.0
        %3000 = vmatprep.subr.mxu0 0.0
        %3001 = vmatpush2.xpose.msra.mxu0 0.0
        %3002 = vmatprep.subr.mxu0 0.0
        %3003 = vmatpush2.xpose.msra.mxu0 0.0
        %3004 = vmatprep.subr.mxu0 0.0
        %3005 = vmatpush2.xpose.msra.mxu0 0.0
        %3006 = vmatprep.subr.mxu0 0.0
        %3007 = vmatpush2.xpose.msra.mxu0 0.0
        %3008 = vmatprep.subr.mxu0 0.0
        %3009 = vmatpush2.xpose.msra.mxu0 0.0
        %3010 = vmatprep.subr.mxu0 0.0
        %3011 = vmatpush2.xpose.msra.mxu0 0.0
        %3012 = vmatprep.subr.mxu0 0.0
        %3013 = vmatpush2.xpose.msra.mxu0 0.0
        %3014 = vmatprep.subr.mxu0 0.0
        %3015 = vmatpush2.xpose.msra.mxu0 0.0
        %3016 = vmatprep.subr.mxu0 0.0
        %3017 = vmatpush2.xpose.msra.mxu0 0.0
        %3018 = vmatprep.subr.mxu0 0.0
        %3019 = vmatpush2.xpose.msra.mxu0 0.0
        %3020 = vmatprep.subr.mxu0 0.0
        %3021 = vmatpush2.xpose.msra.mxu0 0.0
        %3022 = vmatprep.subr.mxu0 0.0
        %3023 = vmatpush2.xpose.msra.mxu0 0.0
        %3024 = vmatprep.subr.mxu0 0.0
        %3025 = vmatpush2.xpose.msra.mxu0 0.0
        %3026 = vmatprep.mubr.f32.mxu0 0.0
        %3027 = vmatmul.mubr.f32.gmra.mxu0 %v2958
        %v3028 = vpop.f32.mrf.mxu0
        %v3029 = vadd.f32 %v640, %v3028
        %v3030 = vpop.f32.mrf.mxu0
        %3031 = vdwg.mxu0
        %3032 = vrot.lane.b32.xlu0 %v2803, 96
        %v3033 = vpop.permute.xlu0 %3032
        %v3034 = vsel %vm644, %v2803, 0
        %v3036 = vsel %vm644, %v3033, 0
        %3038 = vmatprep.subr.mxu0 0.0
        %3039 = vmatpush1.xpose.msra.mxu0 0.0
        %3040 = vmatprep.subr.mxu0 0.0
        %3041 = vmatpush1.xpose.msra.mxu0 0.0
        %3042 = vmatprep.subr.mxu0 0.0
        %3043 = vmatpush1.xpose.msra.mxu0 0.0
        %3044 = vmatprep.subr.mxu0 0.0
        %3045 = vmatpush1.xpose.msra.mxu0 0.0
        %3046 = vmatprep.subr.mxu0 0.0
        %3047 = vmatpush1.xpose.msra.mxu0 0.0
        %3048 = vmatprep.subr.mxu0 0.0
        %3049 = vmatpush1.xpose.msra.mxu0 0.0
        %3050 = vmatprep.subr.mxu0 0.0
        %3051 = vmatpush1.xpose.msra.mxu0 0.0
        %3052 = vmatprep.subr.mxu0 0.0
        %3053 = vmatpush1.xpose.msra.mxu0 0.0
        %3054 = vmatprep.subr.mxu0 0.0
        %3055 = vmatpush1.xpose.msra.mxu0 0.0
        %3056 = vmatprep.subr.mxu0 0.0
        %3057 = vmatpush1.xpose.msra.mxu0 0.0
        %3058 = vmatprep.subr.mxu0 0.0
        %3059 = vmatpush1.xpose.msra.mxu0 0.0
        %3060 = vmatprep.subr.mxu0 0.0
        %3061 = vmatpush1.xpose.msra.mxu0 0.0
        %3062 = vmatprep.subr.mxu0 0.0
        %3063 = vmatpush1.xpose.msra.mxu0 0.0
        %3064 = vmatprep.subr.mxu0 0.0
        %3065 = vmatpush1.xpose.msra.mxu0 0.0
        %3066 = vmatprep.subr.mxu0 0.0
        %3067 = vmatpush1.xpose.msra.mxu0 0.0
        %3068 = vmatprep.subr.mxu0 0.0
        %3069 = vmatpush1.xpose.msra.mxu0 %v3036
        %3070 = vmatprep.subr.mxu0 0.0
        %3071 = vmatpush2.xpose.msra.mxu0 0.0
        %3072 = vmatprep.subr.mxu0 0.0
        %3073 = vmatpush2.xpose.msra.mxu0 0.0
        %3074 = vmatprep.subr.mxu0 0.0
        %3075 = vmatpush2.xpose.msra.mxu0 0.0
        %3076 = vmatprep.subr.mxu0 0.0
        %3077 = vmatpush2.xpose.msra.mxu0 0.0
        %3078 = vmatprep.subr.mxu0 0.0
        %3079 = vmatpush2.xpose.msra.mxu0 0.0
        %3080 = vmatprep.subr.mxu0 0.0
        %3081 = vmatpush2.xpose.msra.mxu0 0.0
        %3082 = vmatprep.subr.mxu0 0.0
        %3083 = vmatpush2.xpose.msra.mxu0 0.0
        %3084 = vmatprep.subr.mxu0 0.0
        %3085 = vmatpush2.xpose.msra.mxu0 0.0
        %3086 = vmatprep.subr.mxu0 0.0
        %3087 = vmatpush2.xpose.msra.mxu0 0.0
        %3088 = vmatprep.subr.mxu0 0.0
        %3089 = vmatpush2.xpose.msra.mxu0 0.0
        %3090 = vmatprep.subr.mxu0 0.0
        %3091 = vmatpush2.xpose.msra.mxu0 0.0
        %3092 = vmatprep.subr.mxu0 0.0
        %3093 = vmatpush2.xpose.msra.mxu0 0.0
        %3094 = vmatprep.subr.mxu0 0.0
        %3095 = vmatpush2.xpose.msra.mxu0 0.0
        %3096 = vmatprep.subr.mxu0 0.0
        %3097 = vmatpush2.xpose.msra.mxu0 0.0
        %3098 = vmatprep.subr.mxu0 0.0
        %3099 = vmatpush2.xpose.msra.mxu0 0.0
        %3100 = vmatprep.subr.mxu0 0.0
        %3101 = vmatpush2.xpose.msra.mxu0 0.0
        %3102 = vmatprep.mubr.f32.mxu0 0.0
        %3103 = vmatmul.mubr.f32.gmra.mxu0 %v3034
        %v3104 = vpop.f32.mrf.mxu0
        %v3105 = vadd.f32 %v640, %v3104
        %v3106 = vpop.f32.mrf.mxu0
        %3107 = vdwg.mxu0
        %v3108 = vsel %vm644, %v2877, -inf
        %3109 = vmax.xlane.f32.xlu0 %v3108
        %v3110 = vpop.xlane.xlu0 %3109
        %v3111 = vsel %vm644, %v2953, -inf
        %3112 = vmax.xlane.f32.xlu0 %v3111
        %v3113 = vpop.xlane.xlu0 %3112
        %v3114 = vsel %vm644, %v3029, -inf
        %3115 = vmax.xlane.f32.xlu0 %v3114
        %v3116 = vpop.xlane.xlu0 %3115
        %v3117 = vsel %vm644, %v3105, -inf
        %3118 = vmax.xlane.f32.xlu0 %v3117
        %v3119 = vpop.xlane.xlu0 %3118
        %v3120 = vsub.f32 %v2877, %v3110
        %v3121 = vsub.f32 %v2953, %v3113
        %v3122 = vsub.f32 %v3029, %v3116
        %v3123 = vsub.f32 %v3105, %v3119
        %v3124 = vmul.f32 %v3120, 1.442695
        %v3125 = vpow.pop %v3124
        %v3126 = vmul.f32 %v3121, 1.442695
        %v3127 = vpow.pop %v3126
        %v3128 = vmul.f32 %v3122, 1.442695
        %v3129 = vpow.pop %v3128
        %v3130 = vmul.f32 %v3123, 1.442695
        %v3131 = vpow.pop %v3130
        %v3132 = vsel %vm644, %v3125, 0.0
        %3133 = vadd.xlane.f32.xlu0 %v3132
        %v3134 = vpop.xlane.xlu0 %3133
        %v3135 = vsel %vm644, %v3127, 0.0
        %3136 = vadd.xlane.f32.xlu0 %v3135
        %v3137 = vpop.xlane.xlu0 %3136
        %v3138 = vsel %vm644, %v3129, 0.0
        %3139 = vadd.xlane.f32.xlu0 %v3138
        %v3140 = vpop.xlane.xlu0 %3139
        %v3141 = vsel %vm644, %v3131, 0.0
        %3142 = vadd.xlane.f32.xlu0 %v3141
        %v3143 = vpop.xlane.xlu0 %3142
        %v3144 = vrcp.pop %v3134
        %v3145 = vrcp.pop %v3137
        %v3146 = vrcp.pop %v3140
        %v3147 = vrcp.pop %v3143
        %v3148 = vmul.f32 %v3125, %v3144
        %v3149 = vmul.f32 %v3127, %v3145
        %v3150 = vmul.f32 %v3129, %v3146
        %v3151 = vmul.f32 %v3131, %v3147
        %3152 = vrot.lane.b32.xlu0 %v2794, 64
        %v3153 = vpop.permute.xlu0 %3152
        %v3156 = vsel %vm644, %v3148, 0
        %3158 = vmatprep.subr.mxu0 0.0
        %3159 = vmatpush1.msra.mxu0 0.0
        %3160 = vmatprep.subr.mxu0 0.0
        %3161 = vmatpush1.msra.mxu0 0.0
        %3162 = vmatprep.subr.mxu0 0.0
        %3163 = vmatpush1.msra.mxu0 0.0
        %3164 = vmatprep.subr.mxu0 0.0
        %3165 = vmatpush1.msra.mxu0 0.0
        %3166 = vmatprep.subr.mxu0 0.0
        %3167 = vmatpush1.msra.mxu0 0.0
        %3168 = vmatprep.subr.mxu0 0.0
        %3169 = vmatpush1.msra.mxu0 0.0
        %3170 = vmatprep.subr.mxu0 0.0
        %3171 = vmatpush1.msra.mxu0 0.0
        %3172 = vmatprep.subr.mxu0 0.0
        %3173 = vmatpush1.msra.mxu0 0.0
        %3174 = vmatprep.subr.mxu0 0.0
        %3175 = vmatpush1.msra.mxu0 0.0
        %3176 = vmatprep.subr.mxu0 0.0
        %3177 = vmatpush1.msra.mxu0 0.0
        %3178 = vmatprep.subr.mxu0 0.0
        %3179 = vmatpush1.msra.mxu0 0.0
        %3180 = vmatprep.subr.mxu0 0.0
        %3181 = vmatpush1.msra.mxu0 0.0
        %3182 = vmatprep.subr.mxu0 0.0
        %3183 = vmatpush1.msra.mxu0 0.0
        %3184 = vmatprep.subr.mxu0 0.0
        %3185 = vmatpush1.msra.mxu0 0.0
        %3186 = vmatprep.subr.mxu0 0.0
        %3187 = vmatpush1.msra.mxu0 0.0
        %3188 = vmatprep.subr.mxu0 0.0
        %3189 = vmatpush1.msra.mxu0 %v3153
        %3190 = vmatprep.subr.mxu0 0.0
        %3191 = vmatpush2.msra.mxu0 0.0
        %3192 = vmatprep.subr.mxu0 0.0
        %3193 = vmatpush2.msra.mxu0 0.0
        %3194 = vmatprep.subr.mxu0 0.0
        %3195 = vmatpush2.msra.mxu0 0.0
        %3196 = vmatprep.subr.mxu0 0.0
        %3197 = vmatpush2.msra.mxu0 0.0
        %3198 = vmatprep.subr.mxu0 0.0
        %3199 = vmatpush2.msra.mxu0 0.0
        %3200 = vmatprep.subr.mxu0 0.0
        %3201 = vmatpush2.msra.mxu0 0.0
        %3202 = vmatprep.subr.mxu0 0.0
        %3203 = vmatpush2.msra.mxu0 0.0
        %3204 = vmatprep.subr.mxu0 0.0
        %3205 = vmatpush2.msra.mxu0 0.0
        %3206 = vmatprep.subr.mxu0 0.0
        %3207 = vmatpush2.msra.mxu0 0.0
        %3208 = vmatprep.subr.mxu0 0.0
        %3209 = vmatpush2.msra.mxu0 0.0
        %3210 = vmatprep.subr.mxu0 0.0
        %3211 = vmatpush2.msra.mxu0 0.0
        %3212 = vmatprep.subr.mxu0 0.0
        %3213 = vmatpush2.msra.mxu0 0.0
        %3214 = vmatprep.subr.mxu0 0.0
        %3215 = vmatpush2.msra.mxu0 0.0
        %3216 = vmatprep.subr.mxu0 0.0
        %3217 = vmatpush2.msra.mxu0 0.0
        %3218 = vmatprep.subr.mxu0 0.0
        %3219 = vmatpush2.msra.mxu0 0.0
        %3220 = vmatprep.subr.mxu0 0.0
        %3221 = vmatpush2.msra.mxu0 0.0
        %3222 = vmatprep.mubr.f32.mxu0 0.0
        %3223 = vmatmul.mubr.f32.gmra.mxu0 %v3156
        %v3224 = vpop.f32.mrf.mxu0
        %v3225 = vadd.f32 0.0, %v3224
        %v3226 = vpop.f32.mrf.mxu0
        %3227 = vdwg.mxu0
        %3228 = vrot.lane.b32.xlu0 %v2799, 64
        %v3229 = vpop.permute.xlu0 %3228
        %v3232 = vsel %vm644, %v3149, 0
        %3234 = vmatprep.subr.mxu0 0.0
        %3235 = vmatpush1.msra.mxu0 0.0
        %3236 = vmatprep.subr.mxu0 0.0
        %3237 = vmatpush1.msra.mxu0 0.0
        %3238 = vmatprep.subr.mxu0 0.0
        %3239 = vmatpush1.msra.mxu0 0.0
        %3240 = vmatprep.subr.mxu0 0.0
        %3241 = vmatpush1.msra.mxu0 0.0
        %3242 = vmatprep.subr.mxu0 0.0
        %3243 = vmatpush1.msra.mxu0 0.0
        %3244 = vmatprep.subr.mxu0 0.0
        %3245 = vmatpush1.msra.mxu0 0.0
        %3246 = vmatprep.subr.mxu0 0.0
        %3247 = vmatpush1.msra.mxu0 0.0
        %3248 = vmatprep.subr.mxu0 0.0
        %3249 = vmatpush1.msra.mxu0 0.0
        %3250 = vmatprep.subr.mxu0 0.0
        %3251 = vmatpush1.msra.mxu0 0.0
        %3252 = vmatprep.subr.mxu0 0.0
        %3253 = vmatpush1.msra.mxu0 0.0
        %3254 = vmatprep.subr.mxu0 0.0
        %3255 = vmatpush1.msra.mxu0 0.0
        %3256 = vmatprep.subr.mxu0 0.0
        %3257 = vmatpush1.msra.mxu0 0.0
        %3258 = vmatprep.subr.mxu0 0.0
        %3259 = vmatpush1.msra.mxu0 0.0
        %3260 = vmatprep.subr.mxu0 0.0
        %3261 = vmatpush1.msra.mxu0 0.0
        %3262 = vmatprep.subr.mxu0 0.0
        %3263 = vmatpush1.msra.mxu0 0.0
        %3264 = vmatprep.subr.mxu0 0.0
        %3265 = vmatpush1.msra.mxu0 %v3229
        %3266 = vmatprep.subr.mxu0 0.0
        %3267 = vmatpush2.msra.mxu0 0.0
        %3268 = vmatprep.subr.mxu0 0.0
        %3269 = vmatpush2.msra.mxu0 0.0
        %3270 = vmatprep.subr.mxu0 0.0
        %3271 = vmatpush2.msra.mxu0 0.0
        %3272 = vmatprep.subr.mxu0 0.0
        %3273 = vmatpush2.msra.mxu0 0.0
        %3274 = vmatprep.subr.mxu0 0.0
        %3275 = vmatpush2.msra.mxu0 0.0
        %3276 = vmatprep.subr.mxu0 0.0
        %3277 = vmatpush2.msra.mxu0 0.0
        %3278 = vmatprep.subr.mxu0 0.0
        %3279 = vmatpush2.msra.mxu0 0.0
        %3280 = vmatprep.subr.mxu0 0.0
        %3281 = vmatpush2.msra.mxu0 0.0
        %3282 = vmatprep.subr.mxu0 0.0
        %3283 = vmatpush2.msra.mxu0 0.0
        %3284 = vmatprep.subr.mxu0 0.0
        %3285 = vmatpush2.msra.mxu0 0.0
        %3286 = vmatprep.subr.mxu0 0.0
        %3287 = vmatpush2.msra.mxu0 0.0
        %3288 = vmatprep.subr.mxu0 0.0
        %3289 = vmatpush2.msra.mxu0 0.0
        %3290 = vmatprep.subr.mxu0 0.0
        %3291 = vmatpush2.msra.mxu0 0.0
        %3292 = vmatprep.subr.mxu0 0.0
        %3293 = vmatpush2.msra.mxu0 0.0
        %3294 = vmatprep.subr.mxu0 0.0
        %3295 = vmatpush2.msra.mxu0 0.0
        %3296 = vmatprep.subr.mxu0 0.0
        %3297 = vmatpush2.msra.mxu0 0.0
        %3298 = vmatprep.mubr.f32.mxu0 0.0
        %3299 = vmatmul.mubr.f32.gmra.mxu0 %v3232
        %v3300 = vpop.f32.mrf.mxu0
        %v3301 = vadd.f32 0.0, %v3300
        %v3302 = vpop.f32.mrf.mxu0
        %3303 = vdwg.mxu0
        %3304 = vrot.lane.b32.xlu0 %v2801, 64
        %v3305 = vpop.permute.xlu0 %3304
        %v3308 = vsel %vm644, %v3150, 0
        %3310 = vmatprep.subr.mxu0 0.0
        %3311 = vmatpush1.msra.mxu0 0.0
        %3312 = vmatprep.subr.mxu0 0.0
        %3313 = vmatpush1.msra.mxu0 0.0
        %3314 = vmatprep.subr.mxu0 0.0
        %3315 = vmatpush1.msra.mxu0 0.0
        %3316 = vmatprep.subr.mxu0 0.0
        %3317 = vmatpush1.msra.mxu0 0.0
        %3318 = vmatprep.subr.mxu0 0.0
        %3319 = vmatpush1.msra.mxu0 0.0
        %3320 = vmatprep.subr.mxu0 0.0
        %3321 = vmatpush1.msra.mxu0 0.0
        %3322 = vmatprep.subr.mxu0 0.0
        %3323 = vmatpush1.msra.mxu0 0.0
        %3324 = vmatprep.subr.mxu0 0.0
        %3325 = vmatpush1.msra.mxu0 0.0
        %3326 = vmatprep.subr.mxu0 0.0
        %3327 = vmatpush1.msra.mxu0 0.0
        %3328 = vmatprep.subr.mxu0 0.0
        %3329 = vmatpush1.msra.mxu0 0.0
        %3330 = vmatprep.subr.mxu0 0.0
        %3331 = vmatpush1.msra.mxu0 0.0
        %3332 = vmatprep.subr.mxu0 0.0
        %3333 = vmatpush1.msra.mxu0 0.0
        %3334 = vmatprep.subr.mxu0 0.0
        %3335 = vmatpush1.msra.mxu0 0.0
        %3336 = vmatprep.subr.mxu0 0.0
        %3337 = vmatpush1.msra.mxu0 0.0
        %3338 = vmatprep.subr.mxu0 0.0
        %3339 = vmatpush1.msra.mxu0 0.0
        %3340 = vmatprep.subr.mxu0 0.0
        %3341 = vmatpush1.msra.mxu0 %v3305
        %3342 = vmatprep.subr.mxu0 0.0
        %3343 = vmatpush2.msra.mxu0 0.0
        %3344 = vmatprep.subr.mxu0 0.0
        %3345 = vmatpush2.msra.mxu0 0.0
        %3346 = vmatprep.subr.mxu0 0.0
        %3347 = vmatpush2.msra.mxu0 0.0
        %3348 = vmatprep.subr.mxu0 0.0
        %3349 = vmatpush2.msra.mxu0 0.0
        %3350 = vmatprep.subr.mxu0 0.0
        %3351 = vmatpush2.msra.mxu0 0.0
        %3352 = vmatprep.subr.mxu0 0.0
        %3353 = vmatpush2.msra.mxu0 0.0
        %3354 = vmatprep.subr.mxu0 0.0
        %3355 = vmatpush2.msra.mxu0 0.0
        %3356 = vmatprep.subr.mxu0 0.0
        %3357 = vmatpush2.msra.mxu0 0.0
        %3358 = vmatprep.subr.mxu0 0.0
        %3359 = vmatpush2.msra.mxu0 0.0
        %3360 = vmatprep.subr.mxu0 0.0
        %3361 = vmatpush2.msra.mxu0 0.0
        %3362 = vmatprep.subr.mxu0 0.0
        %3363 = vmatpush2.msra.mxu0 0.0
        %3364 = vmatprep.subr.mxu0 0.0
        %3365 = vmatpush2.msra.mxu0 0.0
        %3366 = vmatprep.subr.mxu0 0.0
        %3367 = vmatpush2.msra.mxu0 0.0
        %3368 = vmatprep.subr.mxu0 0.0
        %3369 = vmatpush2.msra.mxu0 0.0
        %3370 = vmatprep.subr.mxu0 0.0
        %3371 = vmatpush2.msra.mxu0 0.0
        %3372 = vmatprep.subr.mxu0 0.0
        %3373 = vmatpush2.msra.mxu0 0.0
        %3374 = vmatprep.mubr.f32.mxu0 0.0
        %3375 = vmatmul.mubr.f32.gmra.mxu0 %v3308
        %v3376 = vpop.f32.mrf.mxu0
        %v3377 = vadd.f32 0.0, %v3376
        %v3378 = vpop.f32.mrf.mxu0
        %3379 = vdwg.mxu0
        %3380 = vrot.lane.b32.xlu0 %v2803, 64
        %v3381 = vpop.permute.xlu0 %3380
        %v3384 = vsel %vm644, %v3151, 0
        %3386 = vmatprep.subr.mxu0 0.0
        %3387 = vmatpush1.msra.mxu0 0.0
        %3388 = vmatprep.subr.mxu0 0.0
        %3389 = vmatpush1.msra.mxu0 0.0
        %3390 = vmatprep.subr.mxu0 0.0
        %3391 = vmatpush1.msra.mxu0 0.0
        %3392 = vmatprep.subr.mxu0 0.0
        %3393 = vmatpush1.msra.mxu0 0.0
        %3394 = vmatprep.subr.mxu0 0.0
        %3395 = vmatpush1.msra.mxu0 0.0
        %3396 = vmatprep.subr.mxu0 0.0
        %3397 = vmatpush1.msra.mxu0 0.0
        %3398 = vmatprep.subr.mxu0 0.0
        %3399 = vmatpush1.msra.mxu0 0.0
        %3400 = vmatprep.subr.mxu0 0.0
        %3401 = vmatpush1.msra.mxu0 0.0
        %3402 = vmatprep.subr.mxu0 0.0
        %3403 = vmatpush1.msra.mxu0 0.0
        %3404 = vmatprep.subr.mxu0 0.0
        %3405 = vmatpush1.msra.mxu0 0.0
        %3406 = vmatprep.subr.mxu0 0.0
        %3407 = vmatpush1.msra.mxu0 0.0
        %3408 = vmatprep.subr.mxu0 0.0
        %3409 = vmatpush1.msra.mxu0 0.0
        %3410 = vmatprep.subr.mxu0 0.0
        %3411 = vmatpush1.msra.mxu0 0.0
        %3412 = vmatprep.subr.mxu0 0.0
        %3413 = vmatpush1.msra.mxu0 0.0
        %3414 = vmatprep.subr.mxu0 0.0
        %3415 = vmatpush1.msra.mxu0 0.0
        %3416 = vmatprep.subr.mxu0 0.0
        %3417 = vmatpush1.msra.mxu0 %v3381
        %3418 = vmatprep.subr.mxu0 0.0
        %3419 = vmatpush2.msra.mxu0 0.0
        %3420 = vmatprep.subr.mxu0 0.0
        %3421 = vmatpush2.msra.mxu0 0.0
        %3422 = vmatprep.subr.mxu0 0.0
        %3423 = vmatpush2.msra.mxu0 0.0
        %3424 = vmatprep.subr.mxu0 0.0
        %3425 = vmatpush2.msra.mxu0 0.0
        %3426 = vmatprep.subr.mxu0 0.0
        %3427 = vmatpush2.msra.mxu0 0.0
        %3428 = vmatprep.subr.mxu0 0.0
        %3429 = vmatpush2.msra.mxu0 0.0
        %3430 = vmatprep.subr.mxu0 0.0
        %3431 = vmatpush2.msra.mxu0 0.0
        %3432 = vmatprep.subr.mxu0 0.0
        %3433 = vmatpush2.msra.mxu0 0.0
        %3434 = vmatprep.subr.mxu0 0.0
        %3435 = vmatpush2.msra.mxu0 0.0
        %3436 = vmatprep.subr.mxu0 0.0
        %3437 = vmatpush2.msra.mxu0 0.0
        %3438 = vmatprep.subr.mxu0 0.0
        %3439 = vmatpush2.msra.mxu0 0.0
        %3440 = vmatprep.subr.mxu0 0.0
        %3441 = vmatpush2.msra.mxu0 0.0
        %3442 = vmatprep.subr.mxu0 0.0
        %3443 = vmatpush2.msra.mxu0 0.0
        %3444 = vmatprep.subr.mxu0 0.0
        %3445 = vmatpush2.msra.mxu0 0.0
        %3446 = vmatprep.subr.mxu0 0.0
        %3447 = vmatpush2.msra.mxu0 0.0
        %3448 = vmatprep.subr.mxu0 0.0
        %3449 = vmatpush2.msra.mxu0 0.0
        %3450 = vmatprep.mubr.f32.mxu0 0.0
        %3451 = vmatmul.mubr.f32.gmra.mxu0 %v3384
        %v3452 = vpop.f32.mrf.mxu0
        %v3453 = vadd.f32 0.0, %v3452
        %v3454 = vpop.f32.mrf.mxu0
        %3455 = vdwg.mxu0
        %3457 = vrot.lane.b32.xlu0 %v3301, 8
        %v3458 = vpop.permute.xlu0 %3457
        %3461 = vrot.lane.b32.xlu0 %v3377, 16
        %v3462 = vpop.permute.xlu0 %3461
        %3465 = vrot.lane.b32.xlu0 %v3453, 24
        %v3466 = vpop.permute.xlu0 %3465
        %v3468 = vsel %vm644, %v3225, %v3458
        %v3469 = vsel %vm1308, %v3468, %v3462
        %v3470 = vsel %vm1310, %v3469, %v3466
        %s3471 = scalar_lea.vmem %s4, 64
        %v3472 = vld [vmem:[%s3471] sm:$0xff]
        %v3473 = vld [vmem:[%s3471 + $0x8] sm:$0xff]
        %v3474 = vld [vmem:[%s3471 + $0x10] sm:$0xff]
        %v3475 = vld [vmem:[%s3471 + $0x18] sm:$0xff]
        %s3476 = scalar_lea.vmem %s5, 2
        %v3477 = vld [vmem:[%s3476] sm:$0x1]
        %v3479 = vlaneseq
        %v3480 = vshrl.u32 %v3479, 7
        %v3481 = vsub.s32 0, %v3480
        %v3482 = vrot.slane %v3477, %v3481
        %v3485 = vsel %vm555, %v3470, 0
        %3487 = vmatprep.subr.mxu0 0.0
        %3488 = vmatpush1.msra.mxu0 0.0
        %3489 = vmatprep.subr.mxu0 0.0
        %3490 = vmatpush1.msra.mxu0 0.0
        %3491 = vmatprep.subr.mxu0 0.0
        %3492 = vmatpush1.msra.mxu0 0.0
        %3493 = vmatprep.subr.mxu0 0.0
        %3494 = vmatpush1.msra.mxu0 0.0
        %3495 = vmatprep.subr.mxu0 0.0
        %3496 = vmatpush1.msra.mxu0 0.0
        %3497 = vmatprep.subr.mxu0 0.0
        %3498 = vmatpush1.msra.mxu0 0.0
        %3499 = vmatprep.subr.mxu0 0.0
        %3500 = vmatpush1.msra.mxu0 0.0
        %3501 = vmatprep.subr.mxu0 0.0
        %3502 = vmatpush1.msra.mxu0 0.0
        %3503 = vmatprep.subr.mxu0 0.0
        %3504 = vmatpush1.msra.mxu0 0.0
        %3505 = vmatprep.subr.mxu0 0.0
        %3506 = vmatpush1.msra.mxu0 0.0
        %3507 = vmatprep.subr.mxu0 0.0
        %3508 = vmatpush1.msra.mxu0 0.0
        %3509 = vmatprep.subr.mxu0 0.0
        %3510 = vmatpush1.msra.mxu0 0.0
        %3511 = vmatprep.subr.mxu0 0.0
        %3512 = vmatpush1.msra.mxu0 %v3475
        %3513 = vmatprep.subr.mxu0 0.0
        %3514 = vmatpush1.msra.mxu0 %v3474
        %3515 = vmatprep.subr.mxu0 0.0
        %3516 = vmatpush1.msra.mxu0 %v3473
        %3517 = vmatprep.subr.mxu0 0.0
        %3518 = vmatpush1.msra.mxu0 %v3472
        %3519 = vmatprep.subr.mxu0 0.0
        %3520 = vmatpush2.msra.mxu0 0.0
        %3521 = vmatprep.subr.mxu0 0.0
        %3522 = vmatpush2.msra.mxu0 0.0
        %3523 = vmatprep.subr.mxu0 0.0
        %3524 = vmatpush2.msra.mxu0 0.0
        %3525 = vmatprep.subr.mxu0 0.0
        %3526 = vmatpush2.msra.mxu0 0.0
        %3527 = vmatprep.subr.mxu0 0.0
        %3528 = vmatpush2.msra.mxu0 0.0
        %3529 = vmatprep.subr.mxu0 0.0
        %3530 = vmatpush2.msra.mxu0 0.0
        %3531 = vmatprep.subr.mxu0 0.0
        %3532 = vmatpush2.msra.mxu0 0.0
        %3533 = vmatprep.subr.mxu0 0.0
        %3534 = vmatpush2.msra.mxu0 0.0
        %3535 = vmatprep.subr.mxu0 0.0
        %3536 = vmatpush2.msra.mxu0 0.0
        %3537 = vmatprep.subr.mxu0 0.0
        %3538 = vmatpush2.msra.mxu0 0.0
        %3539 = vmatprep.subr.mxu0 0.0
        %3540 = vmatpush2.msra.mxu0 0.0
        %3541 = vmatprep.subr.mxu0 0.0
        %3542 = vmatpush2.msra.mxu0 0.0
        %3543 = vmatprep.subr.mxu0 0.0
        %3544 = vmatpush2.msra.mxu0 0.0
        %3545 = vmatprep.subr.mxu0 0.0
        %3546 = vmatpush2.msra.mxu0 0.0
        %3547 = vmatprep.subr.mxu0 0.0
        %3548 = vmatpush2.msra.mxu0 0.0
        %3549 = vmatprep.subr.mxu0 0.0
        %3550 = vmatpush2.msra.mxu0 0.0
        %3551 = vmatprep.mubr.f32.mxu0 0.0
        %3552 = vmatmul.mubr.f32.gmra.mxu0 %v3485
        %v3553 = vpop.f32.mrf.mxu0
        %v3554 = vadd.f32 %v3482, %v3553
        %v3555 = vpop.f32.mrf.mxu0
        %3556 = vdwg.mxu0
        %v3557 = vadd.f32 %v2718, %v3554
        %s3558 = scalar_lea.vmem %s6, 2
        %v3559 = vld [vmem:[%s3558] sm:$0x1]
        %s3560 = scalar_lea.vmem %s7, 2
        %v3561 = vld [vmem:[%s3560] sm:$0x1]
        %v3562 = vsel %vm555, %v3557, 0.0
        %3563 = vadd.xlane.f32.xlu0 %v3562
        %v3564 = vpop.xlane.xlu0 %3563
        %v3565 = vmul.f32 %v3564, %v1402
        %v3566 = vsub.f32 %v3557, %v3565
        %v3567 = vmul.f32 %v3566, %v3566
        %v3568 = vsel %vm555, %v3567, 0.0
        %3569 = vadd.xlane.f32.xlu0 %v3568
        %v3570 = vpop.xlane.xlu0 %3569
        %v3571 = vmul.f32 %v3570, %v1402
        %v3572 = vadd.f32 %v3571, 1e-05
        %v3573 = vrsqrt.pop %v3572
        %v3574 = vmul.f32 %v3566, %v3573
        %v3576 = vlaneseq
        %v3577 = vshrl.u32 %v3576, 7
        %v3578 = vsub.s32 0, %v3577
        %v3579 = vrot.slane %v3559, %v3578
        %v3581 = vmul.f32 %v3574, %v3579
        %v3583 = vlaneseq
        %v3584 = vshrl.u32 %v3583, 7
        %v3585 = vsub.s32 0, %v3584
        %v3586 = vrot.slane %v3561, %v3585
        %v3588 = vadd.f32 %v3581, %v3586
        %s3589 = scalar_lea.vmem %s8, 64
        %v3590 = vld [vmem:[%s3589] sm:$0xff]
        %v3591 = vld [vmem:[%s3589 + $0x8] sm:$0xff]
        %v3592 = vld [vmem:[%s3589 + $0x10] sm:$0xff]
        %v3593 = vld [vmem:[%s3589 + $0x18] sm:$0xff]
        %s3594 = scalar_lea.vmem %s9, 2
        %v3595 = vld [vmem:[%s3594] sm:$0x1]
        %v3597 = vlaneseq
        %v3598 = vshrl.u32 %v3597, 7
        %v3599 = vsub.s32 0, %v3598
        %v3600 = vrot.slane %v3595, %v3599
        %v3603 = vsel %vm555, %v3588, 0
        %3605 = vmatprep.subr.mxu0 0.0
        %3606 = vmatpush1.msra.mxu0 0.0
        %3607 = vmatprep.subr.mxu0 0.0
        %3608 = vmatpush1.msra.mxu0 0.0
        %3609 = vmatprep.subr.mxu0 0.0
        %3610 = vmatpush1.msra.mxu0 0.0
        %3611 = vmatprep.subr.mxu0 0.0
        %3612 = vmatpush1.msra.mxu0 0.0
        %3613 = vmatprep.subr.mxu0 0.0
        %3614 = vmatpush1.msra.mxu0 0.0
        %3615 = vmatprep.subr.mxu0 0.0
        %3616 = vmatpush1.msra.mxu0 0.0
        %3617 = vmatprep.subr.mxu0 0.0
        %3618 = vmatpush1.msra.mxu0 0.0
        %3619 = vmatprep.subr.mxu0 0.0
        %3620 = vmatpush1.msra.mxu0 0.0
        %3621 = vmatprep.subr.mxu0 0.0
        %3622 = vmatpush1.msra.mxu0 0.0
        %3623 = vmatprep.subr.mxu0 0.0
        %3624 = vmatpush1.msra.mxu0 0.0
        %3625 = vmatprep.subr.mxu0 0.0
        %3626 = vmatpush1.msra.mxu0 0.0
        %3627 = vmatprep.subr.mxu0 0.0
        %3628 = vmatpush1.msra.mxu0 0.0
        %3629 = vmatprep.subr.mxu0 0.0
        %3630 = vmatpush1.msra.mxu0 %v3593
        %3631 = vmatprep.subr.mxu0 0.0
        %3632 = vmatpush1.msra.mxu0 %v3592
        %3633 = vmatprep.subr.mxu0 0.0
        %3634 = vmatpush1.msra.mxu0 %v3591
        %3635 = vmatprep.subr.mxu0 0.0
        %3636 = vmatpush1.msra.mxu0 %v3590
        %3637 = vmatprep.subr.mxu0 0.0
        %3638 = vmatpush2.msra.mxu0 0.0
        %3639 = vmatprep.subr.mxu0 0.0
        %3640 = vmatpush2.msra.mxu0 0.0
        %3641 = vmatprep.subr.mxu0 0.0
        %3642 = vmatpush2.msra.mxu0 0.0
        %3643 = vmatprep.subr.mxu0 0.0
        %3644 = vmatpush2.msra.mxu0 0.0
        %3645 = vmatprep.subr.mxu0 0.0
        %3646 = vmatpush2.msra.mxu0 0.0
        %3647 = vmatprep.subr.mxu0 0.0
        %3648 = vmatpush2.msra.mxu0 0.0
        %3649 = vmatprep.subr.mxu0 0.0
        %3650 = vmatpush2.msra.mxu0 0.0
        %3651 = vmatprep.subr.mxu0 0.0
        %3652 = vmatpush2.msra.mxu0 0.0
        %3653 = vmatprep.subr.mxu0 0.0
        %3654 = vmatpush2.msra.mxu0 0.0
        %3655 = vmatprep.subr.mxu0 0.0
        %3656 = vmatpush2.msra.mxu0 0.0
        %3657 = vmatprep.subr.mxu0 0.0
        %3658 = vmatpush2.msra.mxu0 0.0
        %3659 = vmatprep.subr.mxu0 0.0
        %3660 = vmatpush2.msra.mxu0 0.0
        %3661 = vmatprep.subr.mxu0 0.0
        %3662 = vmatpush2.msra.mxu0 0.0
        %3663 = vmatprep.subr.mxu0 0.0
        %3664 = vmatpush2.msra.mxu0 0.0
        %3665 = vmatprep.subr.mxu0 0.0
        %3666 = vmatpush2.msra.mxu0 0.0
        %3667 = vmatprep.subr.mxu0 0.0
        %3668 = vmatpush2.msra.mxu0 0.0
        %3669 = vmatprep.mubr.f32.mxu0 0.0
        %3670 = vmatmul.mubr.f32.gmra.mxu0 %v3603
        %v3671 = vpop.f32.mrf.mxu0
        %v3672 = vadd.f32 %v3600, %v3671
        %v3673 = vpop.f32.mrf.mxu0
        %3674 = vdwg.mxu0
        %v3675 = vmax.f32 %v3672, 0.0
        %s3676 = scalar_lea.vmem %s10, 256
        %v3677 = vld [vmem:[%s3676] sm:$0xff]
        %v3678 = vld [vmem:[%s3676 + $0x8] sm:$0xff]
        %v3679 = vld [vmem:[%s3676 + $0x10] sm:$0xff]
        %v3680 = vld [vmem:[%s3676 + $0x18] sm:$0xff]
        %v3681 = vld [vmem:[%s3676 + $0x20] sm:$0xff]
        %v3682 = vld [vmem:[%s3676 + $0x28] sm:$0xff]
        %v3683 = vld [vmem:[%s3676 + $0x30] sm:$0xff]
        %v3684 = vld [vmem:[%s3676 + $0x38] sm:$0xff]
        %v3685 = vld [vmem:[%s3676 + $0x40] sm:$0xff]
        %v3686 = vld [vmem:[%s3676 + $0x48] sm:$0xff]
        %v3687 = vld [vmem:[%s3676 + $0x50] sm:$0xff]
        %v3688 = vld [vmem:[%s3676 + $0x58] sm:$0xff]
        %v3689 = vld [vmem:[%s3676 + $0x60] sm:$0xff]
        %v3690 = vld [vmem:[%s3676 + $0x68] sm:$0xff]
        %v3691 = vld [vmem:[%s3676 + $0x70] sm:$0xff]
        %v3692 = vld [vmem:[%s3676 + $0x78] sm:$0xff]
        %s3693 = scalar_lea.vmem %s11, 2
        %v3694 = vld [vmem:[%s3693] sm:$0x1]
        %v3696 = vlaneseq
        %v3697 = vshrl.u32 %v3696, 7
        %v3698 = vsub.s32 0, %v3697
        %v3699 = vrot.slane %v3694, %v3698
        %3701 = vmatprep.subr.mxu0 0.0
        %3702 = vmatpush1.msra.mxu0 %v3692
        %3703 = vmatprep.subr.mxu0 0.0
        %3704 = vmatpush1.msra.mxu0 %v3691
        %3705 = vmatprep.subr.mxu0 0.0
        %3706 = vmatpush1.msra.mxu0 %v3690
        %3707 = vmatprep.subr.mxu0 0.0
        %3708 = vmatpush1.msra.mxu0 %v3689
        %3709 = vmatprep.subr.mxu0 0.0
        %3710 = vmatpush1.msra.mxu0 %v3688
        %3711 = vmatprep.subr.mxu0 0.0
        %3712 = vmatpush1.msra.mxu0 %v3687
        %3713 = vmatprep.subr.mxu0 0.0
        %3714 = vmatpush1.msra.mxu0 %v3686
        %3715 = vmatprep.subr.mxu0 0.0
        %3716 = vmatpush1.msra.mxu0 %v3685
        %3717 = vmatprep.subr.mxu0 0.0
        %3718 = vmatpush1.msra.mxu0 %v3684
        %3719 = vmatprep.subr.mxu0 0.0
        %3720 = vmatpush1.msra.mxu0 %v3683
        %3721 = vmatprep.subr.mxu0 0.0
        %3722 = vmatpush1.msra.mxu0 %v3682
        %3723 = vmatprep.subr.mxu0 0.0
        %3724 = vmatpush1.msra.mxu0 %v3681
        %3725 = vmatprep.subr.mxu0 0.0
        %3726 = vmatpush1.msra.mxu0 %v3680
        %3727 = vmatprep.subr.mxu0 0.0
        %3728 = vmatpush1.msra.mxu0 %v3679
        %3729 = vmatprep.subr.mxu0 0.0
        %3730 = vmatpush1.msra.mxu0 %v3678
        %3731 = vmatprep.subr.mxu0 0.0
        %3732 = vmatpush1.msra.mxu0 %v3677
        %3733 = vmatprep.subr.mxu0 0.0
        %3734 = vmatpush2.msra.mxu0 0.0
        %3735 = vmatprep.subr.mxu0 0.0
        %3736 = vmatpush2.msra.mxu0 0.0
        %3737 = vmatprep.subr.mxu0 0.0
        %3738 = vmatpush2.msra.mxu0 0.0
        %3739 = vmatprep.subr.mxu0 0.0
        %3740 = vmatpush2.msra.mxu0 0.0
        %3741 = vmatprep.subr.mxu0 0.0
        %3742 = vmatpush2.msra.mxu0 0.0
        %3743 = vmatprep.subr.mxu0 0.0
        %3744 = vmatpush2.msra.mxu0 0.0
        %3745 = vmatprep.subr.mxu0 0.0
        %3746 = vmatpush2.msra.mxu0 0.0
        %3747 = vmatprep.subr.mxu0 0.0
        %3748 = vmatpush2.msra.mxu0 0.0
        %3749 = vmatprep.subr.mxu0 0.0
        %3750 = vmatpush2.msra.mxu0 0.0
        %3751 = vmatprep.subr.mxu0 0.0
        %3752 = vmatpush2.msra.mxu0 0.0
        %3753 = vmatprep.subr.mxu0 0.0
        %3754 = vmatpush2.msra.mxu0 0.0
        %3755 = vmatprep.subr.mxu0 0.0
        %3756 = vmatpush2.msra.mxu0 0.0
        %3757 = vmatprep.subr.mxu0 0.0
        %3758 = vmatpush2.msra.mxu0 0.0
        %3759 = vmatprep.subr.mxu0 0.0
        %3760 = vmatpush2.msra.mxu0 0.0
        %3761 = vmatprep.subr.mxu0 0.0
        %3762 = vmatpush2.msra.mxu0 0.0
        %3763 = vmatprep.subr.mxu0 0.0
        %3764 = vmatpush2.msra.mxu0 0.0
        %3765 = vmatprep.mubr.f32.mxu0 0.0
        %3766 = vmatmul.mubr.f32.gmra.mxu0 %v3675
        %v3767 = vpop.f32.mrf.mxu0
        %v3768 = vadd.f32 %v3699, %v3767
        %v3769 = vpop.f32.mrf.mxu0
        %3770 = vdwg.mxu0
        %v3771 = vadd.f32 %v3588, %v3768
        %s3772 = scalar_lea.vmem %s12, 2
        %v3773 = vld [vmem:[%s3772] sm:$0x1]
        %s3774 = scalar_lea.vmem %s13, 2
        %v3775 = vld [vmem:[%s3774] sm:$0x1]
        %v3776 = vsel %vm555, %v3771, 0.0
        %3777 = vadd.xlane.f32.xlu0 %v3776
        %v3778 = vpop.xlane.xlu0 %3777
        %v3779 = vmul.f32 %v3778, %v1402
        %v3780 = vsub.f32 %v3771, %v3779
        %v3781 = vmul.f32 %v3780, %v3780
        %v3782 = vsel %vm555, %v3781, 0.0
        %3783 = vadd.xlane.f32.xlu0 %v3782
        %v3784 = vpop.xlane.xlu0 %3783
        %v3785 = vmul.f32 %v3784, %v1402
        %v3786 = vadd.f32 %v3785, 1e-05
        %v3787 = vrsqrt.pop %v3786
        %v3788 = vmul.f32 %v3780, %v3787
        %v3790 = vlaneseq
        %v3791 = vshrl.u32 %v3790, 7
        %v3792 = vsub.s32 0, %v3791
        %v3793 = vrot.slane %v3773, %v3792
        %v3795 = vmul.f32 %v3788, %v3793
        %v3797 = vlaneseq
        %v3798 = vshrl.u32 %v3797, 7
        %v3799 = vsub.s32 0, %v3798
        %v3800 = vrot.slane %v3775, %v3799
        %v3802 = vadd.f32 %v3795, %v3800
        %v3803 = vld [vmem:[%s546] sm:$0xff]
        %vm3804 = vcmp.gt.f32.partialorder %v3803, 0.0
        %v3805 = vsel %vm3804, 1, 0
        %3806 = vset.pattern.permute.xlu0 0
        %3807 = vperm.xlu0 %3806, %v3805
        %v3808 = vpop.permute.xlu0 %3807
        %vm3809 = vcmp.eq.s32.totalorder %v3808, 1
        %v3810 = vsel %vm3809, %v3802, -1e+30
        %v3811 = vsel %vm555, %v3810, -inf
        %v3812 = vrot.slane %v3811, 4
        %v3813 = vmax.f32 %v3811, %v3812
        %v3814 = vrot.slane %v3813, 2
        %v3815 = vmax.f32 %v3813, %v3814
        %v3816 = vrot.slane %v3815, 1
        %v3817 = vmax.f32 %v3815, %v3816
        %v3818 = vld [vmem:[%s14] sm:$0xff]
        %v3819 = vld [vmem:[%s14 + $0x8] sm:$0xff]
        %v3820 = vld [vmem:[%s14 + $0x10] sm:$0xff]
        %v3821 = vld [vmem:[%s14 + $0x18] sm:$0xff]
        %v3822 = vld [vmem:[%s15] sm:$0x1]
        %v3824 = vsel %vm555, %v3817, 0
        %3826 = vmatprep.subr.mxu0 0.0
        %3827 = vmatpush1.msra.mxu0 0.0
        %3828 = vmatprep.subr.mxu0 0.0
        %3829 = vmatpush1.msra.mxu0 0.0
        %3830 = vmatprep.subr.mxu0 0.0
        %3831 = vmatpush1.msra.mxu0 0.0
        %3832 = vmatprep.subr.mxu0 0.0
        %3833 = vmatpush1.msra.mxu0 0.0
        %3834 = vmatprep.subr.mxu0 0.0
        %3835 = vmatpush1.msra.mxu0 0.0
        %3836 = vmatprep.subr.mxu0 0.0
        %3837 = vmatpush1.msra.mxu0 0.0
        %3838 = vmatprep.subr.mxu0 0.0
        %3839 = vmatpush1.msra.mxu0 0.0
        %3840 = vmatprep.subr.mxu0 0.0
        %3841 = vmatpush1.msra.mxu0 0.0
        %3842 = vmatprep.subr.mxu0 0.0
        %3843 = vmatpush1.msra.mxu0 0.0
        %3844 = vmatprep.subr.mxu0 0.0
        %3845 = vmatpush1.msra.mxu0 0.0
        %3846 = vmatprep.subr.mxu0 0.0
        %3847 = vmatpush1.msra.mxu0 0.0
        %3848 = vmatprep.subr.mxu0 0.0
        %3849 = vmatpush1.msra.mxu0 0.0
        %3850 = vmatprep.subr.mxu0 0.0
        %3851 = vmatpush1.msra.mxu0 %v3821
        %3852 = vmatprep.subr.mxu0 0.0
        %3853 = vmatpush1.msra.mxu0 %v3820
        %3854 = vmatprep.subr.mxu0 0.0
        %3855 = vmatpush1.msra.mxu0 %v3819
        %3856 = vmatprep.subr.mxu0 0.0
        %3857 = vmatpush1.msra.mxu0 %v3818
        %3858 = vmatprep.subr.mxu0 0.0
        %3859 = vmatpush2.msra.mxu0 0.0
        %3860 = vmatprep.subr.mxu0 0.0
        %3861 = vmatpush2.msra.mxu0 0.0
        %3862 = vmatprep.subr.mxu0 0.0
        %3863 = vmatpush2.msra.mxu0 0.0
        %3864 = vmatprep.subr.mxu0 0.0
        %3865 = vmatpush2.msra.mxu0 0.0
        %3866 = vmatprep.subr.mxu0 0.0
        %3867 = vmatpush2.msra.mxu0 0.0
        %3868 = vmatprep.subr.mxu0 0.0
        %3869 = vmatpush2.msra.mxu0 0.0
        %3870 = vmatprep.subr.mxu0 0.0
        %3871 = vmatpush2.msra.mxu0 0.0
        %3872 = vmatprep.subr.mxu0 0.0
        %3873 = vmatpush2.msra.mxu0 0.0
        %3874 = vmatprep.subr.mxu0 0.0
        %3875 = vmatpush2.msra.mxu0 0.0
        %3876 = vmatprep.subr.mxu0 0.0
        %3877 = vmatpush2.msra.mxu0 0.0
        %3878 = vmatprep.subr.mxu0 0.0
        %3879 = vmatpush2.msra.mxu0 0.0
        %3880 = vmatprep.subr.mxu0 0.0
        %3881 = vmatpush2.msra.mxu0 0.0
        %3882 = vmatprep.subr.mxu0 0.0
        %3883 = vmatpush2.msra.mxu0 0.0
        %3884 = vmatprep.subr.mxu0 0.0
        %3885 = vmatpush2.msra.mxu0 0.0
        %3886 = vmatprep.subr.mxu0 0.0
        %3887 = vmatpush2.msra.mxu0 0.0
        %3888 = vmatprep.subr.mxu0 0.0
        %3889 = vmatpush2.msra.mxu0 0.0
        %3890 = vmatprep.mubr.f32.mxu0 0.0
        %3891 = vmatmul.mubr.f32.gmra.mxu0 %v3824
        %v3892 = vpop.f32.mrf.mxu0
        %v3893 = vadd.f32 %v3822, %v3892
        %v3894 = vpop.f32.mrf.mxu0
        %3895 = vdwg.mxu0
        %vm3896 = vcmask 8192
        %3897 = vst.msk [vmem:[%s535] sm:$0x1] %vm3896, %v3893
        %s3898 = sand.u32 %s389, 1
        %s3899 = scalar_lea.sflag [#allocation3], %s3898
        %s3900 = sand.u32 %s389, 1
        %s3901 = scalar_lea.vmem [#allocation2], %s3900
        // Predicated region
        $region85: #{tpu_custom_call.1} parent=83 // pred_check
          %p3902 = pneg %p399
        $region86: #{tpu_custom_call.1} parent=83 // pred_check_branch
          %3904 = sbr.rel (%p3902) target = $region88
        $region87: #{tpu_custom_call.1} parent=83 // pred_region
          %s3906 = ssub.s32 16, 16
          %3907 = vsyncadd %s3899, %s3906
          %s3908 = smul.addr %s30, 16
          %s3909 = scalar_lea.hbm %s16, %s3908
          %s3911 = sshll.u32 %s3901, 4
          %s3912 = int_to_ptr.vmem [resolvable:$true] %s3911
          %3914 = dma.vmem_to_hbm [thread:$0]  %s3912, 16, %s3909, %s3899
        $region88: #{tpu_custom_call.1} parent=83 // pred_fallthru
          _
      $region84: #{tpu_custom_call.1} parent=5 // pred_fallthru
        _
      %p3915 = scmp.le.s32.totalorder 2, %s25
      // Predicated region
      $region89: #{tpu_custom_call.1} parent=5 // pred_check
        %p3916 = pneg %p3915
      $region90: #{tpu_custom_call.1} parent=5 // pred_check_branch
        %3918 = sbr.rel (%p3916) target = $region92
      $region91: #{tpu_custom_call.1} parent=5 // pred_region
        %s3919 = ssub.s32 %s25, 2
        // Predicated region
        $region93: #{tpu_custom_call.1} parent=91 // pred_check
          %p3920 = pneg %p405
        $region94: #{tpu_custom_call.1} parent=91 // pred_check_branch
          %3922 = sbr.rel (%p3920) target = $region96
        $region95: #{tpu_custom_call.1} parent=91 // pred_region
          %s3923 = sand.u32 %s390, 1
          %s3924 = scalar_lea.sflag [#allocation3], %s3923
          %s3925 = sand.u32 %s390, 1
          %s3926 = scalar_lea.vmem [#allocation2], %s3925
          %3927 = dma.done %s3924, 16
        $region96: #{tpu_custom_call.1} parent=91 // pred_fallthru
          _
      $region92: #{tpu_custom_call.1} parent=5 // pred_fallthru
        _
    $region6: #{tpu_custom_call.1} parent=1 // loop_footer
      %s29 = sadd.s32 1, %s25
    $region7: #{tpu_custom_call.1} parent=1 // loop_footer_branch
      %24 = sbr.rel target = $region3
    $region8: #{tpu_custom_call.1} parent=1 // loop_exit
      _
    %3928 = vsyncpa [#allocation3], 1
    %s3929 = scalar_lea.sflag [#allocation3], 1
    %3930 = vsyncpa %s3929, 1

</llo_original>
